<compile_context>
chip_gen: v5e
topology: v5e:2x2
jax: 0.10.0
libtpu: 0.0.40
codegen_flags: <defaults>
</compile_context>

<pallas_src>
import math
from functools import partial

import jax
import jax.numpy as jnp
from jax import lax
from jax.experimental import pallas as pl
from jax.experimental.pallas import tpu as pltpu

NEG_INF = -1000000000.0   # matches masked_fill_(-1e9) in the PyTorch reference
LN_EPS = 1e-5             # nn.LayerNorm default eps

# Flipped to False at runtime if this JAX build rejects pipeline_mode=Buffered(1)
_SINGLE_BUFFER_WEIGHTS = [True]


def _layer_norm(x, gamma, beta, eps):
    mu = jnp.mean(x, axis=-1, keepdims=True)
    var = jnp.mean((x - mu) * (x - mu), axis=-1, keepdims=True)
    return (x - mu) * lax.rsqrt(var + eps) * gamma + beta


def _encoder_layer_kernel(
    x_ref,       # (1, S, D)   current batch element
    kpm_ref,     # (1, 1, S)   key-padding row (1.0 => masked key)
    sm_ref,      # (S, S)      shared src_mask (1.0 => masked)
    wqkv_ref,    # (D, 3D)     fused [Wq | Wk | Wv], already (in, out)
    wo_ref,      # (D, D)
    g1_ref, b1_ref,            # (1, D) LayerNorm1
    w1_ref, c1_ref,            # (D, TF), (1, TF)  FFN linear1 chunk
    w2_ref,                    # (TF, D)           FFN linear2 chunk
    c2_ref, g2_ref, b2_ref,    # (1, D)
    o_ref,       # (1, S, D)
    ctx_ref,     # (S, D) f32 scratch: per-head attention context
    y1_ref,      # (S, D) f32 scratch: post-LN1 activations (reused across F chunks)
    acc_ref,     # (S, D) f32 scratch: FFN output accumulator
    *, n_head: int,
):
    f = pl.program_id(1)
    nf = pl.num_programs(1)
    d_model = x_ref.shape[-1]
    d_k = d_model // n_head
    scale = 1.0 / math.sqrt(d_k)

    # ---------------- attention + residual + LayerNorm1: once per batch elem ----
    @pl.when(f == 0)
    def _attention():
        x = x_ref[0]                                           # (S, D)
        # Fused QKV projection (one wide MXU op), scale folded into Q.
        qkv = jnp.dot(x, wqkv_ref[...], preferred_element_type=jnp.float32)
        q = qkv[:, 0:d_model] * scale
        k = qkv[:, d_model:2 * d_model]
        v = qkv[:, 2 * d_model:3 * d_model]

        # Boolean mask rebuilt in-kernel from the tiny inputs (no (S,S) f32 DMA per batch).
        masked = jnp.logical_or(kpm_ref[0] != 0.0, sm_ref[...] != 0.0)   # (S, S)

        # TODO(synk): for d_k < 128 these per-head lane slices underfill the MXU;
        # pad/pair heads at real model sizes.
        for h in range(n_head):
            lo = h * d_k
            qh = q[:, lo:lo + d_k]
            kh = k[:, lo:lo + d_k]
            vh = v[:, lo:lo + d_k]
            # Contract d_k of both operands directly (no kh.T materialization).
            dot = lax.dot_general(qh, kh, (((1,), (1,)), ((), ())),
                                  preferred_element_type=jnp.float32)
            dot = jnp.where(masked, NEG_INF, dot)
            dot = dot - jnp.max(dot, axis=-1, keepdims=True)
            p = jnp.exp(dot)
            denom = jnp.sum(p, axis=-1, keepdims=True)
            p = p * pl.reciprocal(denom, approx=True)           # EUP, not VPU divide
            ctx_ref[:, lo:lo + d_k] = jnp.dot(
                p, vh, preferred_element_type=jnp.float32)

        attn_out = jnp.dot(ctx_ref[...], wo_ref[...],
                           preferred_element_type=jnp.float32)
        y1_ref[...] = _layer_norm(x + attn_out, g1_ref[...], b1_ref[...], LN_EPS)
        acc_ref[...] = jnp.zeros_like(acc_ref)

    # ---------------- FFN chunk over the hidden (F) dimension: every step -------
    hdn = jnp.dot(y1_ref[...], w1_ref[...],
                  preferred_element_type=jnp.float32) + c1_ref[...]
    hdn = jnp.maximum(hdn, 0.0)
    acc_ref[...] += jnp.dot(hdn, w2_ref[...], preferred_element_type=jnp.float32)

    # ---------------- residual + LayerNorm2 + store: at the last F chunk --------
    @pl.when(f == nf - 1)
    def _finalize():
        ff = acc_ref[...] + c2_ref[...]
        o_ref[0] = _layer_norm(y1_ref[...] + ff, g2_ref[...], b2_ref[...],
                               LN_EPS).astype(o_ref.dtype)


def _pick_f_tile(d_ff):
    """FFN hidden-dim tile: keeps resident FFN weights / (S,TF) hidden VMEM-friendly."""
    if d_ff <= 1024:
        return d_ff
    for tf in (1024, 896, 768, 640, 512, 384, 256, 128):
        if d_ff % tf == 0:
            return tf
    return d_ff   # no even multiple-of-128 split; fall back to untiled


def _vmem_limit_bytes(S, D, F, TF):
    weights = (3 * D * D + D * D + 2 * D * TF + 2 * TF * D + S * S + 8 * D) * 4
    tiles = 2 * (2 * S * D + S) * 4           # x / out / kpm (double buffered)
    scratch = 3 * S * D * 4
    interm = (3 * S * D + S * S + S * TF) * 4
    need = int((weights + tiles + scratch + interm) * 1.5)
    return int(min(max(need, 32 * 1024 * 1024), 100 * 1024 * 1024))


def _cost_estimate(B, S, D, F, n_head):
    flops = 2 * B * S * (3 * D * D + D * D + 2 * D * F) + 4 * B * S * S * D
    transcendentals = B * n_head * S * S + 4 * B * S
    bytes_accessed = 4 * (2 * B * S * D + B * S + S * S
                          + 4 * D * D + 2 * D * F + 6 * D + F)
    return pl.CostEstimate(flops=int(flops),
                           transcendentals=int(transcendentals),
                           bytes_accessed=int(bytes_accessed))


def encoder_layer_forward(x, kpm, sm, p, n_head):
    """One fused EncoderLayer forward.

    x:   (B, S, D)
    kpm: (B, 1, S) float, 1.0 where the key position is padding
    sm:  (S, S)    float, 1.0 where attention is disallowed
    """
    B, S, D = x.shape
    F = p["w1"].shape[0]
    f32 = jnp.float32
    TF = _pick_f_tile(F)
    NF = F // TF

    # One-time glue: fuse + transpose PyTorch (out,in) weights to (in,out),
    # lift 1-D params to (1, N) slabs (no in-kernel layout plumbing).
    wqkv = jnp.concatenate(
        [p["wq"].T, p["wk"].T, p["wv"].T], axis=1).astype(f32)        # (D, 3D)
    wo_t = p["wo"].T.astype(f32)                                      # (D, D)
    w1_t = p["w1"].T.astype(f32)                                      # (D, F)
    w2_t = p["w2"].T.astype(f32)                                      # (F, D)
    g1 = p["g1"].reshape(1, D).astype(f32)
    b1 = p["b1"].reshape(1, D).astype(f32)
    c1 = p["c1"].reshape(1, F).astype(f32)
    c2 = p["c2"].reshape(1, D).astype(f32)
    g2 = p["g2"].reshape(1, D).astype(f32)
    b2 = p["b2"].reshape(1, D).astype(f32)

    kernel = partial(_encoder_layer_kernel, n_head=n_head)

    def _in_specs(single_buffer):
        def wspec(shape, index_map):
            # Grid-invariant weights: single buffer (double-buffering them is pure VMEM waste).
            if single_buffer:
                return pl.BlockSpec(shape, index_map, pipeline_mode=pl.Buffered(1))
            return pl.BlockSpec(shape, index_map)

        return [
            pl.BlockSpec((1, S, D), lambda b, f: (b, 0, 0)),      # x
            pl.BlockSpec((1, 1, S), lambda b, f: (b, 0, 0)),      # key-padding row
            wspec((S, S), lambda b, f: (0, 0)),                   # shared src_mask
            wspec((D, 3 * D), lambda b, f: (0, 0)),               # fused QKV weight
            wspec((D, D), lambda b, f: (0, 0)),                   # WO
            wspec((1, D), lambda b, f: (0, 0)),                   # LN1 gamma
            wspec((1, D), lambda b, f: (0, 0)),                   # LN1 beta
            pl.BlockSpec((D, TF), lambda b, f: (0, f)),           # W1 chunk
            pl.BlockSpec((1, TF), lambda b, f: (0, f)),           # c1 chunk
            pl.BlockSpec((TF, D), lambda b, f: (f, 0)),           # W2 chunk
            wspec((1, D), lambda b, f: (0, 0)),                   # c2
            wspec((1, D), lambda b, f: (0, 0)),                   # LN2 gamma
            wspec((1, D), lambda b, f: (0, 0)),                   # LN2 beta
        ]

    def run(single_buffer):
        fn = pl.pallas_call(
            kernel,
            out_shape=jax.ShapeDtypeStruct((B, S, D), x.dtype),
            grid_spec=pltpu.PrefetchScalarGridSpec(
                num_scalar_prefetch=0,
                grid=(B, NF),
                in_specs=_in_specs(single_buffer),
                out_specs=pl.BlockSpec((1, S, D), lambda b, f: (b, 0, 0)),
                scratch_shapes=[
                    pltpu.VMEM((S, D), jnp.float32),   # per-head context
                    pltpu.VMEM((S, D), jnp.float32),   # y1 (post-LN1)
                    pltpu.VMEM((S, D), jnp.float32),   # FFN accumulator
                ],
            ),
            compiler_params=pltpu.CompilerParams(
                dimension_semantics=("parallel", "arbitrary"),
                vmem_limit_bytes=_vmem_limit_bytes(S, D, F, TF),
            ),
            cost_estimate=_cost_estimate(B, S, D, F, n_head),
        )
        return fn(x, kpm, sm, wqkv, wo_t, g1, b1, w1_t, c1, w2_t, c2, g2, b2)

    if _SINGLE_BUFFER_WEIGHTS[0]:
        try:
            out = run(True)
            jax.block_until_ready(out)
            return out
        except Exception:
            # pipeline_mode=Buffered(1) not supported by this build: fall back.
            _SINGLE_BUFFER_WEIGHTS[0] = False
    return run(False)


def encoder_forward(x, layer_params, n_head, src_mask=None, src_key_padding_mask=None):
    """Encoder.forward: sequentially apply every layer (fused Pallas kernel each)."""
    B, S, _ = x.shape
    if src_key_padding_mask is None:
        kpm = jnp.zeros((B, 1, S), jnp.float32)
    else:
        kpm = src_key_padding_mask.astype(jnp.float32).reshape(B, 1, S)
    if src_mask is None:
        sm = jnp.zeros((S, S), jnp.float32)
    else:
        # TODO(synk): float (additive) attn_mask branch of the reference is not
        # implemented; boolean/int src_mask (masked_fill semantics) only.
        sm = src_mask.astype(jnp.float32).reshape(S, S)
    for p in layer_params:
        x = encoder_layer_forward(x, kpm, sm, p, n_head)
    return x


# ----------------------------- pure-JAX reference -----------------------------
def _layer_reference(x, mask, p, n_head):
    B, S, D = x.shape
    dk = D // n_head
    q = (x @ p["wq"].T).reshape(B, S, n_head, dk).transpose(0, 2, 1, 3)
    k = (x @ p["wk"].T).reshape(B, S, n_head, dk).transpose(0, 2, 1, 3)
    v = (x @ p["wv"].T).reshape(B, S, n_head, dk).transpose(0, 2, 1, 3)
    dot = jnp.einsum("bhqd,bhkd->bhqk", q, k) / math.sqrt(dk)
    dot = jnp.where(mask[:, None, :, :] != 0.0, NEG_INF, dot)
    attn = jax.nn.softmax(dot, axis=-1)
    ctx = jnp.einsum("bhqk,bhkd->bhqd", attn, v).transpose(0, 2, 1, 3).reshape(B, S, D)
    y1 = _layer_norm(x + ctx @ p["wo"].T, p["g1"], p["b1"], LN_EPS)
    ff = jnp.maximum(y1 @ p["w1"].T + p["c1"], 0.0) @ p["w2"].T + p["c2"]
    return _layer_norm(y1 + ff, p["g2"], p["b2"], LN_EPS)


def encoder_reference(x, layer_params, n_head, src_mask=None, src_key_padding_mask=None):
    B, S, _ = x.shape
    mask = jnp.zeros((B, S, S), jnp.float32)
    if src_key_padding_mask is not None:
        mask = jnp.maximum(mask, src_key_padding_mask.astype(jnp.float32)[:, None, :])
    if src_mask is not None:
        mask = jnp.maximum(
            mask, jnp.broadcast_to(src_mask.astype(jnp.float32)[None, :, :], (B, S, S)))
    for p in layer_params:
        x = _layer_reference(x, mask, p, n_head)
    return x


def init_layer_params(key, d_model, d_ff):
    ks = jax.random.split(key, 8)
    s = 1.0 / math.sqrt(d_model)
    sf = 1.0 / math.sqrt(d_ff)
    u = jax.random.uniform
    return {
        "wq": u(ks[0], (d_model, d_model), jnp.float32, -s, s),
        "wk": u(ks[1], (d_model, d_model), jnp.float32, -s, s),
        "wv": u(ks[2], (d_model, d_model), jnp.float32, -s, s),
        "wo": u(ks[3], (d_model, d_model), jnp.float32, -s, s),
        "g1": jnp.ones((d_model,), jnp.float32),
        "b1": jnp.zeros((d_model,), jnp.float32),
        "w1": u(ks[4], (d_ff, d_model), jnp.float32, -s, s),
        "c1": u(ks[5], (d_ff,), jnp.float32, -s, s),
        "w2": u(ks[6], (d_model, d_ff), jnp.float32, -sf, sf),
        "c2": u(ks[7], (d_model,), jnp.float32, -sf, sf),
        "g2": jnp.ones((d_model,), jnp.float32),
        "b2": jnp.zeros((d_model,), jnp.float32),
    }


if __name__ == "__main__":
    B, S = 2, 8
    d_model, n_head, d_ff, n_layer = 32, 4, 64, 2

    key = jax.random.PRNGKey(0)
    kx, kp = jax.random.split(key)
    x = jax.random.normal(kx, (B, S, d_model), dtype=jnp.float32)

    # Note: the PyTorch `clone` deep-copies one layer (identical initial weights);
    # the kernel supports arbitrary per-layer weights, so use distinct ones.
    layer_keys = jax.random.split(kp, n_layer)
    layer_params = [init_layer_params(k, d_model, d_ff) for k in layer_keys]

    # approx=True softmax reciprocal (EUP) -> slightly looser tolerance vs f32 reference.
    TOL = dict(atol=5e-3, rtol=5e-3)

    # Case 1: default call (src_mask=None, src_key_padding_mask=None)
    out = jax.block_until_ready(encoder_forward(x, layer_params, n_head))
    ref = encoder_reference(x, layer_params, n_head)
    assert out.shape == (B, S, d_model)
    assert jnp.allclose(out, ref, **TOL)

    # Case 2: key_padding_mask (mask the last key position of batch 1)
    kpm = jnp.zeros((B, S), jnp.int32).at[1, S - 1].set(1)
    out_m = jax.block_until_ready(
        encoder_forward(x, layer_params, n_head, src_key_padding_mask=kpm))
    ref_m = encoder_reference(x, layer_params, n_head, src_key_padding_mask=kpm)
    assert jnp.allclose(out_m, ref_m, **TOL)

    # Case 3: boolean src_mask (causal) + key_padding_mask together
    causal = jnp.triu(jnp.ones((S, S), jnp.int32), k=1)
    out_c = jax.block_until_ready(
        encoder_forward(x, layer_params, n_head,
                        src_mask=causal, src_key_padding_mask=kpm))
    ref_c = encoder_reference(x, layer_params, n_head,
                              src_mask=causal, src_key_padding_mask=kpm)
    assert jnp.allclose(out_c, ref_c, **TOL)

    print("KERNEL_OK")
</pallas_src>

<mosaic_0001>
module attributes {stable_mosaic.version = 11 : i64} {
  func.func @_encoder_layer_kernel(%arg0: i32, %arg1: i32, %arg2: memref<1x8x32xf32, #tpu.memory_space<vmem>>, %arg3: memref<1x1x8xf32, #tpu.memory_space<vmem>>, %arg4: memref<8x8xf32, #tpu.memory_space<vmem>>, %arg5: memref<32x96xf32, #tpu.memory_space<vmem>>, %arg6: memref<32x32xf32, #tpu.memory_space<vmem>>, %arg7: memref<1x32xf32, #tpu.memory_space<vmem>>, %arg8: memref<1x32xf32, #tpu.memory_space<vmem>>, %arg9: memref<32x64xf32, #tpu.memory_space<vmem>>, %arg10: memref<1x64xf32, #tpu.memory_space<vmem>>, %arg11: memref<64x32xf32, #tpu.memory_space<vmem>>, %arg12: memref<1x32xf32, #tpu.memory_space<vmem>>, %arg13: memref<1x32xf32, #tpu.memory_space<vmem>>, %arg14: memref<1x32xf32, #tpu.memory_space<vmem>>, %arg15: memref<1x8x32xf32, #tpu.memory_space<vmem>>, %arg16: memref<8x32xf32, #tpu.memory_space<vmem>>, %arg17: memref<8x32xf32, #tpu.memory_space<vmem>>, %arg18: memref<8x32xf32, #tpu.memory_space<vmem>>) attributes {dimension_semantics = [#tpu.dimension_semantics<parallel>, #tpu.dimension_semantics<arbitrary>], iteration_bounds = array<i64: 2, 1>, scalar_prefetch = 0 : i64, scratch_operands = 3 : i64, tpu.core_type = #tpu.core_type<tc>, window_params = [{transform_indices = @transform_0, window_bounds = array<i64: 1, 8, 32>}, {transform_indices = @transform_1, window_bounds = array<i64: 1, 1, 8>}, {pipeline_mode = #tpu.pipeline_mode<synchronous>, transform_indices = @transform_2, window_bounds = array<i64: 8, 8>}, {pipeline_mode = #tpu.pipeline_mode<synchronous>, transform_indices = @transform_3, window_bounds = array<i64: 32, 96>}, {pipeline_mode = #tpu.pipeline_mode<synchronous>, transform_indices = @transform_4, window_bounds = array<i64: 32, 32>}, {pipeline_mode = #tpu.pipeline_mode<synchronous>, transform_indices = @transform_5, window_bounds = array<i64: 1, 32>}, {pipeline_mode = #tpu.pipeline_mode<synchronous>, transform_indices = @transform_6, window_bounds = array<i64: 1, 32>}, {transform_indices = @transform_7, window_bounds = array<i64: 32, 64>}, {transform_indices = @transform_8, window_bounds = array<i64: 1, 64>}, {transform_indices = @transform_9, window_bounds = array<i64: 64, 32>}, {pipeline_mode = #tpu.pipeline_mode<synchronous>, transform_indices = @transform_10, window_bounds = array<i64: 1, 32>}, {pipeline_mode = #tpu.pipeline_mode<synchronous>, transform_indices = @transform_11, window_bounds = array<i64: 1, 32>}, {pipeline_mode = #tpu.pipeline_mode<synchronous>, transform_indices = @transform_12, window_bounds = array<i64: 1, 32>}, {transform_indices = @transform_13, window_bounds = array<i64: 1, 8, 32>}]} {
    %c0_i32 = arith.constant 0 : i32
    %0 = arith.cmpi eq, %arg1, %c0_i32 : i32
    %1 = arith.extui %0 : i1 to i32
    %c0_i32_0 = arith.constant 0 : i32
    %2 = arith.cmpi ne, %1, %c0_i32_0 : i32
    scf.if %2 {
      %c0_16 = arith.constant 0 : index
      %c0_17 = arith.constant 0 : index
      %c0_18 = arith.constant 0 : index
      %19 = vector.load %arg2[%c0_16, %c0_17, %c0_18] : memref<1x8x32xf32, #tpu.memory_space<vmem>>, vector<1x8x32xf32>
      %20 = vector.shape_cast %19 : vector<1x8x32xf32> to vector<8x32xf32>
      %c0_19 = arith.constant 0 : index
      %c0_20 = arith.constant 0 : index
      %21 = vector.load %arg5[%c0_19, %c0_20] : memref<32x96xf32, #tpu.memory_space<vmem>>, vector<32x96xf32>
      %cst_21 = arith.constant dense<0.000000e+00> : vector<8x96xf32>
      %22 = tpu.matmul %20, %21, %cst_21 {dimension_numbers = #tpu.dot_dimension_numbers<[1], [0], [0], [1], [0, 0, 1, 1], [], []>} : vector<8x32xf32>, vector<32x96xf32>, vector<8x96xf32> -> vector<8x96xf32>
      %23 = vector.extract_strided_slice %22 {offsets = [0, 0], sizes = [8, 32], strides = [1, 1]} : vector<8x96xf32> to vector<8x32xf32>
      %cst_22 = arith.constant 0.353553385 : f32
      %24 = vector.broadcast %cst_22 : f32 to vector<8x32xf32>
      %25 = arith.mulf %23, %24 : vector<8x32xf32>
      %26 = vector.extract_strided_slice %22 {offsets = [0, 32], sizes = [8, 32], strides = [1, 1]} : vector<8x96xf32> to vector<8x32xf32>
      %27 = vector.extract_strided_slice %22 {offsets = [0, 64], sizes = [8, 32], strides = [1, 1]} : vector<8x96xf32> to vector<8x32xf32>
      %c0_23 = arith.constant 0 : index
      %c0_24 = arith.constant 0 : index
      %c0_25 = arith.constant 0 : index
      %28 = vector.load %arg3[%c0_23, %c0_24, %c0_25] : memref<1x1x8xf32, #tpu.memory_space<vmem>>, vector<1x1x8xf32>
      %29 = vector.shape_cast %28 : vector<1x1x8xf32> to vector<1x8xf32>
      %cst_26 = arith.constant 0.000000e+00 : f32
      %30 = vector.broadcast %cst_26 : f32 to vector<1x8xf32>
      %31 = arith.cmpf one, %29, %30 : vector<1x8xf32>
      %c0_27 = arith.constant 0 : index
      %c0_28 = arith.constant 0 : index
      %32 = vector.load %arg4[%c0_27, %c0_28] : memref<8x8xf32, #tpu.memory_space<vmem>>, vector<8x8xf32>
      %cst_29 = arith.constant 0.000000e+00 : f32
      %33 = vector.broadcast %cst_29 : f32 to vector<8x8xf32>
      %34 = arith.cmpf one, %32, %33 : vector<8x8xf32>
      %35 = vector.broadcast %31 : vector<1x8xi1> to vector<8x8xi1>
      %36 = arith.ori %35, %34 : vector<8x8xi1>
      %37 = vector.extract_strided_slice %25 {offsets = [0, 0], sizes = [8, 8], strides = [1, 1]} : vector<8x32xf32> to vector<8x8xf32>
      %38 = vector.extract_strided_slice %26 {offsets = [0, 0], sizes = [8, 8], strides = [1, 1]} : vector<8x32xf32> to vector<8x8xf32>
      %39 = vector.extract_strided_slice %27 {offsets = [0, 0], sizes = [8, 8], strides = [1, 1]} : vector<8x32xf32> to vector<8x8xf32>
      %cst_30 = arith.constant dense<0.000000e+00> : vector<8x8xf32>
      %40 = tpu.matmul %37, %38, %cst_30 {dimension_numbers = #tpu.dot_dimension_numbers<[1], [1], [0], [0], [0, 0, 1, 0], [], []>} : vector<8x8xf32>, vector<8x8xf32>, vector<8x8xf32> -> vector<8x8xf32>
      %cst_31 = arith.constant -1.000000e+09 : f32
      %41 = vector.broadcast %cst_31 : f32 to vector<8x8xf32>
      %42 = arith.select %36, %41, %40 : vector<8x8xi1>, vector<8x8xf32>
      %cst_32 = arith.constant dense<0xFF800000> : vector<8xf32>
      %43 = vector.multi_reduction <maximumf>, %42, %cst_32 [1] : vector<8x8xf32> to vector<8xf32>
      %44 = vector.shape_cast %43 : vector<8xf32> to vector<8x1xf32>
      %45 = vector.broadcast %44 : vector<8x1xf32> to vector<8x8xf32>
      %46 = arith.subf %42, %45 : vector<8x8xf32>
      %47 = math.exp %46 : vector<8x8xf32>
      %cst_33 = arith.constant dense<0.000000e+00> : vector<8xf32>
      %48 = vector.multi_reduction <add>, %47, %cst_33 [1] : vector<8x8xf32> to vector<8xf32>
      %49 = vector.shape_cast %48 : vector<8xf32> to vector<8x1xf32>
      %50 = tpu.reciprocal %49 {approx = true} : vector<8x1xf32> -> vector<8x1xf32>
      %51 = vector.broadcast %50 : vector<8x1xf32> to vector<8x8xf32>
      %52 = arith.mulf %47, %51 : vector<8x8xf32>
      %cst_34 = arith.constant dense<0.000000e+00> : vector<8x8xf32>
      %53 = tpu.matmul %52, %39, %cst_34 {dimension_numbers = #tpu.dot_dimension_numbers<[1], [0], [0], [1], [0, 0, 1, 1], [], []>} : vector<8x8xf32>, vector<8x8xf32>, vector<8x8xf32> -> vector<8x8xf32>
      %c0_35 = arith.constant 0 : index
      %c0_36 = arith.constant 0 : index
      %54 = vector.load %arg16[%c0_35, %c0_36] : memref<8x32xf32, #tpu.memory_space<vmem>>, vector<8x8xf32>
      tpu.vector_store %arg16[%c0_35, %c0_36], %53 {strides = array<i32>} : memref<8x32xf32, #tpu.memory_space<vmem>>, vector<8x8xf32>,
      %55 = vector.extract_strided_slice %25 {offsets = [0, 8], sizes = [8, 8], strides = [1, 1]} : vector<8x32xf32> to vector<8x8xf32>
      %56 = vector.extract_strided_slice %26 {offsets = [0, 8], sizes = [8, 8], strides = [1, 1]} : vector<8x32xf32> to vector<8x8xf32>
      %57 = vector.extract_strided_slice %27 {offsets = [0, 8], sizes = [8, 8], strides = [1, 1]} : vector<8x32xf32> to vector<8x8xf32>
      %cst_37 = arith.constant dense<0.000000e+00> : vector<8x8xf32>
      %58 = tpu.matmul %55, %56, %cst_37 {dimension_numbers = #tpu.dot_dimension_numbers<[1], [1], [0], [0], [0, 0, 1, 0], [], []>} : vector<8x8xf32>, vector<8x8xf32>, vector<8x8xf32> -> vector<8x8xf32>
      %cst_38 = arith.constant -1.000000e+09 : f32
      %59 = vector.broadcast %cst_38 : f32 to vector<8x8xf32>
      %60 = arith.select %36, %59, %58 : vector<8x8xi1>, vector<8x8xf32>
      %cst_39 = arith.constant dense<0xFF800000> : vector<8xf32>
      %61 = vector.multi_reduction <maximumf>, %60, %cst_39 [1] : vector<8x8xf32> to vector<8xf32>
      %62 = vector.shape_cast %61 : vector<8xf32> to vector<8x1xf32>
      %63 = vector.broadcast %62 : vector<8x1xf32> to vector<8x8xf32>
      %64 = arith.subf %60, %63 : vector<8x8xf32>
      %65 = math.exp %64 : vector<8x8xf32>
      %cst_40 = arith.constant dense<0.000000e+00> : vector<8xf32>
      %66 = vector.multi_reduction <add>, %65, %cst_40 [1] : vector<8x8xf32> to vector<8xf32>
      %67 = vector.shape_cast %66 : vector<8xf32> to vector<8x1xf32>
      %68 = tpu.reciprocal %67 {approx = true} : vector<8x1xf32> -> vector<8x1xf32>
      %69 = vector.broadcast %68 : vector<8x1xf32> to vector<8x8xf32>
      %70 = arith.mulf %65, %69 : vector<8x8xf32>
      %cst_41 = arith.constant dense<0.000000e+00> : vector<8x8xf32>
      %71 = tpu.matmul %70, %57, %cst_41 {dimension_numbers = #tpu.dot_dimension_numbers<[1], [0], [0], [1], [0, 0, 1, 1], [], []>} : vector<8x8xf32>, vector<8x8xf32>, vector<8x8xf32> -> vector<8x8xf32>
      %c0_42 = arith.constant 0 : index
      %c8 = arith.constant 8 : index
      %72 = vector.load %arg16[%c0_42, %c8] : memref<8x32xf32, #tpu.memory_space<vmem>>, vector<8x8xf32>
      tpu.vector_store %arg16[%c0_42, %c8], %71 {strides = array<i32>} : memref<8x32xf32, #tpu.memory_space<vmem>>, vector<8x8xf32>,
      %73 = vector.extract_strided_slice %25 {offsets = [0, 16], sizes = [8, 8], strides = [1, 1]} : vector<8x32xf32> to vector<8x8xf32>
      %74 = vector.extract_strided_slice %26 {offsets = [0, 16], sizes = [8, 8], strides = [1, 1]} : vector<8x32xf32> to vector<8x8xf32>
      %75 = vector.extract_strided_slice %27 {offsets = [0, 16], sizes = [8, 8], strides = [1, 1]} : vector<8x32xf32> to vector<8x8xf32>
      %cst_43 = arith.constant dense<0.000000e+00> : vector<8x8xf32>
      %76 = tpu.matmul %73, %74, %cst_43 {dimension_numbers = #tpu.dot_dimension_numbers<[1], [1], [0], [0], [0, 0, 1, 0], [], []>} : vector<8x8xf32>, vector<8x8xf32>, vector<8x8xf32> -> vector<8x8xf32>
      %cst_44 = arith.constant -1.000000e+09 : f32
      %77 = vector.broadcast %cst_44 : f32 to vector<8x8xf32>
      %78 = arith.select %36, %77, %76 : vector<8x8xi1>, vector<8x8xf32>
      %cst_45 = arith.constant dense<0xFF800000> : vector<8xf32>
      %79 = vector.multi_reduction <maximumf>, %78, %cst_45 [1] : vector<8x8xf32> to vector<8xf32>
      %80 = vector.shape_cast %79 : vector<8xf32> to vector<8x1xf32>
      %81 = vector.broadcast %80 : vector<8x1xf32> to vector<8x8xf32>
      %82 = arith.subf %78, %81 : vector<8x8xf32>
      %83 = math.exp %82 : vector<8x8xf32>
      %cst_46 = arith.constant dense<0.000000e+00> : vector<8xf32>
      %84 = vector.multi_reduction <add>, %83, %cst_46 [1] : vector<8x8xf32> to vector<8xf32>
      %85 = vector.shape_cast %84 : vector<8xf32> to vector<8x1xf32>
      %86 = tpu.reciprocal %85 {approx = true} : vector<8x1xf32> -> vector<8x1xf32>
      %87 = vector.broadcast %86 : vector<8x1xf32> to vector<8x8xf32>
      %88 = arith.mulf %83, %87 : vector<8x8xf32>
      %cst_47 = arith.constant dense<0.000000e+00> : vector<8x8xf32>
      %89 = tpu.matmul %88, %75, %cst_47 {dimension_numbers = #tpu.dot_dimension_numbers<[1], [0], [0], [1], [0, 0, 1, 1], [], []>} : vector<8x8xf32>, vector<8x8xf32>, vector<8x8xf32> -> vector<8x8xf32>
      %c0_48 = arith.constant 0 : index
      %c16 = arith.constant 16 : index
      %90 = vector.load %arg16[%c0_48, %c16] : memref<8x32xf32, #tpu.memory_space<vmem>>, vector<8x8xf32>
      tpu.vector_store %arg16[%c0_48, %c16], %89 {strides = array<i32>} : memref<8x32xf32, #tpu.memory_space<vmem>>, vector<8x8xf32>,
      %91 = vector.extract_strided_slice %25 {offsets = [0, 24], sizes = [8, 8], strides = [1, 1]} : vector<8x32xf32> to vector<8x8xf32>
      %92 = vector.extract_strided_slice %26 {offsets = [0, 24], sizes = [8, 8], strides = [1, 1]} : vector<8x32xf32> to vector<8x8xf32>
      %93 = vector.extract_strided_slice %27 {offsets = [0, 24], sizes = [8, 8], strides = [1, 1]} : vector<8x32xf32> to vector<8x8xf32>
      %cst_49 = arith.constant dense<0.000000e+00> : vector<8x8xf32>
      %94 = tpu.matmul %91, %92, %cst_49 {dimension_numbers = #tpu.dot_dimension_numbers<[1], [1], [0], [0], [0, 0, 1, 0], [], []>} : vector<8x8xf32>, vector<8x8xf32>, vector<8x8xf32> -> vector<8x8xf32>
      %cst_50 = arith.constant -1.000000e+09 : f32
      %95 = vector.broadcast %cst_50 : f32 to vector<8x8xf32>
      %96 = arith.select %36, %95, %94 : vector<8x8xi1>, vector<8x8xf32>
      %cst_51 = arith.constant dense<0xFF800000> : vector<8xf32>
      %97 = vector.multi_reduction <maximumf>, %96, %cst_51 [1] : vector<8x8xf32> to vector<8xf32>
      %98 = vector.shape_cast %97 : vector<8xf32> to vector<8x1xf32>
      %99 = vector.broadcast %98 : vector<8x1xf32> to vector<8x8xf32>
      %100 = arith.subf %96, %99 : vector<8x8xf32>
      %101 = math.exp %100 : vector<8x8xf32>
      %cst_52 = arith.constant dense<0.000000e+00> : vector<8xf32>
      %102 = vector.multi_reduction <add>, %101, %cst_52 [1] : vector<8x8xf32> to vector<8xf32>
      %103 = vector.shape_cast %102 : vector<8xf32> to vector<8x1xf32>
      %104 = tpu.reciprocal %103 {approx = true} : vector<8x1xf32> -> vector<8x1xf32>
      %105 = vector.broadcast %104 : vector<8x1xf32> to vector<8x8xf32>
      %106 = arith.mulf %101, %105 : vector<8x8xf32>
      %cst_53 = arith.constant dense<0.000000e+00> : vector<8x8xf32>
      %107 = tpu.matmul %106, %93, %cst_53 {dimension_numbers = #tpu.dot_dimension_numbers<[1], [0], [0], [1], [0, 0, 1, 1], [], []>} : vector<8x8xf32>, vector<8x8xf32>, vector<8x8xf32> -> vector<8x8xf32>
      %c0_54 = arith.constant 0 : index
      %c24 = arith.constant 24 : index
      %108 = vector.load %arg16[%c0_54, %c24] : memref<8x32xf32, #tpu.memory_space<vmem>>, vector<8x8xf32>
      tpu.vector_store %arg16[%c0_54, %c24], %107 {strides = array<i32>} : memref<8x32xf32, #tpu.memory_space<vmem>>, vector<8x8xf32>,
      %c0_55 = arith.constant 0 : index
      %c0_56 = arith.constant 0 : index
      %109 = vector.load %arg16[%c0_55, %c0_56] : memref<8x32xf32, #tpu.memory_space<vmem>>, vector<8x32xf32>
      %c0_57 = arith.constant 0 : index
      %c0_58 = arith.constant 0 : index
      %110 = vector.load %arg6[%c0_57, %c0_58] : memref<32x32xf32, #tpu.memory_space<vmem>>, vector<32x32xf32>
      %cst_59 = arith.constant dense<0.000000e+00> : vector<8x32xf32>
      %111 = tpu.matmul %109, %110, %cst_59 {dimension_numbers = #tpu.dot_dimension_numbers<[1], [0], [0], [1], [0, 0, 1, 1], [], []>} : vector<8x32xf32>, vector<32x32xf32>, vector<8x32xf32> -> vector<8x32xf32>
      %112 = arith.addf %20, %111 : vector<8x32xf32>
      %c0_60 = arith.constant 0 : index
      %c0_61 = arith.constant 0 : index
      %113 = vector.load %arg7[%c0_60, %c0_61] : memref<1x32xf32, #tpu.memory_space<vmem>>, vector<1x32xf32>
      %c0_62 = arith.constant 0 : index
      %c0_63 = arith.constant 0 : index
      %114 = vector.load %arg8[%c0_62, %c0_63] : memref<1x32xf32, #tpu.memory_space<vmem>>, vector<1x32xf32>
      %cst_64 = arith.constant dense<0.000000e+00> : vector<8xf32>
      %115 = vector.multi_reduction <add>, %112, %cst_64 [1] : vector<8x32xf32> to vector<8xf32>
      %116 = vector.shape_cast %115 : vector<8xf32> to vector<8x1xf32>
      %cst_65 = arith.constant 3.200000e+01 : f32
      %117 = vector.broadcast %cst_65 : f32 to vector<8x1xf32>
      %118 = arith.divf %116, %117 : vector<8x1xf32>
      %119 = vector.broadcast %118 : vector<8x1xf32> to vector<8x32xf32>
      %120 = arith.subf %112, %119 : vector<8x32xf32>
      %121 = vector.broadcast %118 : vector<8x1xf32> to vector<8x32xf32>
      %122 = arith.subf %112, %121 : vector<8x32xf32>
      %123 = arith.mulf %120, %122 : vector<8x32xf32>
      %cst_66 = arith.constant dense<0.000000e+00> : vector<8xf32>
      %124 = vector.multi_reduction <add>, %123, %cst_66 [1] : vector<8x32xf32> to vector<8xf32>
      %125 = vector.shape_cast %124 : vector<8xf32> to vector<8x1xf32>
      %cst_67 = arith.constant 3.200000e+01 : f32
      %126 = vector.broadcast %cst_67 : f32 to vector<8x1xf32>
      %127 = arith.divf %125, %126 : vector<8x1xf32>
      %128 = vector.broadcast %118 : vector<8x1xf32> to vector<8x32xf32>
      %129 = arith.subf %112, %128 : vector<8x32xf32>
      %cst_68 = arith.constant 9.99999974E-6 : f32
      %130 = vector.broadcast %cst_68 : f32 to vector<8x1xf32>
      %131 = arith.addf %127, %130 : vector<8x1xf32>
      %132 = math.rsqrt %131 : vector<8x1xf32>
      %133 = vector.broadcast %132 : vector<8x1xf32> to vector<8x32xf32>
      %134 = arith.mulf %129, %133 : vector<8x32xf32>
      %135 = vector.broadcast %113 : vector<1x32xf32> to vector<8x32xf32>
      %136 = arith.mulf %134, %135 : vector<8x32xf32>
      %137 = vector.broadcast %114 : vector<1x32xf32> to vector<8x32xf32>
      %138 = arith.addf %136, %137 : vector<8x32xf32>
      %c0_69 = arith.constant 0 : index
      %c0_70 = arith.constant 0 : index
      %139 = vector.load %arg17[%c0_69, %c0_70] : memref<8x32xf32, #tpu.memory_space<vmem>>, vector<8x32xf32>
      tpu.vector_store %arg17[%c0_69, %c0_70], %138 {strides = array<i32>} : memref<8x32xf32, #tpu.memory_space<vmem>>, vector<8x32xf32>,
      %cst_71 = arith.constant 0.000000e+00 : f32
      %140 = vector.broadcast %cst_71 : f32 to vector<8x32xf32>
      %c0_72 = arith.constant 0 : index
      %c0_73 = arith.constant 0 : index
      %141 = vector.load %arg18[%c0_72, %c0_73] : memref<8x32xf32, #tpu.memory_space<vmem>>, vector<8x32xf32>
      tpu.vector_store %arg18[%c0_72, %c0_73], %140 {strides = array<i32>} : memref<8x32xf32, #tpu.memory_space<vmem>>, vector<8x32xf32>,
    } else {
    }
    %c0 = arith.constant 0 : index
    %c0_1 = arith.constant 0 : index
    %3 = vector.load %arg17[%c0, %c0_1] : memref<8x32xf32, #tpu.memory_space<vmem>>, vector<8x32xf32>
    %c0_2 = arith.constant 0 : index
    %c0_3 = arith.constant 0 : index
    %4 = vector.load %arg9[%c0_2, %c0_3] : memref<32x64xf32, #tpu.memory_space<vmem>>, vector<32x64xf32>
    %cst = arith.constant dense<0.000000e+00> : vector<8x64xf32>
    %5 = tpu.matmul %3, %4, %cst {dimension_numbers = #tpu.dot_dimension_numbers<[1], [0], [0], [1], [0, 0, 1, 1], [], []>} : vector<8x32xf32>, vector<32x64xf32>, vector<8x64xf32> -> vector<8x64xf32>
    %c0_4 = arith.constant 0 : index
    %c0_5 = arith.constant 0 : index
    %6 = vector.load %arg10[%c0_4, %c0_5] : memref<1x64xf32, #tpu.memory_space<vmem>>, vector<1x64xf32>
    %7 = vector.broadcast %6 : vector<1x64xf32> to vector<8x64xf32>
    %8 = arith.addf %5, %7 : vector<8x64xf32>
    %cst_6 = arith.constant 0.000000e+00 : f32
    %9 = vector.broadcast %cst_6 : f32 to vector<8x64xf32>
    %10 = arith.maximumf %8, %9 : vector<8x64xf32>
    %c0_7 = arith.constant 0 : index
    %c0_8 = arith.constant 0 : index
    %11 = vector.load %arg18[%c0_7, %c0_8] : memref<8x32xf32, #tpu.memory_space<vmem>>, vector<8x32xf32>
    %c0_9 = arith.constant 0 : index
    %c0_10 = arith.constant 0 : index
    %12 = vector.load %arg11[%c0_9, %c0_10] : memref<64x32xf32, #tpu.memory_space<vmem>>, vector<64x32xf32>
    %cst_11 = arith.constant dense<0.000000e+00> : vector<8x32xf32>
    %13 = tpu.matmul %10, %12, %cst_11 {dimension_numbers = #tpu.dot_dimension_numbers<[1], [0], [0], [1], [0, 0, 1, 1], [], []>} : vector<8x64xf32>, vector<64x32xf32>, vector<8x32xf32> -> vector<8x32xf32>
    %14 = arith.addf %11, %13 : vector<8x32xf32>
    %c0_12 = arith.constant 0 : index
    %c0_13 = arith.constant 0 : index
    %15 = vector.load %arg18[%c0_12, %c0_13] : memref<8x32xf32, #tpu.memory_space<vmem>>, vector<8x32xf32>
    tpu.vector_store %arg18[%c0_12, %c0_13], %14 {strides = array<i32>} : memref<8x32xf32, #tpu.memory_space<vmem>>, vector<8x32xf32>,
    %c0_i32_14 = arith.constant 0 : i32
    %16 = arith.cmpi eq, %arg1, %c0_i32_14 : i32
    %17 = arith.extui %16 : i1 to i32
    %c0_i32_15 = arith.constant 0 : i32
    %18 = arith.cmpi ne, %17, %c0_i32_15 : i32
    scf.if %18 {
      %c0_16 = arith.constant 0 : index
      %c0_17 = arith.constant 0 : index
      %19 = vector.load %arg18[%c0_16, %c0_17] : memref<8x32xf32, #tpu.memory_space<vmem>>, vector<8x32xf32>
      %c0_18 = arith.constant 0 : index
      %c0_19 = arith.constant 0 : index
      %20 = vector.load %arg12[%c0_18, %c0_19] : memref<1x32xf32, #tpu.memory_space<vmem>>, vector<1x32xf32>
      %21 = vector.broadcast %20 : vector<1x32xf32> to vector<8x32xf32>
      %22 = arith.addf %19, %21 : vector<8x32xf32>
      %c0_20 = arith.constant 0 : index
      %c0_21 = arith.constant 0 : index
      %23 = vector.load %arg17[%c0_20, %c0_21] : memref<8x32xf32, #tpu.memory_space<vmem>>, vector<8x32xf32>
      %24 = arith.addf %23, %22 : vector<8x32xf32>
      %c0_22 = arith.constant 0 : index
      %c0_23 = arith.constant 0 : index
      %25 = vector.load %arg13[%c0_22, %c0_23] : memref<1x32xf32, #tpu.memory_space<vmem>>, vector<1x32xf32>
      %c0_24 = arith.constant 0 : index
      %c0_25 = arith.constant 0 : index
      %26 = vector.load %arg14[%c0_24, %c0_25] : memref<1x32xf32, #tpu.memory_space<vmem>>, vector<1x32xf32>
      %cst_26 = arith.constant dense<0.000000e+00> : vector<8xf32>
      %27 = vector.multi_reduction <add>, %24, %cst_26 [1] : vector<8x32xf32> to vector<8xf32>
      %28 = vector.shape_cast %27 : vector<8xf32> to vector<8x1xf32>
      %cst_27 = arith.constant 3.200000e+01 : f32
      %29 = vector.broadcast %cst_27 : f32 to vector<8x1xf32>
      %30 = arith.divf %28, %29 : vector<8x1xf32>
      %31 = vector.broadcast %30 : vector<8x1xf32> to vector<8x32xf32>
      %32 = arith.subf %24, %31 : vector<8x32xf32>
      %33 = vector.broadcast %30 : vector<8x1xf32> to vector<8x32xf32>
      %34 = arith.subf %24, %33 : vector<8x32xf32>
      %35 = arith.mulf %32, %34 : vector<8x32xf32>
      %cst_28 = arith.constant dense<0.000000e+00> : vector<8xf32>
      %36 = vector.multi_reduction <add>, %35, %cst_28 [1] : vector<8x32xf32> to vector<8xf32>
      %37 = vector.shape_cast %36 : vector<8xf32> to vector<8x1xf32>
      %cst_29 = arith.constant 3.200000e+01 : f32
      %38 = vector.broadcast %cst_29 : f32 to vector<8x1xf32>
      %39 = arith.divf %37, %38 : vector<8x1xf32>
      %40 = vector.broadcast %30 : vector<8x1xf32> to vector<8x32xf32>
      %41 = arith.subf %24, %40 : vector<8x32xf32>
      %cst_30 = arith.constant 9.99999974E-6 : f32
      %42 = vector.broadcast %cst_30 : f32 to vector<8x1xf32>
      %43 = arith.addf %39, %42 : vector<8x1xf32>
      %44 = math.rsqrt %43 : vector<8x1xf32>
      %45 = vector.broadcast %44 : vector<8x1xf32> to vector<8x32xf32>
      %46 = arith.mulf %41, %45 : vector<8x32xf32>
      %47 = vector.broadcast %25 : vector<1x32xf32> to vector<8x32xf32>
      %48 = arith.mulf %46, %47 : vector<8x32xf32>
      %49 = vector.broadcast %26 : vector<1x32xf32> to vector<8x32xf32>
      %50 = arith.addf %48, %49 : vector<8x32xf32>
      %c0_31 = arith.constant 0 : index
      %c0_32 = arith.constant 0 : index
      %c0_33 = arith.constant 0 : index
      %51 = vector.load %arg15[%c0_31, %c0_32, %c0_33] : memref<1x8x32xf32, #tpu.memory_space<vmem>>, vector<1x8x32xf32>
      %52 = vector.shape_cast %51 : vector<1x8x32xf32> to vector<8x32xf32>
      %53 = vector.shape_cast %50 : vector<8x32xf32> to vector<1x8x32xf32>
      tpu.vector_store %arg15[%c0_31, %c0_32, %c0_33], %53 {strides = array<i32>} : memref<1x8x32xf32, #tpu.memory_space<vmem>>, vector<1x8x32xf32>,
    } else {
    }
    return
  }
  func.func @transform_0(%arg0: i32, %arg1: i32) -> (i32, i32, i32) {
    %c0_i32 = arith.constant 0 : i32
    %c0_i32_0 = arith.constant 0 : i32
    %c0_i32_1 = arith.constant 0 : i32
    return %arg0, %c0_i32, %c0_i32_0 : i32, i32, i32
  }
  func.func @transform_1(%arg0: i32, %arg1: i32) -> (i32, i32, i32) {
    %c0_i32 = arith.constant 0 : i32
    %c0_i32_0 = arith.constant 0 : i32
    %c0_i32_1 = arith.constant 0 : i32
    return %arg0, %c0_i32, %c0_i32_0 : i32, i32, i32
  }
  func.func @transform_2(%arg0: i32, %arg1: i32) -> (i32, i32) {
    %c0_i32 = arith.constant 0 : i32
    %c0_i32_0 = arith.constant 0 : i32
    %c0_i32_1 = arith.constant 0 : i32
    return %c0_i32, %c0_i32_0 : i32, i32
  }
  func.func @transform_3(%arg0: i32, %arg1: i32) -> (i32, i32) {
    %c0_i32 = arith.constant 0 : i32
    %c0_i32_0 = arith.constant 0 : i32
    %c0_i32_1 = arith.constant 0 : i32
    return %c0_i32, %c0_i32_0 : i32, i32
  }
  func.func @transform_4(%arg0: i32, %arg1: i32) -> (i32, i32) {
    %c0_i32 = arith.constant 0 : i32
    %c0_i32_0 = arith.constant 0 : i32
    %c0_i32_1 = arith.constant 0 : i32
    return %c0_i32, %c0_i32_0 : i32, i32
  }
  func.func @transform_5(%arg0: i32, %arg1: i32) -> (i32, i32) {
    %c0_i32 = arith.constant 0 : i32
    %c0_i32_0 = arith.constant 0 : i32
    %c0_i32_1 = arith.constant 0 : i32
    return %c0_i32, %c0_i32_0 : i32, i32
  }
  func.func @transform_6(%arg0: i32, %arg1: i32) -> (i32, i32) {
    %c0_i32 = arith.constant 0 : i32
    %c0_i32_0 = arith.constant 0 : i32
    %c0_i32_1 = arith.constant 0 : i32
    return %c0_i32, %c0_i32_0 : i32, i32
  }
  func.func @transform_7(%arg0: i32, %arg1: i32) -> (i32, i32) {
    %c0_i32 = arith.constant 0 : i32
    %c0_i32_0 = arith.constant 0 : i32
    return %c0_i32, %arg1 : i32, i32
  }
  func.func @transform_8(%arg0: i32, %arg1: i32) -> (i32, i32) {
    %c0_i32 = arith.constant 0 : i32
    %c0_i32_0 = arith.constant 0 : i32
    return %c0_i32, %arg1 : i32, i32
  }
  func.func @transform_9(%arg0: i32, %arg1: i32) -> (i32, i32) {
    %c0_i32 = arith.constant 0 : i32
    %c0_i32_0 = arith.constant 0 : i32
    return %arg1, %c0_i32 : i32, i32
  }
  func.func @transform_10(%arg0: i32, %arg1: i32) -> (i32, i32) {
    %c0_i32 = arith.constant 0 : i32
    %c0_i32_0 = arith.constant 0 : i32
    %c0_i32_1 = arith.constant 0 : i32
    return %c0_i32, %c0_i32_0 : i32, i32
  }
  func.func @transform_11(%arg0: i32, %arg1: i32) -> (i32, i32) {
    %c0_i32 = arith.constant 0 : i32
    %c0_i32_0 = arith.constant 0 : i32
    %c0_i32_1 = arith.constant 0 : i32
    return %c0_i32, %c0_i32_0 : i32, i32
  }
  func.func @transform_12(%arg0: i32, %arg1: i32) -> (i32, i32) {
    %c0_i32 = arith.constant 0 : i32
    %c0_i32_0 = arith.constant 0 : i32
    %c0_i32_1 = arith.constant 0 : i32
    return %c0_i32, %c0_i32_0 : i32, i32
  }
  func.func @transform_13(%arg0: i32, %arg1: i32) -> (i32, i32, i32) {
    %c0_i32 = arith.constant 0 : i32
    %c0_i32_0 = arith.constant 0 : i32
    %c0_i32_1 = arith.constant 0 : i32
    return %arg0, %c0_i32, %c0_i32_0 : i32, i32, i32
  }
}

module attributes {stable_mosaic.version = 11 : i64} {
  func.func @_encoder_layer_kernel(%arg0: i32, %arg1: i32, %arg2: memref<1x8x32xf32, #tpu.memory_space<vmem>>, %arg3: memref<1x1x8xf32, #tpu.memory_space<vmem>>, %arg4: memref<8x8xf32, #tpu.memory_space<vmem>>, %arg5: memref<32x96xf32, #tpu.memory_space<vmem>>, %arg6: memref<32x32xf32, #tpu.memory_space<vmem>>, %arg7: memref<1x32xf32, #tpu.memory_space<vmem>>, %arg8: memref<1x32xf32, #tpu.memory_space<vmem>>, %arg9: memref<32x64xf32, #tpu.memory_space<vmem>>, %arg10: memref<1x64xf32, #tpu.memory_space<vmem>>, %arg11: memref<64x32xf32, #tpu.memory_space<vmem>>, %arg12: memref<1x32xf32, #tpu.memory_space<vmem>>, %arg13: memref<1x32xf32, #tpu.memory_space<vmem>>, %arg14: memref<1x32xf32, #tpu.memory_space<vmem>>, %arg15: memref<1x8x32xf32, #tpu.memory_space<vmem>>, %arg16: memref<8x32xf32, #tpu.memory_space<vmem>>, %arg17: memref<8x32xf32, #tpu.memory_space<vmem>>, %arg18: memref<8x32xf32, #tpu.memory_space<vmem>>) attributes {dimension_semantics = [#tpu.dimension_semantics<parallel>, #tpu.dimension_semantics<arbitrary>], iteration_bounds = array<i64: 2, 1>, scalar_prefetch = 0 : i64, scratch_operands = 3 : i64, tpu.core_type = #tpu.core_type<tc>, window_params = [{transform_indices = @transform_0, window_bounds = array<i64: 1, 8, 32>}, {transform_indices = @transform_1, window_bounds = array<i64: 1, 1, 8>}, {pipeline_mode = #tpu.pipeline_mode<synchronous>, transform_indices = @transform_2, window_bounds = array<i64: 8, 8>}, {pipeline_mode = #tpu.pipeline_mode<synchronous>, transform_indices = @transform_3, window_bounds = array<i64: 32, 96>}, {pipeline_mode = #tpu.pipeline_mode<synchronous>, transform_indices = @transform_4, window_bounds = array<i64: 32, 32>}, {pipeline_mode = #tpu.pipeline_mode<synchronous>, transform_indices = @transform_5, window_bounds = array<i64: 1, 32>}, {pipeline_mode = #tpu.pipeline_mode<synchronous>, transform_indices = @transform_6, window_bounds = array<i64: 1, 32>}, {transform_indices = @transform_7, window_bounds = array<i64: 32, 64>}, {transform_indices = @transform_8, window_bounds = array<i64: 1, 64>}, {transform_indices = @transform_9, window_bounds = array<i64: 64, 32>}, {pipeline_mode = #tpu.pipeline_mode<synchronous>, transform_indices = @transform_10, window_bounds = array<i64: 1, 32>}, {pipeline_mode = #tpu.pipeline_mode<synchronous>, transform_indices = @transform_11, window_bounds = array<i64: 1, 32>}, {pipeline_mode = #tpu.pipeline_mode<synchronous>, transform_indices = @transform_12, window_bounds = array<i64: 1, 32>}, {transform_indices = @transform_13, window_bounds = array<i64: 1, 8, 32>}]} {
    %c0_i32 = arith.constant 0 : i32
    %0 = arith.cmpi eq, %arg1, %c0_i32 : i32
    %1 = arith.extui %0 : i1 to i32
    %c0_i32_0 = arith.constant 0 : i32
    %2 = arith.cmpi ne, %1, %c0_i32_0 : i32
    scf.if %2 {
      %c0_16 = arith.constant 0 : index
      %c0_17 = arith.constant 0 : index
      %c0_18 = arith.constant 0 : index
      %19 = vector.load %arg2[%c0_16, %c0_17, %c0_18] : memref<1x8x32xf32, #tpu.memory_space<vmem>>, vector<1x8x32xf32>
      %20 = vector.shape_cast %19 : vector<1x8x32xf32> to vector<8x32xf32>
      %c0_19 = arith.constant 0 : index
      %c0_20 = arith.constant 0 : index
      %21 = vector.load %arg5[%c0_19, %c0_20] : memref<32x96xf32, #tpu.memory_space<vmem>>, vector<32x96xf32>
      %cst_21 = arith.constant dense<0.000000e+00> : vector<8x96xf32>
      %22 = tpu.matmul %20, %21, %cst_21 {dimension_numbers = #tpu.dot_dimension_numbers<[1], [0], [0], [1], [0, 0, 1, 1], [], []>} : vector<8x32xf32>, vector<32x96xf32>, vector<8x96xf32> -> vector<8x96xf32>
      %23 = vector.extract_strided_slice %22 {offsets = [0, 0], sizes = [8, 32], strides = [1, 1]} : vector<8x96xf32> to vector<8x32xf32>
      %cst_22 = arith.constant 0.353553385 : f32
      %24 = vector.broadcast %cst_22 : f32 to vector<8x32xf32>
      %25 = arith.mulf %23, %24 : vector<8x32xf32>
      %26 = vector.extract_strided_slice %22 {offsets = [0, 32], sizes = [8, 32], strides = [1, 1]} : vector<8x96xf32> to vector<8x32xf32>
      %27 = vector.extract_strided_slice %22 {offsets = [0, 64], sizes = [8, 32], strides = [1, 1]} : vector<8x96xf32> to vector<8x32xf32>
      %c0_23 = arith.constant 0 : index
      %c0_24 = arith.constant 0 : index
      %c0_25 = arith.constant 0 : index
      %28 = vector.load %arg3[%c0_23, %c0_24, %c0_25] : memref<1x1x8xf32, #tpu.memory_space<vmem>>, vector<1x1x8xf32>
      %29 = vector.shape_cast %28 : vector<1x1x8xf32> to vector<1x8xf32>
      %cst_26 = arith.constant 0.000000e+00 : f32
      %30 = vector.broadcast %cst_26 : f32 to vector<1x8xf32>
      %31 = arith.cmpf one, %29, %30 : vector<1x8xf32>
      %c0_27 = arith.constant 0 : index
      %c0_28 = arith.constant 0 : index
      %32 = vector.load %arg4[%c0_27, %c0_28] : memref<8x8xf32, #tpu.memory_space<vmem>>, vector<8x8xf32>
      %cst_29 = arith.constant 0.000000e+00 : f32
      %33 = vector.broadcast %cst_29 : f32 to vector<8x8xf32>
      %34 = arith.cmpf one, %32, %33 : vector<8x8xf32>
      %35 = vector.broadcast %31 : vector<1x8xi1> to vector<8x8xi1>
      %36 = arith.ori %35, %34 : vector<8x8xi1>
      %37 = vector.extract_strided_slice %25 {offsets = [0, 0], sizes = [8, 8], strides = [1, 1]} : vector<8x32xf32> to vector<8x8xf32>
      %38 = vector.extract_strided_slice %26 {offsets = [0, 0], sizes = [8, 8], strides = [1, 1]} : vector<8x32xf32> to vector<8x8xf32>
      %39 = vector.extract_strided_slice %27 {offsets = [0, 0], sizes = [8, 8], strides = [1, 1]} : vector<8x32xf32> to vector<8x8xf32>
      %cst_30 = arith.constant dense<0.000000e+00> : vector<8x8xf32>
      %40 = tpu.matmul %37, %38, %cst_30 {dimension_numbers = #tpu.dot_dimension_numbers<[1], [1], [0], [0], [0, 0, 1, 0], [], []>} : vector<8x8xf32>, vector<8x8xf32>, vector<8x8xf32> -> vector<8x8xf32>
      %cst_31 = arith.constant -1.000000e+09 : f32
      %41 = vector.broadcast %cst_31 : f32 to vector<8x8xf32>
      %42 = arith.select %36, %41, %40 : vector<8x8xi1>, vector<8x8xf32>
      %cst_32 = arith.constant dense<0xFF800000> : vector<8xf32>
      %43 = vector.multi_reduction <maximumf>, %42, %cst_32 [1] : vector<8x8xf32> to vector<8xf32>
      %44 = vector.shape_cast %43 : vector<8xf32> to vector<8x1xf32>
      %45 = vector.broadcast %44 : vector<8x1xf32> to vector<8x8xf32>
      %46 = arith.subf %42, %45 : vector<8x8xf32>
      %47 = math.exp %46 : vector<8x8xf32>
      %cst_33 = arith.constant dense<0.000000e+00> : vector<8xf32>
      %48 = vector.multi_reduction <add>, %47, %cst_33 [1] : vector<8x8xf32> to vector<8xf32>
      %49 = vector.shape_cast %48 : vector<8xf32> to vector<8x1xf32>
      %50 = tpu.reciprocal %49 {approx = true} : vector<8x1xf32> -> vector<8x1xf32>
      %51 = vector.broadcast %50 : vector<8x1xf32> to vector<8x8xf32>
      %52 = arith.mulf %47, %51 : vector<8x8xf32>
      %cst_34 = arith.constant dense<0.000000e+00> : vector<8x8xf32>
      %53 = tpu.matmul %52, %39, %cst_34 {dimension_numbers = #tpu.dot_dimension_numbers<[1], [0], [0], [1], [0, 0, 1, 1], [], []>} : vector<8x8xf32>, vector<8x8xf32>, vector<8x8xf32> -> vector<8x8xf32>
      %c0_35 = arith.constant 0 : index
      %c0_36 = arith.constant 0 : index
      %54 = vector.load %arg16[%c0_35, %c0_36] : memref<8x32xf32, #tpu.memory_space<vmem>>, vector<8x8xf32>
      tpu.vector_store %arg16[%c0_35, %c0_36], %53 {strides = array<i32>} : memref<8x32xf32, #tpu.memory_space<vmem>>, vector<8x8xf32>,
      %55 = vector.extract_strided_slice %25 {offsets = [0, 8], sizes = [8, 8], strides = [1, 1]} : vector<8x32xf32> to vector<8x8xf32>
      %56 = vector.extract_strided_slice %26 {offsets = [0, 8], sizes = [8, 8], strides = [1, 1]} : vector<8x32xf32> to vector<8x8xf32>
      %57 = vector.extract_strided_slice %27 {offsets = [0, 8], sizes = [8, 8], strides = [1, 1]} : vector<8x32xf32> to vector<8x8xf32>
      %cst_37 = arith.constant dense<0.000000e+00> : vector<8x8xf32>
      %58 = tpu.matmul %55, %56, %cst_37 {dimension_numbers = #tpu.dot_dimension_numbers<[1], [1], [0], [0], [0, 0, 1, 0], [], []>} : vector<8x8xf32>, vector<8x8xf32>, vector<8x8xf32> -> vector<8x8xf32>
      %cst_38 = arith.constant -1.000000e+09 : f32
      %59 = vector.broadcast %cst_38 : f32 to vector<8x8xf32>
      %60 = arith.select %36, %59, %58 : vector<8x8xi1>, vector<8x8xf32>
      %cst_39 = arith.constant dense<0xFF800000> : vector<8xf32>
      %61 = vector.multi_reduction <maximumf>, %60, %cst_39 [1] : vector<8x8xf32> to vector<8xf32>
      %62 = vector.shape_cast %61 : vector<8xf32> to vector<8x1xf32>
      %63 = vector.broadcast %62 : vector<8x1xf32> to vector<8x8xf32>
      %64 = arith.subf %60, %63 : vector<8x8xf32>
      %65 = math.exp %64 : vector<8x8xf32>
      %cst_40 = arith.constant dense<0.000000e+00> : vector<8xf32>
      %66 = vector.multi_reduction <add>, %65, %cst_40 [1] : vector<8x8xf32> to vector<8xf32>
      %67 = vector.shape_cast %66 : vector<8xf32> to vector<8x1xf32>
      %68 = tpu.reciprocal %67 {approx = true} : vector<8x1xf32> -> vector<8x1xf32>
      %69 = vector.broadcast %68 : vector<8x1xf32> to vector<8x8xf32>
      %70 = arith.mulf %65, %69 : vector<8x8xf32>
      %cst_41 = arith.constant dense<0.000000e+00> : vector<8x8xf32>
      %71 = tpu.matmul %70, %57, %cst_41 {dimension_numbers = #tpu.dot_dimension_numbers<[1], [0], [0], [1], [0, 0, 1, 1], [], []>} : vector<8x8xf32>, vector<8x8xf32>, vector<8x8xf32> -> vector<8x8xf32>
      %c0_42 = arith.constant 0 : index
      %c8 = arith.constant 8 : index
      %72 = vector.load %arg16[%c0_42, %c8] : memref<8x32xf32, #tpu.memory_space<vmem>>, vector<8x8xf32>
      tpu.vector_store %arg16[%c0_42, %c8], %71 {strides = array<i32>} : memref<8x32xf32, #tpu.memory_space<vmem>>, vector<8x8xf32>,
      %73 = vector.extract_strided_slice %25 {offsets = [0, 16], sizes = [8, 8], strides = [1, 1]} : vector<8x32xf32> to vector<8x8xf32>
      %74 = vector.extract_strided_slice %26 {offsets = [0, 16], sizes = [8, 8], strides = [1, 1]} : vector<8x32xf32> to vector<8x8xf32>
      %75 = vector.extract_strided_slice %27 {offsets = [0, 16], sizes = [8, 8], strides = [1, 1]} : vector<8x32xf32> to vector<8x8xf32>
      %cst_43 = arith.constant dense<0.000000e+00> : vector<8x8xf32>
      %76 = tpu.matmul %73, %74, %cst_43 {dimension_numbers = #tpu.dot_dimension_numbers<[1], [1], [0], [0], [0, 0, 1, 0], [], []>} : vector<8x8xf32>, vector<8x8xf32>, vector<8x8xf32> -> vector<8x8xf32>
      %cst_44 = arith.constant -1.000000e+09 : f32
      %77 = vector.broadcast %cst_44 : f32 to vector<8x8xf32>
      %78 = arith.select %36, %77, %76 : vector<8x8xi1>, vector<8x8xf32>
      %cst_45 = arith.constant dense<0xFF800000> : vector<8xf32>
      %79 = vector.multi_reduction <maximumf>, %78, %cst_45 [1] : vector<8x8xf32> to vector<8xf32>
      %80 = vector.shape_cast %79 : vector<8xf32> to vector<8x1xf32>
      %81 = vector.broadcast %80 : vector<8x1xf32> to vector<8x8xf32>
      %82 = arith.subf %78, %81 : vector<8x8xf32>
      %83 = math.exp %82 : vector<8x8xf32>
      %cst_46 = arith.constant dense<0.000000e+00> : vector<8xf32>
      %84 = vector.multi_reduction <add>, %83, %cst_46 [1] : vector<8x8xf32> to vector<8xf32>
      %85 = vector.shape_cast %84 : vector<8xf32> to vector<8x1xf32>
      %86 = tpu.reciprocal %85 {approx = true} : vector<8x1xf32> -> vector<8x1xf32>
      %87 = vector.broadcast %86 : vector<8x1xf32> to vector<8x8xf32>
      %88 = arith.mulf %83, %87 : vector<8x8xf32>
      %cst_47 = arith.constant dense<0.000000e+00> : vector<8x8xf32>
      %89 = tpu.matmul %88, %75, %cst_47 {dimension_numbers = #tpu.dot_dimension_numbers<[1], [0], [0], [1], [0, 0, 1, 1], [], []>} : vector<8x8xf32>, vector<8x8xf32>, vector<8x8xf32> -> vector<8x8xf32>
      %c0_48 = arith.constant 0 : index
      %c16 = arith.constant 16 : index
      %90 = vector.load %arg16[%c0_48, %c16] : memref<8x32xf32, #tpu.memory_space<vmem>>, vector<8x8xf32>
      tpu.vector_store %arg16[%c0_48, %c16], %89 {strides = array<i32>} : memref<8x32xf32, #tpu.memory_space<vmem>>, vector<8x8xf32>,
      %91 = vector.extract_strided_slice %25 {offsets = [0, 24], sizes = [8, 8], strides = [1, 1]} : vector<8x32xf32> to vector<8x8xf32>
      %92 = vector.extract_strided_slice %26 {offsets = [0, 24], sizes = [8, 8], strides = [1, 1]} : vector<8x32xf32> to vector<8x8xf32>
      %93 = vector.extract_strided_slice %27 {offsets = [0, 24], sizes = [8, 8], strides = [1, 1]} : vector<8x32xf32> to vector<8x8xf32>
      %cst_49 = arith.constant dense<0.000000e+00> : vector<8x8xf32>
      %94 = tpu.matmul %91, %92, %cst_49 {dimension_numbers = #tpu.dot_dimension_numbers<[1], [1], [0], [0], [0, 0, 1, 0], [], []>} : vector<8x8xf32>, vector<8x8xf32>, vector<8x8xf32> -> vector<8x8xf32>
      %cst_50 = arith.constant -1.000000e+09 : f32
      %95 = vector.broadcast %cst_50 : f32 to vector<8x8xf32>
      %96 = arith.select %36, %95, %94 : vector<8x8xi1>, vector<8x8xf32>
      %cst_51 = arith.constant dense<0xFF800000> : vector<8xf32>
      %97 = vector.multi_reduction <maximumf>, %96, %cst_51 [1] : vector<8x8xf32> to vector<8xf32>
      %98 = vector.shape_cast %97 : vector<8xf32> to vector<8x1xf32>
      %99 = vector.broadcast %98 : vector<8x1xf32> to vector<8x8xf32>
      %100 = arith.subf %96, %99 : vector<8x8xf32>
      %101 = math.exp %100 : vector<8x8xf32>
      %cst_52 = arith.constant dense<0.000000e+00> : vector<8xf32>
      %102 = vector.multi_reduction <add>, %101, %cst_52 [1] : vector<8x8xf32> to vector<8xf32>
      %103 = vector.shape_cast %102 : vector<8xf32> to vector<8x1xf32>
      %104 = tpu.reciprocal %103 {approx = true} : vector<8x1xf32> -> vector<8x1xf32>
      %105 = vector.broadcast %104 : vector<8x1xf32> to vector<8x8xf32>
      %106 = arith.mulf %101, %105 : vector<8x8xf32>
      %cst_53 = arith.constant dense<0.000000e+00> : vector<8x8xf32>
      %107 = tpu.matmul %106, %93, %cst_53 {dimension_numbers = #tpu.dot_dimension_numbers<[1], [0], [0], [1], [0, 0, 1, 1], [], []>} : vector<8x8xf32>, vector<8x8xf32>, vector<8x8xf32> -> vector<8x8xf32>
      %c0_54 = arith.constant 0 : index
      %c24 = arith.constant 24 : index
      %108 = vector.load %arg16[%c0_54, %c24] : memref<8x32xf32, #tpu.memory_space<vmem>>, vector<8x8xf32>
      tpu.vector_store %arg16[%c0_54, %c24], %107 {strides = array<i32>} : memref<8x32xf32, #tpu.memory_space<vmem>>, vector<8x8xf32>,
      %c0_55 = arith.constant 0 : index
      %c0_56 = arith.constant 0 : index
      %109 = vector.load %arg16[%c0_55, %c0_56] : memref<8x32xf32, #tpu.memory_space<vmem>>, vector<8x32xf32>
      %c0_57 = arith.constant 0 : index
      %c0_58 = arith.constant 0 : index
      %110 = vector.load %arg6[%c0_57, %c0_58] : memref<32x32xf32, #tpu.memory_space<vmem>>, vector<32x32xf32>
      %cst_59 = arith.constant dense<0.000000e+00> : vector<8x32xf32>
      %111 = tpu.matmul %109, %110, %cst_59 {dimension_numbers = #tpu.dot_dimension_numbers<[1], [0], [0], [1], [0, 0, 1, 1], [], []>} : vector<8x32xf32>, vector<32x32xf32>, vector<8x32xf32> -> vector<8x32xf32>
      %112 = arith.addf %20, %111 : vector<8x32xf32>
      %c0_60 = arith.constant 0 : index
      %c0_61 = arith.constant 0 : index
      %113 = vector.load %arg7[%c0_60, %c0_61] : memref<1x32xf32, #tpu.memory_space<vmem>>, vector<1x32xf32>
      %c0_62 = arith.constant 0 : index
      %c0_63 = arith.constant 0 : index
      %114 = vector.load %arg8[%c0_62, %c0_63] : memref<1x32xf32, #tpu.memory_space<vmem>>, vector<1x32xf32>
      %cst_64 = arith.constant dense<0.000000e+00> : vector<8xf32>
      %115 = vector.multi_reduction <add>, %112, %cst_64 [1] : vector<8x32xf32> to vector<8xf32>
      %116 = vector.shape_cast %115 : vector<8xf32> to vector<8x1xf32>
      %cst_65 = arith.constant 3.200000e+01 : f32
      %117 = vector.broadcast %cst_65 : f32 to vector<8x1xf32>
      %118 = arith.divf %116, %117 : vector<8x1xf32>
      %119 = vector.broadcast %118 : vector<8x1xf32> to vector<8x32xf32>
      %120 = arith.subf %112, %119 : vector<8x32xf32>
      %121 = vector.broadcast %118 : vector<8x1xf32> to vector<8x32xf32>
      %122 = arith.subf %112, %121 : vector<8x32xf32>
      %123 = arith.mulf %120, %122 : vector<8x32xf32>
      %cst_66 = arith.constant dense<0.000000e+00> : vector<8xf32>
      %124 = vector.multi_reduction <add>, %123, %cst_66 [1] : vector<8x32xf32> to vector<8xf32>
      %125 = vector.shape_cast %124 : vector<8xf32> to vector<8x1xf32>
      %cst_67 = arith.constant 3.200000e+01 : f32
      %126 = vector.broadcast %cst_67 : f32 to vector<8x1xf32>
      %127 = arith.divf %125, %126 : vector<8x1xf32>
      %128 = vector.broadcast %118 : vector<8x1xf32> to vector<8x32xf32>
      %129 = arith.subf %112, %128 : vector<8x32xf32>
      %cst_68 = arith.constant 9.99999974E-6 : f32
      %130 = vector.broadcast %cst_68 : f32 to vector<8x1xf32>
      %131 = arith.addf %127, %130 : vector<8x1xf32>
      %132 = math.rsqrt %131 : vector<8x1xf32>
      %133 = vector.broadcast %132 : vector<8x1xf32> to vector<8x32xf32>
      %134 = arith.mulf %129, %133 : vector<8x32xf32>
      %135 = vector.broadcast %113 : vector<1x32xf32> to vector<8x32xf32>
      %136 = arith.mulf %134, %135 : vector<8x32xf32>
      %137 = vector.broadcast %114 : vector<1x32xf32> to vector<8x32xf32>
      %138 = arith.addf %136, %137 : vector<8x32xf32>
      %c0_69 = arith.constant 0 : index
      %c0_70 = arith.constant 0 : index
      %139 = vector.load %arg17[%c0_69, %c0_70] : memref<8x32xf32, #tpu.memory_space<vmem>>, vector<8x32xf32>
      tpu.vector_store %arg17[%c0_69, %c0_70], %138 {strides = array<i32>} : memref<8x32xf32, #tpu.memory_space<vmem>>, vector<8x32xf32>,
      %cst_71 = arith.constant 0.000000e+00 : f32
      %140 = vector.broadcast %cst_71 : f32 to vector<8x32xf32>
      %c0_72 = arith.constant 0 : index
      %c0_73 = arith.constant 0 : index
      %141 = vector.load %arg18[%c0_72, %c0_73] : memref<8x32xf32, #tpu.memory_space<vmem>>, vector<8x32xf32>
      tpu.vector_store %arg18[%c0_72, %c0_73], %140 {strides = array<i32>} : memref<8x32xf32, #tpu.memory_space<vmem>>, vector<8x32xf32>,
    } else {
    }
    %c0 = arith.constant 0 : index
    %c0_1 = arith.constant 0 : index
    %3 = vector.load %arg17[%c0, %c0_1] : memref<8x32xf32, #tpu.memory_space<vmem>>, vector<8x32xf32>
    %c0_2 = arith.constant 0 : index
    %c0_3 = arith.constant 0 : index
    %4 = vector.load %arg9[%c0_2, %c0_3] : memref<32x64xf32, #tpu.memory_space<vmem>>, vector<32x64xf32>
    %cst = arith.constant dense<0.000000e+00> : vector<8x64xf32>
    %5 = tpu.matmul %3, %4, %cst {dimension_numbers = #tpu.dot_dimension_numbers<[1], [0], [0], [1], [0, 0, 1, 1], [], []>} : vector<8x32xf32>, vector<32x64xf32>, vector<8x64xf32> -> vector<8x64xf32>
    %c0_4 = arith.constant 0 : index
    %c0_5 = arith.constant 0 : index
    %6 = vector.load %arg10[%c0_4, %c0_5] : memref<1x64xf32, #tpu.memory_space<vmem>>, vector<1x64xf32>
    %7 = vector.broadcast %6 : vector<1x64xf32> to vector<8x64xf32>
    %8 = arith.addf %5, %7 : vector<8x64xf32>
    %cst_6 = arith.constant 0.000000e+00 : f32
    %9 = vector.broadcast %cst_6 : f32 to vector<8x64xf32>
    %10 = arith.maximumf %8, %9 : vector<8x64xf32>
    %c0_7 = arith.constant 0 : index
    %c0_8 = arith.constant 0 : index
    %11 = vector.load %arg18[%c0_7, %c0_8] : memref<8x32xf32, #tpu.memory_space<vmem>>, vector<8x32xf32>
    %c0_9 = arith.constant 0 : index
    %c0_10 = arith.constant 0 : index
    %12 = vector.load %arg11[%c0_9, %c0_10] : memref<64x32xf32, #tpu.memory_space<vmem>>, vector<64x32xf32>
    %cst_11 = arith.constant dense<0.000000e+00> : vector<8x32xf32>
    %13 = tpu.matmul %10, %12, %cst_11 {dimension_numbers = #tpu.dot_dimension_numbers<[1], [0], [0], [1], [0, 0, 1, 1], [], []>} : vector<8x64xf32>, vector<64x32xf32>, vector<8x32xf32> -> vector<8x32xf32>
    %14 = arith.addf %11, %13 : vector<8x32xf32>
    %c0_12 = arith.constant 0 : index
    %c0_13 = arith.constant 0 : index
    %15 = vector.load %arg18[%c0_12, %c0_13] : memref<8x32xf32, #tpu.memory_space<vmem>>, vector<8x32xf32>
    tpu.vector_store %arg18[%c0_12, %c0_13], %14 {strides = array<i32>} : memref<8x32xf32, #tpu.memory_space<vmem>>, vector<8x32xf32>,
    %c0_i32_14 = arith.constant 0 : i32
    %16 = arith.cmpi eq, %arg1, %c0_i32_14 : i32
    %17 = arith.extui %16 : i1 to i32
    %c0_i32_15 = arith.constant 0 : i32
    %18 = arith.cmpi ne, %17, %c0_i32_15 : i32
    scf.if %18 {
      %c0_16 = arith.constant 0 : index
      %c0_17 = arith.constant 0 : index
      %19 = vector.load %arg18[%c0_16, %c0_17] : memref<8x32xf32, #tpu.memory_space<vmem>>, vector<8x32xf32>
      %c0_18 = arith.constant 0 : index
      %c0_19 = arith.constant 0 : index
      %20 = vector.load %arg12[%c0_18, %c0_19] : memref<1x32xf32, #tpu.memory_space<vmem>>, vector<1x32xf32>
      %21 = vector.broadcast %20 : vector<1x32xf32> to vector<8x32xf32>
      %22 = arith.addf %19, %21 : vector<8x32xf32>
      %c0_20 = arith.constant 0 : index
      %c0_21 = arith.constant 0 : index
      %23 = vector.load %arg17[%c0_20, %c0_21] : memref<8x32xf32, #tpu.memory_space<vmem>>, vector<8x32xf32>
      %24 = arith.addf %23, %22 : vector<8x32xf32>
      %c0_22 = arith.constant 0 : index
      %c0_23 = arith.constant 0 : index
      %25 = vector.load %arg13[%c0_22, %c0_23] : memref<1x32xf32, #tpu.memory_space<vmem>>, vector<1x32xf32>
      %c0_24 = arith.constant 0 : index
      %c0_25 = arith.constant 0 : index
      %26 = vector.load %arg14[%c0_24, %c0_25] : memref<1x32xf32, #tpu.memory_space<vmem>>, vector<1x32xf32>
      %cst_26 = arith.constant dense<0.000000e+00> : vector<8xf32>
      %27 = vector.multi_reduction <add>, %24, %cst_26 [1] : vector<8x32xf32> to vector<8xf32>
      %28 = vector.shape_cast %27 : vector<8xf32> to vector<8x1xf32>
      %cst_27 = arith.constant 3.200000e+01 : f32
      %29 = vector.broadcast %cst_27 : f32 to vector<8x1xf32>
      %30 = arith.divf %28, %29 : vector<8x1xf32>
      %31 = vector.broadcast %30 : vector<8x1xf32> to vector<8x32xf32>
      %32 = arith.subf %24, %31 : vector<8x32xf32>
      %33 = vector.broadcast %30 : vector<8x1xf32> to vector<8x32xf32>
      %34 = arith.subf %24, %33 : vector<8x32xf32>
      %35 = arith.mulf %32, %34 : vector<8x32xf32>
      %cst_28 = arith.constant dense<0.000000e+00> : vector<8xf32>
      %36 = vector.multi_reduction <add>, %35, %cst_28 [1] : vector<8x32xf32> to vector<8xf32>
      %37 = vector.shape_cast %36 : vector<8xf32> to vector<8x1xf32>
      %cst_29 = arith.constant 3.200000e+01 : f32
      %38 = vector.broadcast %cst_29 : f32 to vector<8x1xf32>
      %39 = arith.divf %37, %38 : vector<8x1xf32>
      %40 = vector.broadcast %30 : vector<8x1xf32> to vector<8x32xf32>
      %41 = arith.subf %24, %40 : vector<8x32xf32>
      %cst_30 = arith.constant 9.99999974E-6 : f32
      %42 = vector.broadcast %cst_30 : f32 to vector<8x1xf32>
      %43 = arith.addf %39, %42 : vector<8x1xf32>
      %44 = math.rsqrt %43 : vector<8x1xf32>
      %45 = vector.broadcast %44 : vector<8x1xf32> to vector<8x32xf32>
      %46 = arith.mulf %41, %45 : vector<8x32xf32>
      %47 = vector.broadcast %25 : vector<1x32xf32> to vector<8x32xf32>
      %48 = arith.mulf %46, %47 : vector<8x32xf32>
      %49 = vector.broadcast %26 : vector<1x32xf32> to vector<8x32xf32>
      %50 = arith.addf %48, %49 : vector<8x32xf32>
      %c0_31 = arith.constant 0 : index
      %c0_32 = arith.constant 0 : index
      %c0_33 = arith.constant 0 : index
      %51 = vector.load %arg15[%c0_31, %c0_32, %c0_33] : memref<1x8x32xf32, #tpu.memory_space<vmem>>, vector<1x8x32xf32>
      %52 = vector.shape_cast %51 : vector<1x8x32xf32> to vector<8x32xf32>
      %53 = vector.shape_cast %50 : vector<8x32xf32> to vector<1x8x32xf32>
      tpu.vector_store %arg15[%c0_31, %c0_32, %c0_33], %53 {strides = array<i32>} : memref<1x8x32xf32, #tpu.memory_space<vmem>>, vector<1x8x32xf32>,
    } else {
    }
    return
  }
  func.func @transform_0(%arg0: i32, %arg1: i32) -> (i32, i32, i32) {
    %c0_i32 = arith.constant 0 : i32
    %c0_i32_0 = arith.constant 0 : i32
    %c0_i32_1 = arith.constant 0 : i32
    return %arg0, %c0_i32, %c0_i32_0 : i32, i32, i32
  }
  func.func @transform_1(%arg0: i32, %arg1: i32) -> (i32, i32, i32) {
    %c0_i32 = arith.constant 0 : i32
    %c0_i32_0 = arith.constant 0 : i32
    %c0_i32_1 = arith.constant 0 : i32
    return %arg0, %c0_i32, %c0_i32_0 : i32, i32, i32
  }
  func.func @transform_2(%arg0: i32, %arg1: i32) -> (i32, i32) {
    %c0_i32 = arith.constant 0 : i32
    %c0_i32_0 = arith.constant 0 : i32
    %c0_i32_1 = arith.constant 0 : i32
    return %c0_i32, %c0_i32_0 : i32, i32
  }
  func.func @transform_3(%arg0: i32, %arg1: i32) -> (i32, i32) {
    %c0_i32 = arith.constant 0 : i32
    %c0_i32_0 = arith.constant 0 : i32
    %c0_i32_1 = arith.constant 0 : i32
    return %c0_i32, %c0_i32_0 : i32, i32
  }
  func.func @transform_4(%arg0: i32, %arg1: i32) -> (i32, i32) {
    %c0_i32 = arith.constant 0 : i32
    %c0_i32_0 = arith.constant 0 : i32
    %c0_i32_1 = arith.constant 0 : i32
    return %c0_i32, %c0_i32_0 : i32, i32
  }
  func.func @transform_5(%arg0: i32, %arg1: i32) -> (i32, i32) {
    %c0_i32 = arith.constant 0 : i32
    %c0_i32_0 = arith.constant 0 : i32
    %c0_i32_1 = arith.constant 0 : i32
    return %c0_i32, %c0_i32_0 : i32, i32
  }
  func.func @transform_6(%arg0: i32, %arg1: i32) -> (i32, i32) {
    %c0_i32 = arith.constant 0 : i32
    %c0_i32_0 = arith.constant 0 : i32
    %c0_i32_1 = arith.constant 0 : i32
    return %c0_i32, %c0_i32_0 : i32, i32
  }
  func.func @transform_7(%arg0: i32, %arg1: i32) -> (i32, i32) {
    %c0_i32 = arith.constant 0 : i32
    %c0_i32_0 = arith.constant 0 : i32
    return %c0_i32, %arg1 : i32, i32
  }
  func.func @transform_8(%arg0: i32, %arg1: i32) -> (i32, i32) {
    %c0_i32 = arith.constant 0 : i32
    %c0_i32_0 = arith.constant 0 : i32
    return %c0_i32, %arg1 : i32, i32
  }
  func.func @transform_9(%arg0: i32, %arg1: i32) -> (i32, i32) {
    %c0_i32 = arith.constant 0 : i32
    %c0_i32_0 = arith.constant 0 : i32
    return %arg1, %c0_i32 : i32, i32
  }
  func.func @transform_10(%arg0: i32, %arg1: i32) -> (i32, i32) {
    %c0_i32 = arith.constant 0 : i32
    %c0_i32_0 = arith.constant 0 : i32
    %c0_i32_1 = arith.constant 0 : i32
    return %c0_i32, %c0_i32_0 : i32, i32
  }
  func.func @transform_11(%arg0: i32, %arg1: i32) -> (i32, i32) {
    %c0_i32 = arith.constant 0 : i32
    %c0_i32_0 = arith.constant 0 : i32
    %c0_i32_1 = arith.constant 0 : i32
    return %c0_i32, %c0_i32_0 : i32, i32
  }
  func.func @transform_12(%arg0: i32, %arg1: i32) -> (i32, i32) {
    %c0_i32 = arith.constant 0 : i32
    %c0_i32_0 = arith.constant 0 : i32
    %c0_i32_1 = arith.constant 0 : i32
    return %c0_i32, %c0_i32_0 : i32, i32
  }
  func.func @transform_13(%arg0: i32, %arg1: i32) -> (i32, i32, i32) {
    %c0_i32 = arith.constant 0 : i32
    %c0_i32_0 = arith.constant 0 : i32
    %c0_i32_1 = arith.constant 0 : i32
    return %arg0, %c0_i32, %c0_i32_0 : i32, i32, i32
  }
}

</mosaic_0001>

<llo_original>
// kernel: tpu_custom_call.1
$region0: #{tpu_custom_call.1}
  #allocation0 [shape = 'u32[]', space=smem, size = 0x4, offset = 0x4, fixed_abs, tag = 'smem constant byte address 0x4 - core index']
  #allocation1 [shape = 'u32[72,128]{1,0:T(1,128)}', space=vmem, size = 0x9000, scoped, tag = 'internal scratch']
  #allocation2 [shape = 'f32[8,32]{1,0:T(8,128)}', space=vmem, size = 0x1000, scoped, tag = 'scratch operand']
  #allocation3 [shape = 'f32[8,32]{1,0:T(8,128)}', space=vmem, size = 0x1000, scoped, tag = 'scratch operand']
  #allocation4 [shape = 'f32[8,32]{1,0:T(8,128)}', space=vmem, size = 0x1000, scoped, tag = 'scratch operand']
  %s0 = inlined_call_operand.hbm [shape: f32[2,8,32], index: 0, kind: input, shape index: {}]
  %s1 = inlined_call_operand.hbm [shape: f32[2,1,8], index: 1, kind: input, shape index: {}]
  %s2 = inlined_call_operand.hbm [shape: f32[8,8], index: 2, kind: input, shape index: {}]
  %s3 = inlined_call_operand.vmem [shape: f32[32,96], index: 3, kind: input, shape index: {}]
  %s4 = inlined_call_operand.vmem [shape: f32[32,32], index: 4, kind: input, shape index: {}]
  %s5 = inlined_call_operand.vmem [shape: f32[1,32], index: 5, kind: input, shape index: {}]
  %s6 = inlined_call_operand.vmem [shape: f32[1,32], index: 6, kind: input, shape index: {}]
  %s7 = inlined_call_operand.vmem [shape: f32[32,64], index: 7, kind: input, shape index: {}]
  %s8 = inlined_call_operand.vmem [shape: f32[1,64], index: 8, kind: input, shape index: {}]
  %s9 = inlined_call_operand.vmem [shape: f32[64,32], index: 9, kind: input, shape index: {}]
  %s10 = inlined_call_operand.vmem [shape: f32[1,32], index: 10, kind: input, shape index: {}]
  %s11 = inlined_call_operand.vmem [shape: f32[1,32], index: 11, kind: input, shape index: {}]
  %s12 = inlined_call_operand.vmem [shape: f32[1,32], index: 12, kind: input, shape index: {}]
  %s13 = inlined_call_operand.hbm [shape: f32[2,8,32], index: 13, kind: output, shape index: {}]
  %s14 = sld [smem:[#allocation0]]
  $region105: #{tpu_custom_call.1} parent=0
    _
  %s16 = ssub.s32 1, %s14
  %s17 = scalar_select 0, %s16, %s14
  $region1: #{tpu_custom_call.1} parent=0
    #allocation5 [shape = 'u8[8192]{0}', space=vmem, size = 0x2000, scoped, tag = 'input window, operand 0']
    #allocation6 [shape = 's32[2]{0}', space=sflag, size = 0x8, scoped, tag = 'scoped memory for tpu_custom_call.1']
    #allocation7 [shape = 's32[2]{0}', space=sflag, size = 0x8, scoped, tag = 'scoped memory for tpu_custom_call.1']
    #allocation8 [shape = 'u8[1024]{0}', space=vmem, size = 0x400, scoped, tag = 'input window, operand 1']
    #allocation9 [shape = 's32[2]{0}', space=sflag, size = 0x8, scoped, tag = 'scoped memory for tpu_custom_call.1']
    #allocation10 [shape = 'u8[4096]{0}', space=vmem, size = 0x1000, scoped, tag = 'input window, operand 2, single buffered']
    #allocation11 [shape = 'u8[8192]{0}', space=vmem, size = 0x2000, scoped, tag = 'output window, operand 0']
    %18 = vsyncpa [#allocation6], 0
    %s19 = scalar_lea.sflag [#allocation6], 1
    %20 = vsyncpa %s19, 0
    %21 = vsyncpa [#allocation9], 0
    %s22 = scalar_lea.sflag [#allocation9], 1
    %23 = vsyncpa %s22, 0
    %24 = vsyncpa [#allocation7], 0
    %s25 = scalar_lea.sflag [#allocation7], 1
    %26 = vsyncpa %s25, 0
    loop: start=0, step=1, limit=4
    $region2: #{tpu_custom_call.1} parent=1 // loop_pre_header
      _
    $region3: #{tpu_custom_call.1} parent=1 // loop_header
      %s28 = sphi 0, %s32
      %p29 = scmp.ge.s32.totalorder %s28, 4
      %s35 = sphi 0, %s47
      %s36 = sphi 0, %s43
      %s37 = sphi 0, %s35
      %s38 = sphi 0, %s36
      %s39 = sphi 0, %s37
      %s40 = sphi 0, %s38
      %s50 = sphi 0, %s52
      %s53 = sphi 0, %s50
      %s54 = sphi 0, %s53
      %s70 = sphi 0, %s54
      %s76 = sphi 0, %s78
      %s79 = sphi 0, %s76
      %s80 = sphi 0, %s79
      %s96 = sphi 0, %s80
      %s100 = sphi 0, %s100
      %s102 = sphi 0, %s100
      %s103 = sphi 0, %s102
      %s117 = sphi 0, %s103
      %s121 = sphi 0, %s121
      %s123 = sphi 0, %s121
      %s124 = sphi 0, %s123
      %s138 = sphi 0, %s124
      %s142 = sphi 0, %s142
      %s144 = sphi 0, %s142
      %s145 = sphi 0, %s144
      %s159 = sphi 0, %s145
      %s163 = sphi 0, %s163
      %s165 = sphi 0, %s163
      %s166 = sphi 0, %s165
      %s180 = sphi 0, %s166
      %s184 = sphi 0, %s184
      %s186 = sphi 0, %s184
      %s187 = sphi 0, %s186
      %s201 = sphi 0, %s187
      %s207 = sphi 0, %s209
      %s210 = sphi 0, %s207
      %s211 = sphi 0, %s210
      %s227 = sphi 0, %s211
      %s233 = sphi 0, %s235
      %s236 = sphi 0, %s233
      %s237 = sphi 0, %s236
      %s253 = sphi 0, %s237
      %s259 = sphi 0, %s261
      %s262 = sphi 0, %s259
      %s263 = sphi 0, %s262
      %s279 = sphi 0, %s263
      %s283 = sphi 0, %s283
      %s285 = sphi 0, %s283
      %s286 = sphi 0, %s285
      %s300 = sphi 0, %s286
      %s304 = sphi 0, %s304
      %s306 = sphi 0, %s304
      %s307 = sphi 0, %s306
      %s321 = sphi 0, %s307
      %s325 = sphi 0, %s325
      %s327 = sphi 0, %s325
      %s328 = sphi 0, %s327
      %s342 = sphi 0, %s328
      %s348 = sphi 0, %s350
      %s351 = sphi 0, %s348
      %s352 = sphi 0, %s351
      %s368 = sphi 0, %s352
    $region4: #{tpu_custom_call.1} parent=1 // loop_header_branch
      %31 = sbr.rel (%p29) target = $region8
    $region5: #{tpu_custom_call.1} parent=1 // loop_body
      %s33 = ssub.s32 %s28, 1
      %s34 = ssub.s32 %s28, 2
      %s41 = sadd.s32 1, %s36
      %p42 = scmp.ge.s32.totalorder %s41, 1
      %s43 = scalar_select %p42, 0, %s41
      %s44 = sadd.s32 1, %s35
      %s45 = scalar_select %p42, %s44, %s35
      %p46 = scmp.ge.s32.totalorder %s45, 2
      %s47 = scalar_select %p46, 0, %s45
      %s48 = ssub.s32 %s35, %s47
      %p49 = scmp.eq.s32.totalorder %s48, 0
      %s51 = sadd.s32 %s50, 1
      %s52 = scalar_select %p49, %s50, %s51
      %p55 = pneg %p49
      %p56 = scmp.eq.s32.totalorder %s28, 1
      %p57 = por %p55, %p56
      %p58 = scmp.ne.s32.totalorder %s50, %s53
      %p59 = scmp.eq.s32.totalorder %s28, 0
      %p60 = por %p58, %p59
      %p61 = scmp.ne.s32.totalorder %s50, %s53
      %p62 = scmp.eq.s32.totalorder %s33, 1
      %p63 = por %p61, %p62
      %p64 = scmp.ne.s32.totalorder %s53, %s54
      %p65 = scmp.eq.s32.totalorder %s33, 0
      %p66 = por %p64, %p65
      %p67 = scmp.ne.s32.totalorder %s53, %s54
      %p68 = scmp.eq.s32.totalorder %s34, 1
      %p69 = por %p67, %p68
      %p71 = scmp.ne.s32.totalorder %s54, %s70
      %p72 = scmp.eq.s32.totalorder %s34, 0
      %p73 = por %p71, %p72
      %s74 = ssub.s32 %s35, %s47
      %p75 = scmp.eq.s32.totalorder %s74, 0
      %s77 = sadd.s32 %s76, 1
      %s78 = scalar_select %p75, %s76, %s77
      %p81 = pneg %p75
      %p82 = scmp.eq.s32.totalorder %s28, 1
      %p83 = por %p81, %p82
      %p84 = scmp.ne.s32.totalorder %s76, %s79
      %p85 = scmp.eq.s32.totalorder %s28, 0
      %p86 = por %p84, %p85
      %p87 = scmp.ne.s32.totalorder %s76, %s79
      %p88 = scmp.eq.s32.totalorder %s33, 1
      %p89 = por %p87, %p88
      %p90 = scmp.ne.s32.totalorder %s79, %s80
      %p91 = scmp.eq.s32.totalorder %s33, 0
      %p92 = por %p90, %p91
      %p93 = scmp.ne.s32.totalorder %s79, %s80
      %p94 = scmp.eq.s32.totalorder %s34, 1
      %p95 = por %p93, %p94
      %p97 = scmp.ne.s32.totalorder %s80, %s96
      %p98 = scmp.eq.s32.totalorder %s34, 0
      %p99 = por %p97, %p98
      %s101 = sadd.s32 %s100, 1
      %p104 = scmp.eq.s32.totalorder %s28, 1
      %p105 = scmp.ne.s32.totalorder %s100, %s102
      %p106 = scmp.eq.s32.totalorder %s28, 0
      %p107 = por %p105, %p106
      %p108 = scmp.ne.s32.totalorder %s100, %s102
      %p109 = scmp.eq.s32.totalorder %s33, 1
      %p110 = por %p108, %p109
      %p111 = scmp.ne.s32.totalorder %s102, %s103
      %p112 = scmp.eq.s32.totalorder %s33, 0
      %p113 = por %p111, %p112
      %p114 = scmp.ne.s32.totalorder %s102, %s103
      %p115 = scmp.eq.s32.totalorder %s34, 1
      %p116 = por %p114, %p115
      %p118 = scmp.ne.s32.totalorder %s103, %s117
      %p119 = scmp.eq.s32.totalorder %s34, 0
      %p120 = por %p118, %p119
      %s122 = sadd.s32 %s121, 1
      %p125 = scmp.eq.s32.totalorder %s28, 1
      %p126 = scmp.ne.s32.totalorder %s121, %s123
      %p127 = scmp.eq.s32.totalorder %s28, 0
      %p128 = por %p126, %p127
      %p129 = scmp.ne.s32.totalorder %s121, %s123
      %p130 = scmp.eq.s32.totalorder %s33, 1
      %p131 = por %p129, %p130
      %p132 = scmp.ne.s32.totalorder %s123, %s124
      %p133 = scmp.eq.s32.totalorder %s33, 0
      %p134 = por %p132, %p133
      %p135 = scmp.ne.s32.totalorder %s123, %s124
      %p136 = scmp.eq.s32.totalorder %s34, 1
      %p137 = por %p135, %p136
      %p139 = scmp.ne.s32.totalorder %s124, %s138
      %p140 = scmp.eq.s32.totalorder %s34, 0
      %p141 = por %p139, %p140
      %s143 = sadd.s32 %s142, 1
      %p146 = scmp.eq.s32.totalorder %s28, 1
      %p147 = scmp.ne.s32.totalorder %s142, %s144
      %p148 = scmp.eq.s32.totalorder %s28, 0
      %p149 = por %p147, %p148
      %p150 = scmp.ne.s32.totalorder %s142, %s144
      %p151 = scmp.eq.s32.totalorder %s33, 1
      %p152 = por %p150, %p151
      %p153 = scmp.ne.s32.totalorder %s144, %s145
      %p154 = scmp.eq.s32.totalorder %s33, 0
      %p155 = por %p153, %p154
      %p156 = scmp.ne.s32.totalorder %s144, %s145
      %p157 = scmp.eq.s32.totalorder %s34, 1
      %p158 = por %p156, %p157
      %p160 = scmp.ne.s32.totalorder %s145, %s159
      %p161 = scmp.eq.s32.totalorder %s34, 0
      %p162 = por %p160, %p161
      %s164 = sadd.s32 %s163, 1
      %p167 = scmp.eq.s32.totalorder %s28, 1
      %p168 = scmp.ne.s32.totalorder %s163, %s165
      %p169 = scmp.eq.s32.totalorder %s28, 0
      %p170 = por %p168, %p169
      %p171 = scmp.ne.s32.totalorder %s163, %s165
      %p172 = scmp.eq.s32.totalorder %s33, 1
      %p173 = por %p171, %p172
      %p174 = scmp.ne.s32.totalorder %s165, %s166
      %p175 = scmp.eq.s32.totalorder %s33, 0
      %p176 = por %p174, %p175
      %p177 = scmp.ne.s32.totalorder %s165, %s166
      %p178 = scmp.eq.s32.totalorder %s34, 1
      %p179 = por %p177, %p178
      %p181 = scmp.ne.s32.totalorder %s166, %s180
      %p182 = scmp.eq.s32.totalorder %s34, 0
      %p183 = por %p181, %p182
      %s185 = sadd.s32 %s184, 1
      %p188 = scmp.eq.s32.totalorder %s28, 1
      %p189 = scmp.ne.s32.totalorder %s184, %s186
      %p190 = scmp.eq.s32.totalorder %s28, 0
      %p191 = por %p189, %p190
      %p192 = scmp.ne.s32.totalorder %s184, %s186
      %p193 = scmp.eq.s32.totalorder %s33, 1
      %p194 = por %p192, %p193
      %p195 = scmp.ne.s32.totalorder %s186, %s187
      %p196 = scmp.eq.s32.totalorder %s33, 0
      %p197 = por %p195, %p196
      %p198 = scmp.ne.s32.totalorder %s186, %s187
      %p199 = scmp.eq.s32.totalorder %s34, 1
      %p200 = por %p198, %p199
      %p202 = scmp.ne.s32.totalorder %s187, %s201
      %p203 = scmp.eq.s32.totalorder %s34, 0
      %p204 = por %p202, %p203
      %s205 = ssub.s32 %s36, %s43
      %p206 = scmp.eq.s32.totalorder %s205, 0
      %s208 = sadd.s32 %s207, 1
      %s209 = scalar_select %p206, %s207, %s208
      %p212 = pneg %p206
      %p213 = scmp.eq.s32.totalorder %s28, 1
      %p214 = por %p212, %p213
      %p215 = scmp.ne.s32.totalorder %s207, %s210
      %p216 = scmp.eq.s32.totalorder %s28, 0
      %p217 = por %p215, %p216
      %p218 = scmp.ne.s32.totalorder %s207, %s210
      %p219 = scmp.eq.s32.totalorder %s33, 1
      %p220 = por %p218, %p219
      %p221 = scmp.ne.s32.totalorder %s210, %s211
      %p222 = scmp.eq.s32.totalorder %s33, 0
      %p223 = por %p221, %p222
      %p224 = scmp.ne.s32.totalorder %s210, %s211
      %p225 = scmp.eq.s32.totalorder %s34, 1
      %p226 = por %p224, %p225
      %p228 = scmp.ne.s32.totalorder %s211, %s227
      %p229 = scmp.eq.s32.totalorder %s34, 0
      %p230 = por %p228, %p229
      %s231 = ssub.s32 %s36, %s43
      %p232 = scmp.eq.s32.totalorder %s231, 0
      %s234 = sadd.s32 %s233, 1
      %s235 = scalar_select %p232, %s233, %s234
      %p238 = pneg %p232
      %p239 = scmp.eq.s32.totalorder %s28, 1
      %p240 = por %p238, %p239
      %p241 = scmp.ne.s32.totalorder %s233, %s236
      %p242 = scmp.eq.s32.totalorder %s28, 0
      %p243 = por %p241, %p242
      %p244 = scmp.ne.s32.totalorder %s233, %s236
      %p245 = scmp.eq.s32.totalorder %s33, 1
      %p246 = por %p244, %p245
      %p247 = scmp.ne.s32.totalorder %s236, %s237
      %p248 = scmp.eq.s32.totalorder %s33, 0
      %p249 = por %p247, %p248
      %p250 = scmp.ne.s32.totalorder %s236, %s237
      %p251 = scmp.eq.s32.totalorder %s34, 1
      %p252 = por %p250, %p251
      %p254 = scmp.ne.s32.totalorder %s237, %s253
      %p255 = scmp.eq.s32.totalorder %s34, 0
      %p256 = por %p254, %p255
      %s257 = ssub.s32 %s36, %s43
      %p258 = scmp.eq.s32.totalorder %s257, 0
      %s260 = sadd.s32 %s259, 1
      %s261 = scalar_select %p258, %s259, %s260
      %p264 = pneg %p258
      %p265 = scmp.eq.s32.totalorder %s28, 1
      %p266 = por %p264, %p265
      %p267 = scmp.ne.s32.totalorder %s259, %s262
      %p268 = scmp.eq.s32.totalorder %s28, 0
      %p269 = por %p267, %p268
      %p270 = scmp.ne.s32.totalorder %s259, %s262
      %p271 = scmp.eq.s32.totalorder %s33, 1
      %p272 = por %p270, %p271
      %p273 = scmp.ne.s32.totalorder %s262, %s263
      %p274 = scmp.eq.s32.totalorder %s33, 0
      %p275 = por %p273, %p274
      %p276 = scmp.ne.s32.totalorder %s262, %s263
      %p277 = scmp.eq.s32.totalorder %s34, 1
      %p278 = por %p276, %p277
      %p280 = scmp.ne.s32.totalorder %s263, %s279
      %p281 = scmp.eq.s32.totalorder %s34, 0
      %p282 = por %p280, %p281
      %s284 = sadd.s32 %s283, 1
      %p287 = scmp.eq.s32.totalorder %s28, 1
      %p288 = scmp.ne.s32.totalorder %s283, %s285
      %p289 = scmp.eq.s32.totalorder %s28, 0
      %p290 = por %p288, %p289
      %p291 = scmp.ne.s32.totalorder %s283, %s285
      %p292 = scmp.eq.s32.totalorder %s33, 1
      %p293 = por %p291, %p292
      %p294 = scmp.ne.s32.totalorder %s285, %s286
      %p295 = scmp.eq.s32.totalorder %s33, 0
      %p296 = por %p294, %p295
      %p297 = scmp.ne.s32.totalorder %s285, %s286
      %p298 = scmp.eq.s32.totalorder %s34, 1
      %p299 = por %p297, %p298
      %p301 = scmp.ne.s32.totalorder %s286, %s300
      %p302 = scmp.eq.s32.totalorder %s34, 0
      %p303 = por %p301, %p302
      %s305 = sadd.s32 %s304, 1
      %p308 = scmp.eq.s32.totalorder %s28, 1
      %p309 = scmp.ne.s32.totalorder %s304, %s306
      %p310 = scmp.eq.s32.totalorder %s28, 0
      %p311 = por %p309, %p310
      %p312 = scmp.ne.s32.totalorder %s304, %s306
      %p313 = scmp.eq.s32.totalorder %s33, 1
      %p314 = por %p312, %p313
      %p315 = scmp.ne.s32.totalorder %s306, %s307
      %p316 = scmp.eq.s32.totalorder %s33, 0
      %p317 = por %p315, %p316
      %p318 = scmp.ne.s32.totalorder %s306, %s307
      %p319 = scmp.eq.s32.totalorder %s34, 1
      %p320 = por %p318, %p319
      %p322 = scmp.ne.s32.totalorder %s307, %s321
      %p323 = scmp.eq.s32.totalorder %s34, 0
      %p324 = por %p322, %p323
      %s326 = sadd.s32 %s325, 1
      %p329 = scmp.eq.s32.totalorder %s28, 1
      %p330 = scmp.ne.s32.totalorder %s325, %s327
      %p331 = scmp.eq.s32.totalorder %s28, 0
      %p332 = por %p330, %p331
      %p333 = scmp.ne.s32.totalorder %s325, %s327
      %p334 = scmp.eq.s32.totalorder %s33, 1
      %p335 = por %p333, %p334
      %p336 = scmp.ne.s32.totalorder %s327, %s328
      %p337 = scmp.eq.s32.totalorder %s33, 0
      %p338 = por %p336, %p337
      %p339 = scmp.ne.s32.totalorder %s327, %s328
      %p340 = scmp.eq.s32.totalorder %s34, 1
      %p341 = por %p339, %p340
      %p343 = scmp.ne.s32.totalorder %s328, %s342
      %p344 = scmp.eq.s32.totalorder %s34, 0
      %p345 = por %p343, %p344
      %s346 = ssub.s32 %s35, %s47
      %p347 = scmp.eq.s32.totalorder %s346, 0
      %s349 = sadd.s32 %s348, 1
      %s350 = scalar_select %p347, %s348, %s349
      %p353 = pneg %p347
      %p354 = scmp.eq.s32.totalorder %s28, 1
      %p355 = por %p353, %p354
      %p356 = scmp.ne.s32.totalorder %s348, %s351
      %p357 = scmp.eq.s32.totalorder %s28, 0
      %p358 = por %p356, %p357
      %p359 = scmp.ne.s32.totalorder %s348, %s351
      %p360 = scmp.eq.s32.totalorder %s33, 1
      %p361 = por %p359, %p360
      %p362 = scmp.ne.s32.totalorder %s351, %s352
      %p363 = scmp.eq.s32.totalorder %s33, 0
      %p364 = por %p362, %p363
      %p365 = scmp.ne.s32.totalorder %s351, %s352
      %p366 = scmp.eq.s32.totalorder %s34, 1
      %p367 = por %p365, %p366
      %p369 = scmp.ne.s32.totalorder %s352, %s368
      %p370 = scmp.eq.s32.totalorder %s34, 0
      %p371 = por %p369, %p370
      %p372 = scmp.le.s32.totalorder 1, %s28
      %p373 = scmp.lt.s32.totalorder %s28, 3
      %p374 = pnand %p372, %p373
      %p375 = pneg %p374
      // Predicated region
      $region9: #{tpu_custom_call.1} parent=5 // pred_check
        _
      $region10: #{tpu_custom_call.1} parent=5 // pred_check_branch
        %377 = sbr.rel (%p374) target = $region12
      $region11: #{tpu_custom_call.1} parent=5 // pred_region
        %s378 = ssub.s32 %s28, 1
        // Predicated region
        $region13: #{tpu_custom_call.1} parent=11 // pred_check
          %p379 = pneg %p113
        $region14: #{tpu_custom_call.1} parent=11 // pred_check_branch
          %381 = sbr.rel (%p379) target = $region16
        $region15: #{tpu_custom_call.1} parent=11 // pred_region
          %383 = vsyncadd [#allocation9], 0
          %s385 = sshll.u32 %s2, 4
          %s386 = int_to_ptr.hbm [resolvable:$true] %s385
          %s387 = sshll.u32 [#allocation10], 4
          %s388 = int_to_ptr.vmem [resolvable:$true] %s387
          %390 = dma.hbm_to_vmem [thread:$0]  %s386, 128, %s388, [#allocation9]
        $region16: #{tpu_custom_call.1} parent=11 // pred_fallthru
          _
        // Predicated region
        $region17: #{tpu_custom_call.1} parent=11 // pred_check
          %p391 = pneg %p134
        $region18: #{tpu_custom_call.1} parent=11 // pred_check_branch
          %393 = sbr.rel (%p391) target = $region20
        $region19: #{tpu_custom_call.1} parent=11 // pred_region
          _
        $region20: #{tpu_custom_call.1} parent=11 // pred_fallthru
          _
        // Predicated region
        $region21: #{tpu_custom_call.1} parent=11 // pred_check
          %p394 = pneg %p155
        $region22: #{tpu_custom_call.1} parent=11 // pred_check_branch
          %396 = sbr.rel (%p394) target = $region24
        $region23: #{tpu_custom_call.1} parent=11 // pred_region
          _
        $region24: #{tpu_custom_call.1} parent=11 // pred_fallthru
          _
        // Predicated region
        $region25: #{tpu_custom_call.1} parent=11 // pred_check
          %p397 = pneg %p176
        $region26: #{tpu_custom_call.1} parent=11 // pred_check_branch
          %399 = sbr.rel (%p397) target = $region28
        $region27: #{tpu_custom_call.1} parent=11 // pred_region
          _
        $region28: #{tpu_custom_call.1} parent=11 // pred_fallthru
          _
        // Predicated region
        $region29: #{tpu_custom_call.1} parent=11 // pred_check
          %p400 = pneg %p197
        $region30: #{tpu_custom_call.1} parent=11 // pred_check_branch
          %402 = sbr.rel (%p400) target = $region32
        $region31: #{tpu_custom_call.1} parent=11 // pred_region
          _
        $region32: #{tpu_custom_call.1} parent=11 // pred_fallthru
          _
        // Predicated region
        $region33: #{tpu_custom_call.1} parent=11 // pred_check
          %p403 = pneg %p223
        $region34: #{tpu_custom_call.1} parent=11 // pred_check_branch
          %405 = sbr.rel (%p403) target = $region36
        $region35: #{tpu_custom_call.1} parent=11 // pred_region
          %p406 = scmp.lt.s32.totalorder %s38, 0
          %s407 = scalar_select %p406, %s38, 0
          %s408 = smul.addr %s407, 8
          %s409 = scalar_lea.vmem %s7, %s408
        $region36: #{tpu_custom_call.1} parent=11 // pred_fallthru
          _
        // Predicated region
        $region37: #{tpu_custom_call.1} parent=11 // pred_check
          %p410 = pneg %p249
        $region38: #{tpu_custom_call.1} parent=11 // pred_check_branch
          %412 = sbr.rel (%p410) target = $region40
        $region39: #{tpu_custom_call.1} parent=11 // pred_region
          %p413 = scmp.lt.s32.totalorder %s38, 0
          %s414 = scalar_select %p413, %s38, 0
          %s415 = scalar_lea.vmem %s8, %s414
        $region40: #{tpu_custom_call.1} parent=11 // pred_fallthru
          _
        // Predicated region
        $region41: #{tpu_custom_call.1} parent=11 // pred_check
          %p416 = pneg %p275
        $region42: #{tpu_custom_call.1} parent=11 // pred_check_branch
          %418 = sbr.rel (%p416) target = $region44
        $region43: #{tpu_custom_call.1} parent=11 // pred_region
          %s419 = smul.u32 8, %s38
          %p420 = scmp.lt.s32.totalorder %s419, 7
          %s421 = scalar_select %p420, %s419, 7
          %s422 = smul.addr %s421, 8
          %s423 = scalar_lea.vmem %s9, %s422
          %s424 = smul.u32 8, %s38
        $region44: #{tpu_custom_call.1} parent=11 // pred_fallthru
          _
        // Predicated region
        $region45: #{tpu_custom_call.1} parent=11 // pred_check
          %p425 = pneg %p296
        $region46: #{tpu_custom_call.1} parent=11 // pred_check_branch
          %427 = sbr.rel (%p425) target = $region48
        $region47: #{tpu_custom_call.1} parent=11 // pred_region
          _
        $region48: #{tpu_custom_call.1} parent=11 // pred_fallthru
          _
        // Predicated region
        $region49: #{tpu_custom_call.1} parent=11 // pred_check
          %p428 = pneg %p317
        $region50: #{tpu_custom_call.1} parent=11 // pred_check_branch
          %430 = sbr.rel (%p428) target = $region52
        $region51: #{tpu_custom_call.1} parent=11 // pred_region
          _
        $region52: #{tpu_custom_call.1} parent=11 // pred_fallthru
          _
        // Predicated region
        $region53: #{tpu_custom_call.1} parent=11 // pred_check
          %p431 = pneg %p338
        $region54: #{tpu_custom_call.1} parent=11 // pred_check_branch
          %433 = sbr.rel (%p431) target = $region56
        $region55: #{tpu_custom_call.1} parent=11 // pred_region
          _
        $region56: #{tpu_custom_call.1} parent=11 // pred_fallthru
          _
      $region12: #{tpu_custom_call.1} parent=5 // pred_fallthru
        _
      %p434 = scmp.lt.s32.totalorder %s28, 2
      // Predicated region
      $region57: #{tpu_custom_call.1} parent=5 // pred_check
        %p435 = pneg %p434
      $region58: #{tpu_custom_call.1} parent=5 // pred_check_branch
        %437 = sbr.rel (%p435) target = $region60
      $region59: #{tpu_custom_call.1} parent=5 // pred_region
        // Predicated region
        $region61: #{tpu_custom_call.1} parent=59 // pred_check
          %p438 = pneg %p60
        $region62: #{tpu_custom_call.1} parent=59 // pred_check_branch
          %440 = sbr.rel (%p438) target = $region64
        $region63: #{tpu_custom_call.1} parent=59 // pred_region
          %s441 = sand.u32 %s50, 1
          %s442 = scalar_lea.sflag [#allocation6], %s441
          %s443 = sand.u32 %s50, 1
          %s444 = smul.addr %s443, 8
          %s445 = scalar_lea.vmem [#allocation5], %s444
          %447 = vsyncadd %s442, 0
          %s448 = smul.addr %s35, 8
          %s449 = scalar_lea.hbm %s0, %s448
          %s451 = sshll.u32 %s449, 4
          %s452 = int_to_ptr.hbm [resolvable:$true] %s451
          %s453 = sshll.u32 %s445, 4
          %s454 = int_to_ptr.vmem [resolvable:$true] %s453
          %456 = dma.hbm_to_vmem [thread:$0]  %s452, 128, %s454, %s442
        $region64: #{tpu_custom_call.1} parent=59 // pred_fallthru
          _
        // Predicated region
        $region65: #{tpu_custom_call.1} parent=59 // pred_check
          %p457 = pneg %p86
        $region66: #{tpu_custom_call.1} parent=59 // pred_check_branch
          %459 = sbr.rel (%p457) target = $region68
        $region67: #{tpu_custom_call.1} parent=59 // pred_region
          %s460 = sand.u32 %s28, 1
          %s461 = scalar_lea.sflag [#allocation9], %s460
          %s462 = sand.u32 %s76, 1
          %s463 = scalar_lea.vmem [#allocation8], %s462
          %465 = vsyncadd %s461, 0
          %s466 = scalar_lea.hbm %s1, %s35
          %s468 = sshll.u32 %s466, 4
          %s469 = int_to_ptr.hbm [resolvable:$true] %s468
          %s470 = sshll.u32 %s463, 4
          %s471 = int_to_ptr.vmem [resolvable:$true] %s470
          %473 = dma.hbm_to_vmem [thread:$0]  %s469, 16, %s471, %s461
        $region68: #{tpu_custom_call.1} parent=59 // pred_fallthru
          _
      $region60: #{tpu_custom_call.1} parent=5 // pred_fallthru
        _
      %p474 = scmp.le.s32.totalorder 1, %s28
      %p475 = scmp.lt.s32.totalorder %s28, 3
      %p476 = pnand %p474, %p475
      %p477 = pneg %p476
      // Predicated region
      $region69: #{tpu_custom_call.1} parent=5 // pred_check
        _
      $region70: #{tpu_custom_call.1} parent=5 // pred_check_branch
        %479 = sbr.rel (%p476) target = $region72
      $region71: #{tpu_custom_call.1} parent=5 // pred_region
        %s480 = ssub.s32 %s28, 1
        %s481 = sand.u32 %s53, 1
        %s482 = scalar_lea.sflag [#allocation6], %s481
        %s483 = sand.u32 %s53, 1
        %s484 = smul.addr %s483, 8
        %s485 = scalar_lea.vmem [#allocation5], %s484
        // Predicated region
        $region73: #{tpu_custom_call.1} parent=71 // pred_check
          %p486 = pneg %p66
        $region74: #{tpu_custom_call.1} parent=71 // pred_check_branch
          %488 = sbr.rel (%p486) target = $region76
        $region75: #{tpu_custom_call.1} parent=71 // pred_region
          %490 = dma.done %s482, 128
        $region76: #{tpu_custom_call.1} parent=71 // pred_fallthru
          _
        %s491 = sand.u32 %s33, 1
        %s492 = scalar_lea.sflag [#allocation9], %s491
        %s493 = sand.u32 %s79, 1
        %s494 = scalar_lea.vmem [#allocation8], %s493
        // Predicated region
        $region77: #{tpu_custom_call.1} parent=71 // pred_check
          %p495 = pneg %p92
        $region78: #{tpu_custom_call.1} parent=71 // pred_check_branch
          %497 = sbr.rel (%p495) target = $region80
        $region79: #{tpu_custom_call.1} parent=71 // pred_region
          %499 = dma.done %s492, 16
        $region80: #{tpu_custom_call.1} parent=71 // pred_fallthru
          _
        // Predicated region
        $region81: #{tpu_custom_call.1} parent=71 // pred_check
          %p500 = pneg %p113
        $region82: #{tpu_custom_call.1} parent=71 // pred_check_branch
          %502 = sbr.rel (%p500) target = $region84
        $region83: #{tpu_custom_call.1} parent=71 // pred_region
          %504 = dma.done [#allocation9], 128
        $region84: #{tpu_custom_call.1} parent=71 // pred_fallthru
          _
        %s505 = sand.u32 %s53, 1
        %s506 = scalar_lea.sflag [#allocation6], %s505
        %s507 = sand.u32 %s53, 1
        %s508 = smul.addr %s507, 8
        %s509 = scalar_lea.vmem [#allocation5], %s508
        %p510 = pneg %p66
        %p511 = pneg %p63
        %s512 = sand.u32 %s33, 1
        %s513 = scalar_lea.sflag [#allocation9], %s512
        %s514 = sand.u32 %s79, 1
        %s515 = scalar_lea.vmem [#allocation8], %s514
        %p516 = pneg %p92
        %p517 = pneg %p89
        %p518 = pneg %p113
        %p519 = pneg %p110
        %p520 = pneg %p134
        %p521 = pneg %p131
        %p522 = pneg %p155
        %p523 = pneg %p152
        %p524 = pneg %p176
        %p525 = pneg %p173
        %p526 = pneg %p197
        %p527 = pneg %p194
        %p528 = scmp.lt.s32.totalorder %s38, 0
        %s529 = scalar_select %p528, %s38, 0
        %s530 = smul.addr %s529, 8
        %s531 = scalar_lea.vmem %s7, %s530
        %p532 = pneg %p223
        %p533 = pneg %p220
        %p534 = scmp.lt.s32.totalorder %s38, 0
        %s535 = scalar_select %p534, %s38, 0
        %s536 = scalar_lea.vmem %s8, %s535
        %p537 = pneg %p249
        %p538 = pneg %p246
        %s539 = smul.u32 8, %s38
        %p540 = scmp.lt.s32.totalorder %s539, 7
        %s541 = scalar_select %p540, %s539, 7
        %s542 = smul.addr %s541, 8
        %s543 = scalar_lea.vmem %s9, %s542
        %p544 = pneg %p275
        %p545 = pneg %p272
        %p546 = pneg %p296
        %p547 = pneg %p293
        %p548 = pneg %p317
        %p549 = pneg %p314
        %p550 = pneg %p338
        %p551 = pneg %p335
        %p552 = pneg %p364
        %p553 = pneg %p361
        %s554 = sand.u32 %s351, 1
        %s555 = scalar_lea.sflag [#allocation7], %s554
        %s556 = sand.u32 %s351, 1
        %s557 = smul.addr %s556, 8
        %s558 = scalar_lea.vmem [#allocation11], %s557
        %p559 = scmp.lt.s32.totalorder %s38, 0
        %s560 = scalar_select %p559, %s38, 0
        %s561 = smul.addr %s560, 8
        %s562 = scalar_lea.vmem %s7, %s561
        %p563 = scmp.lt.s32.totalorder %s38, 0
        %s564 = scalar_select %p563, %s38, 0
        %s565 = scalar_lea.vmem %s8, %s564
        %s566 = smul.u32 8, %s38
        %p567 = scmp.lt.s32.totalorder %s566, 7
        %s568 = scalar_select %p567, %s566, 7
        %s569 = smul.addr %s568, 8
        %s570 = scalar_lea.vmem %s9, %s569
        %s571 = smul.u32 8, %s38
        %p572 = scmp.eq.s32.totalorder %s38, 0
        // Predicated region
        $region85: #{tpu_custom_call.1} parent=71 // pred_check
          %p573 = pneg %p572
        $region86: #{tpu_custom_call.1} parent=71 // pred_check_branch
          %575 = sbr.rel (%p573) target = $region88
        $region87: #{tpu_custom_call.1} parent=71 // pred_region
          %v576 = vld [vmem:[%s485] sm:$0xff]
          %v577 = vld [vmem:[%s3] sm:$0xff]
          %v578 = vld [vmem:[%s3 + $0x8] sm:$0xff]
          %v579 = vld [vmem:[%s3 + $0x10] sm:$0xff]
          %v580 = vld [vmem:[%s3 + $0x18] sm:$0xff]
          %vm581 = vcmask 261120
          %v583 = vsel %vm581, %v576, 0
          %585 = vmatpush.msra.mxu0 0.0
          %586 = vmatpush.msra.mxu0 0.0
          %587 = vmatpush.msra.mxu0 0.0
          %588 = vmatpush.msra.mxu0 0.0
          %589 = vmatpush.msra.mxu0 0.0
          %590 = vmatpush.msra.mxu0 0.0
          %591 = vmatpush.msra.mxu0 0.0
          %592 = vmatpush.msra.mxu0 0.0
          %593 = vmatpush.msra.mxu0 0.0
          %594 = vmatpush.msra.mxu0 0.0
          %595 = vmatpush.msra.mxu0 0.0
          %596 = vmatpush.msra.mxu0 0.0
          %597 = vmatpush.msra.mxu0 %v580
          %598 = vmatpush.msra.mxu0 %v579
          %599 = vmatpush.msra.mxu0 %v578
          %600 = vmatpush.msra.mxu0 %v577
          %601 = vmatmul.f32.gmra.mxu0 %v583
          %v602 = vpop.f32.mrf.mxu0
          %v603 = vadd.f32 0.0, %v602
          %604 = vdwg.mxu0
          %v605 = vmul.f32 %v603, 0.35355338
          %v606 = vld [vmem:[%s494] sm:$0x1]
          %vm607 = vcmp.ne.f32.partialorder %v606, 0.0
          %v608 = vld [vmem:[#allocation10] sm:$0xff]
          %vm609 = vcmp.ne.f32.partialorder %v608, 0.0
          %v610 = vsel %vm607, 1, 0
          %v611 = vperm.slane %v610, 0
          %vm612 = vcmp.eq.s32.totalorder %v611, 1
          %vm613 = vmor %vm612, %vm609
          %615 = vrot.lane.b32.xlu0 %v603, 96
          %v616 = vpop.permute.xlu0 %615
          %vm617 = vcmask 64512
          %v619 = vsel %vm617, %v605, 0
          %v621 = vsel %vm617, %v616, 0
          %623 = vmatpush.xpose.msra.mxu0 0.0
          %624 = vmatpush.xpose.msra.mxu0 0.0
          %625 = vmatpush.xpose.msra.mxu0 0.0
          %626 = vmatpush.xpose.msra.mxu0 0.0
          %627 = vmatpush.xpose.msra.mxu0 0.0
          %628 = vmatpush.xpose.msra.mxu0 0.0
          %629 = vmatpush.xpose.msra.mxu0 0.0
          %630 = vmatpush.xpose.msra.mxu0 0.0
          %631 = vmatpush.xpose.msra.mxu0 0.0
          %632 = vmatpush.xpose.msra.mxu0 0.0
          %633 = vmatpush.xpose.msra.mxu0 0.0
          %634 = vmatpush.xpose.msra.mxu0 0.0
          %635 = vmatpush.xpose.msra.mxu0 0.0
          %636 = vmatpush.xpose.msra.mxu0 0.0
          %637 = vmatpush.xpose.msra.mxu0 0.0
          %638 = vmatpush.xpose.msra.mxu0 %v621
          %639 = vmatmul.f32.gmra.mxu0 %v619
          %v640 = vpop.f32.mrf.mxu0
          %v641 = vadd.f32 0.0, %v640
          %642 = vdwg.mxu0
          %v643 = vsel %vm613, -1e+09, %v641
          %v644 = vsel %vm617, %v643, -inf
          %645 = vmax.xlane.f32.xlu0 %v644
          %v646 = vpop.xlane.xlu0 %645
          %v647 = vsub.f32 %v643, %v646
          %v648 = vmul.f32 %v647, 1.442695
          %v649 = vpow.pop %v648
          %v650 = vsel %vm617, %v649, 0.0
          %651 = vadd.xlane.f32.xlu0 %v650
          %v652 = vpop.xlane.xlu0 %651
          %v653 = vrcp.pop %v652
          %v654 = vmul.f32 %v649, %v653
          %655 = vrot.lane.b32.xlu0 %v603, 64
          %v656 = vpop.permute.xlu0 %655
          %v659 = vsel %vm617, %v654, 0
          %661 = vmatpush.msra.mxu0 0.0
          %662 = vmatpush.msra.mxu0 0.0
          %663 = vmatpush.msra.mxu0 0.0
          %664 = vmatpush.msra.mxu0 0.0
          %665 = vmatpush.msra.mxu0 0.0
          %666 = vmatpush.msra.mxu0 0.0
          %667 = vmatpush.msra.mxu0 0.0
          %668 = vmatpush.msra.mxu0 0.0
          %669 = vmatpush.msra.mxu0 0.0
          %670 = vmatpush.msra.mxu0 0.0
          %671 = vmatpush.msra.mxu0 0.0
          %672 = vmatpush.msra.mxu0 0.0
          %673 = vmatpush.msra.mxu0 0.0
          %674 = vmatpush.msra.mxu0 0.0
          %675 = vmatpush.msra.mxu0 0.0
          %676 = vmatpush.msra.mxu0 %v656
          %677 = vmatmul.f32.gmra.mxu0 %v659
          %v678 = vpop.f32.mrf.mxu0
          %v679 = vadd.f32 0.0, %v678
          %680 = vdwg.mxu0
          %681 = vst.msk [vmem:[#allocation2] sm:$0xff] %vm617, %v679
          %682 = vrot.lane.b32.xlu0 %v605, 120
          %v683 = vpop.permute.xlu0 %682
          %684 = vrot.lane.b32.xlu0 %v603, 88
          %v685 = vpop.permute.xlu0 %684
          %v686 = vsel %vm617, %v683, 0
          %v688 = vsel %vm617, %v685, 0
          %690 = vmatpush.xpose.msra.mxu0 0.0
          %691 = vmatpush.xpose.msra.mxu0 0.0
          %692 = vmatpush.xpose.msra.mxu0 0.0
          %693 = vmatpush.xpose.msra.mxu0 0.0
          %694 = vmatpush.xpose.msra.mxu0 0.0
          %695 = vmatpush.xpose.msra.mxu0 0.0
          %696 = vmatpush.xpose.msra.mxu0 0.0
          %697 = vmatpush.xpose.msra.mxu0 0.0
          %698 = vmatpush.xpose.msra.mxu0 0.0
          %699 = vmatpush.xpose.msra.mxu0 0.0
          %700 = vmatpush.xpose.msra.mxu0 0.0
          %701 = vmatpush.xpose.msra.mxu0 0.0
          %702 = vmatpush.xpose.msra.mxu0 0.0
          %703 = vmatpush.xpose.msra.mxu0 0.0
          %704 = vmatpush.xpose.msra.mxu0 0.0
          %705 = vmatpush.xpose.msra.mxu0 %v688
          %706 = vmatmul.f32.gmra.mxu0 %v686
          %v707 = vpop.f32.mrf.mxu0
          %v708 = vadd.f32 0.0, %v707
          %709 = vdwg.mxu0
          %v710 = vsel %vm613, -1e+09, %v708
          %v711 = vsel %vm617, %v710, -inf
          %712 = vmax.xlane.f32.xlu0 %v711
          %v713 = vpop.xlane.xlu0 %712
          %v714 = vsub.f32 %v710, %v713
          %v715 = vmul.f32 %v714, 1.442695
          %v716 = vpow.pop %v715
          %v717 = vsel %vm617, %v716, 0.0
          %718 = vadd.xlane.f32.xlu0 %v717
          %v719 = vpop.xlane.xlu0 %718
          %v720 = vrcp.pop %v719
          %v721 = vmul.f32 %v716, %v720
          %722 = vrot.lane.b32.xlu0 %v603, 56
          %v723 = vpop.permute.xlu0 %722
          %v726 = vsel %vm617, %v721, 0
          %728 = vmatpush.msra.mxu0 0.0
          %729 = vmatpush.msra.mxu0 0.0
          %730 = vmatpush.msra.mxu0 0.0
          %731 = vmatpush.msra.mxu0 0.0
          %732 = vmatpush.msra.mxu0 0.0
          %733 = vmatpush.msra.mxu0 0.0
          %734 = vmatpush.msra.mxu0 0.0
          %735 = vmatpush.msra.mxu0 0.0
          %736 = vmatpush.msra.mxu0 0.0
          %737 = vmatpush.msra.mxu0 0.0
          %738 = vmatpush.msra.mxu0 0.0
          %739 = vmatpush.msra.mxu0 0.0
          %740 = vmatpush.msra.mxu0 0.0
          %741 = vmatpush.msra.mxu0 0.0
          %742 = vmatpush.msra.mxu0 0.0
          %743 = vmatpush.msra.mxu0 %v723
          %744 = vmatmul.f32.gmra.mxu0 %v726
          %v745 = vpop.f32.mrf.mxu0
          %v746 = vadd.f32 0.0, %v745
          %747 = vdwg.mxu0
          %749 = vrot.lane.b32.xlu0 %v746, 8
          %v750 = vpop.permute.xlu0 %749
          %vm752 = vcmask 130112
          %753 = vst.msk [vmem:[#allocation2] sm:$0xff] %vm752, %v750
          %754 = vrot.lane.b32.xlu0 %v605, 112
          %v755 = vpop.permute.xlu0 %754
          %756 = vrot.lane.b32.xlu0 %v603, 80
          %v757 = vpop.permute.xlu0 %756
          %v758 = vsel %vm617, %v755, 0
          %v760 = vsel %vm617, %v757, 0
          %762 = vmatpush.xpose.msra.mxu0 0.0
          %763 = vmatpush.xpose.msra.mxu0 0.0
          %764 = vmatpush.xpose.msra.mxu0 0.0
          %765 = vmatpush.xpose.msra.mxu0 0.0
          %766 = vmatpush.xpose.msra.mxu0 0.0
          %767 = vmatpush.xpose.msra.mxu0 0.0
          %768 = vmatpush.xpose.msra.mxu0 0.0
          %769 = vmatpush.xpose.msra.mxu0 0.0
          %770 = vmatpush.xpose.msra.mxu0 0.0
          %771 = vmatpush.xpose.msra.mxu0 0.0
          %772 = vmatpush.xpose.msra.mxu0 0.0
          %773 = vmatpush.xpose.msra.mxu0 0.0
          %774 = vmatpush.xpose.msra.mxu0 0.0
          %775 = vmatpush.xpose.msra.mxu0 0.0
          %776 = vmatpush.xpose.msra.mxu0 0.0
          %777 = vmatpush.xpose.msra.mxu0 %v760
          %778 = vmatmul.f32.gmra.mxu0 %v758
          %v779 = vpop.f32.mrf.mxu0
          %v780 = vadd.f32 0.0, %v779
          %781 = vdwg.mxu0
          %v782 = vsel %vm613, -1e+09, %v780
          %v783 = vsel %vm617, %v782, -inf
          %784 = vmax.xlane.f32.xlu0 %v783
          %v785 = vpop.xlane.xlu0 %784
          %v786 = vsub.f32 %v782, %v785
          %v787 = vmul.f32 %v786, 1.442695
          %v788 = vpow.pop %v787
          %v789 = vsel %vm617, %v788, 0.0
          %790 = vadd.xlane.f32.xlu0 %v789
          %v791 = vpop.xlane.xlu0 %790
          %v792 = vrcp.pop %v791
          %v793 = vmul.f32 %v788, %v792
          %794 = vrot.lane.b32.xlu0 %v603, 48
          %v795 = vpop.permute.xlu0 %794
          %v798 = vsel %vm617, %v793, 0
          %800 = vmatpush.msra.mxu0 0.0
          %801 = vmatpush.msra.mxu0 0.0
          %802 = vmatpush.msra.mxu0 0.0
          %803 = vmatpush.msra.mxu0 0.0
          %804 = vmatpush.msra.mxu0 0.0
          %805 = vmatpush.msra.mxu0 0.0
          %806 = vmatpush.msra.mxu0 0.0
          %807 = vmatpush.msra.mxu0 0.0
          %808 = vmatpush.msra.mxu0 0.0
          %809 = vmatpush.msra.mxu0 0.0
          %810 = vmatpush.msra.mxu0 0.0
          %811 = vmatpush.msra.mxu0 0.0
          %812 = vmatpush.msra.mxu0 0.0
          %813 = vmatpush.msra.mxu0 0.0
          %814 = vmatpush.msra.mxu0 0.0
          %815 = vmatpush.msra.mxu0 %v795
          %816 = vmatmul.f32.gmra.mxu0 %v798
          %v817 = vpop.f32.mrf.mxu0
          %v818 = vadd.f32 0.0, %v817
          %819 = vdwg.mxu0
          %821 = vrot.lane.b32.xlu0 %v818, 16
          %v822 = vpop.permute.xlu0 %821
          %vm824 = vcmask 195712
          %825 = vst.msk [vmem:[#allocation2] sm:$0xff] %vm824, %v822
          %826 = vrot.lane.b32.xlu0 %v605, 104
          %v827 = vpop.permute.xlu0 %826
          %828 = vrot.lane.b32.xlu0 %v603, 72
          %v829 = vpop.permute.xlu0 %828
          %v830 = vsel %vm617, %v827, 0
          %v832 = vsel %vm617, %v829, 0
          %834 = vmatpush.xpose.msra.mxu0 0.0
          %835 = vmatpush.xpose.msra.mxu0 0.0
          %836 = vmatpush.xpose.msra.mxu0 0.0
          %837 = vmatpush.xpose.msra.mxu0 0.0
          %838 = vmatpush.xpose.msra.mxu0 0.0
          %839 = vmatpush.xpose.msra.mxu0 0.0
          %840 = vmatpush.xpose.msra.mxu0 0.0
          %841 = vmatpush.xpose.msra.mxu0 0.0
          %842 = vmatpush.xpose.msra.mxu0 0.0
          %843 = vmatpush.xpose.msra.mxu0 0.0
          %844 = vmatpush.xpose.msra.mxu0 0.0
          %845 = vmatpush.xpose.msra.mxu0 0.0
          %846 = vmatpush.xpose.msra.mxu0 0.0
          %847 = vmatpush.xpose.msra.mxu0 0.0
          %848 = vmatpush.xpose.msra.mxu0 0.0
          %849 = vmatpush.xpose.msra.mxu0 %v832
          %850 = vmatmul.f32.gmra.mxu0 %v830
          %v851 = vpop.f32.mrf.mxu0
          %v852 = vadd.f32 0.0, %v851
          %853 = vdwg.mxu0
          %v854 = vsel %vm613, -1e+09, %v852
          %v855 = vsel %vm617, %v854, -inf
          %856 = vmax.xlane.f32.xlu0 %v855
          %v857 = vpop.xlane.xlu0 %856
          %v858 = vsub.f32 %v854, %v857
          %v859 = vmul.f32 %v858, 1.442695
          %v860 = vpow.pop %v859
          %v861 = vsel %vm617, %v860, 0.0
          %862 = vadd.xlane.f32.xlu0 %v861
          %v863 = vpop.xlane.xlu0 %862
          %v864 = vrcp.pop %v863
          %v865 = vmul.f32 %v860, %v864
          %866 = vrot.lane.b32.xlu0 %v603, 40
          %v867 = vpop.permute.xlu0 %866
          %v870 = vsel %vm617, %v865, 0
          %872 = vmatpush.msra.mxu0 0.0
          %873 = vmatpush.msra.mxu0 0.0
          %874 = vmatpush.msra.mxu0 0.0
          %875 = vmatpush.msra.mxu0 0.0
          %876 = vmatpush.msra.mxu0 0.0
          %877 = vmatpush.msra.mxu0 0.0
          %878 = vmatpush.msra.mxu0 0.0
          %879 = vmatpush.msra.mxu0 0.0
          %880 = vmatpush.msra.mxu0 0.0
          %881 = vmatpush.msra.mxu0 0.0
          %882 = vmatpush.msra.mxu0 0.0
          %883 = vmatpush.msra.mxu0 0.0
          %884 = vmatpush.msra.mxu0 0.0
          %885 = vmatpush.msra.mxu0 0.0
          %886 = vmatpush.msra.mxu0 0.0
          %887 = vmatpush.msra.mxu0 %v867
          %888 = vmatmul.f32.gmra.mxu0 %v870
          %v889 = vpop.f32.mrf.mxu0
          %v890 = vadd.f32 0.0, %v889
          %891 = vdwg.mxu0
          %893 = vrot.lane.b32.xlu0 %v890, 24
          %v894 = vpop.permute.xlu0 %893
          %vm896 = vcmask 261312
          %897 = vst.msk [vmem:[#allocation2] sm:$0xff] %vm896, %v894
          %v898 = vld [vmem:[#allocation2] sm:$0xff]
          %v899 = vld [vmem:[%s4] sm:$0xff]
          %v900 = vld [vmem:[%s4 + $0x8] sm:$0xff]
          %v901 = vld [vmem:[%s4 + $0x10] sm:$0xff]
          %v902 = vld [vmem:[%s4 + $0x18] sm:$0xff]
          %v904 = vsel %vm581, %v898, 0
          %906 = vmatpush.msra.mxu0 0.0
          %907 = vmatpush.msra.mxu0 0.0
          %908 = vmatpush.msra.mxu0 0.0
          %909 = vmatpush.msra.mxu0 0.0
          %910 = vmatpush.msra.mxu0 0.0
          %911 = vmatpush.msra.mxu0 0.0
          %912 = vmatpush.msra.mxu0 0.0
          %913 = vmatpush.msra.mxu0 0.0
          %914 = vmatpush.msra.mxu0 0.0
          %915 = vmatpush.msra.mxu0 0.0
          %916 = vmatpush.msra.mxu0 0.0
          %917 = vmatpush.msra.mxu0 0.0
          %918 = vmatpush.msra.mxu0 %v902
          %919 = vmatpush.msra.mxu0 %v901
          %920 = vmatpush.msra.mxu0 %v900
          %921 = vmatpush.msra.mxu0 %v899
          %922 = vmatmul.f32.gmra.mxu0 %v904
          %v923 = vpop.f32.mrf.mxu0
          %v924 = vadd.f32 0.0, %v923
          %925 = vdwg.mxu0
          %v926 = vadd.f32 %v576, %v924
          %v927 = vld [vmem:[%s5] sm:$0x1]
          %v928 = vld [vmem:[%s6] sm:$0x1]
          %v929 = vsel %vm581, %v926, 0.0
          %930 = vadd.xlane.f32.xlu0 %v929
          %v931 = vpop.xlane.xlu0 %930
          %v932 = vrcp.pop 32.0
          %v933 = vmul.f32 32.0, %v932
          %v934 = vsub.f32 1.0, %v933
          %v935 = vmul.f32 %v932, %v934
          %v936 = vadd.f32 %v932, %v935
          %vm937 = vweird.f32 %v932
          %v938 = vsel %vm937, %v932, %v936
          %v939 = vmul.f32 %v931, %v938
          %v940 = vsub.f32 %v926, %v939
          %v941 = vmul.f32 %v940, %v940
          %v942 = vsel %vm581, %v941, 0.0
          %943 = vadd.xlane.f32.xlu0 %v942
          %v944 = vpop.xlane.xlu0 %943
          %v945 = vmul.f32 %v944, %v938
          %v946 = vadd.f32 %v945, 1e-05
          %v947 = vrsqrt.pop %v946
          %v948 = vmul.f32 %v947, %v946
          %v949 = vmul.f32 %v948, %v947
          %v950 = vmul.f32 0.5, %v949
          %v951 = vsub.f32 1.5, %v950
          %v952 = vmul.f32 %v947, %v951
          %vm953 = vweird.f32 %v946
          %vm954 = vweird.f32 %v947
          %vm955 = vmor %vm953, %vm954
          %v956 = vsel %vm955, %v947, %v952
          %v957 = vmul.f32 %v940, %v956
          %v959 = vperm.slane %v927, 0
          %v961 = vmul.f32 %v957, %v959
          %v963 = vperm.slane %v928, 0
          %v965 = vadd.f32 %v961, %v963
          %966 = vst.msk [vmem:[#allocation3] sm:$0xff] %vm581, %v965
          %967 = vst.msk [vmem:[#allocation4] sm:$0xff] %vm581, 0.0
        $region88: #{tpu_custom_call.1} parent=71 // pred_fallthru
          _
        %v968 = vld [vmem:[#allocation3] sm:$0xff]
        %v969 = vld [vmem:[%s562] sm:$0xff]
        %v970 = vld [vmem:[%s562 + $0x8] sm:$0xff]
        %v971 = vld [vmem:[%s562 + $0x10] sm:$0xff]
        %v972 = vld [vmem:[%s562 + $0x18] sm:$0xff]
        %v973 = vld [vmem:[%s565] sm:$0x1]
        %v975 = vperm.slane %v973, 0
        %vm977 = vcmask 261120
        %v979 = vsel %vm977, %v968, 0
        %981 = vmatpush.msra.mxu0 0.0
        %982 = vmatpush.msra.mxu0 0.0
        %983 = vmatpush.msra.mxu0 0.0
        %984 = vmatpush.msra.mxu0 0.0
        %985 = vmatpush.msra.mxu0 0.0
        %986 = vmatpush.msra.mxu0 0.0
        %987 = vmatpush.msra.mxu0 0.0
        %988 = vmatpush.msra.mxu0 0.0
        %989 = vmatpush.msra.mxu0 0.0
        %990 = vmatpush.msra.mxu0 0.0
        %991 = vmatpush.msra.mxu0 0.0
        %992 = vmatpush.msra.mxu0 0.0
        %993 = vmatpush.msra.mxu0 %v972
        %994 = vmatpush.msra.mxu0 %v971
        %995 = vmatpush.msra.mxu0 %v970
        %996 = vmatpush.msra.mxu0 %v969
        %997 = vmatmul.f32.gmra.mxu0 %v979
        %v998 = vpop.f32.mrf.mxu0
        %v999 = vadd.f32 %v975, %v998
        %1000 = vdwg.mxu0
        %v1001 = vmax.f32 %v999, 0.0
        %v1002 = vld [vmem:[#allocation4] sm:$0xff]
        %v1003 = vld [vmem:[%s570] sm:$0xff]
        %v1004 = vld [vmem:[%s570 + $0x8] sm:$0xff]
        %v1005 = vld [vmem:[%s570 + $0x10] sm:$0xff]
        %v1006 = vld [vmem:[%s570 + $0x18] sm:$0xff]
        %v1007 = vld [vmem:[%s570 + $0x20] sm:$0xff]
        %v1008 = vld [vmem:[%s570 + $0x28] sm:$0xff]
        %v1009 = vld [vmem:[%s570 + $0x30] sm:$0xff]
        %v1010 = vld [vmem:[%s570 + $0x38] sm:$0xff]
        %vm1011 = vcmask 523264
        %v1013 = vsel %vm1011, %v1001, 0
        %1015 = vmatpush.msra.mxu0 0.0
        %1016 = vmatpush.msra.mxu0 0.0
        %1017 = vmatpush.msra.mxu0 0.0
        %1018 = vmatpush.msra.mxu0 0.0
        %1019 = vmatpush.msra.mxu0 0.0
        %1020 = vmatpush.msra.mxu0 0.0
        %1021 = vmatpush.msra.mxu0 0.0
        %1022 = vmatpush.msra.mxu0 0.0
        %1023 = vmatpush.msra.mxu0 %v1010
        %1024 = vmatpush.msra.mxu0 %v1009
        %1025 = vmatpush.msra.mxu0 %v1008
        %1026 = vmatpush.msra.mxu0 %v1007
        %1027 = vmatpush.msra.mxu0 %v1006
        %1028 = vmatpush.msra.mxu0 %v1005
        %1029 = vmatpush.msra.mxu0 %v1004
        %1030 = vmatpush.msra.mxu0 %v1003
        %1031 = vmatmul.f32.gmra.mxu0 %v1013
        %v1032 = vpop.f32.mrf.mxu0
        %v1033 = vadd.f32 0.0, %v1032
        %1034 = vdwg.mxu0
        %v1035 = vadd.f32 %v1002, %v1033
        %1036 = vst.msk [vmem:[#allocation4] sm:$0xff] %vm977, %v1035
        // Predicated region
        $region89: #{tpu_custom_call.1} parent=71 // pred_check
          %p1037 = pneg %p572
        $region90: #{tpu_custom_call.1} parent=71 // pred_check_branch
          %1039 = sbr.rel (%p1037) target = $region92
        $region91: #{tpu_custom_call.1} parent=71 // pred_region
          %v1040 = vld [vmem:[#allocation4] sm:$0xff]
          %v1041 = vld [vmem:[%s10] sm:$0x1]
          %v1043 = vperm.slane %v1041, 0
          %v1045 = vadd.f32 %v1040, %v1043
          %v1046 = vld [vmem:[#allocation3] sm:$0xff]
          %v1047 = vadd.f32 %v1046, %v1045
          %v1048 = vld [vmem:[%s11] sm:$0x1]
          %v1049 = vld [vmem:[%s12] sm:$0x1]
          %v1050 = vsel %vm977, %v1047, 0.0
          %1051 = vadd.xlane.f32.xlu0 %v1050
          %v1052 = vpop.xlane.xlu0 %1051
          %v1053 = vrcp.pop 32.0
          %v1054 = vmul.f32 32.0, %v1053
          %v1055 = vsub.f32 1.0, %v1054
          %v1056 = vmul.f32 %v1053, %v1055
          %v1057 = vadd.f32 %v1053, %v1056
          %vm1058 = vweird.f32 %v1053
          %v1059 = vsel %vm1058, %v1053, %v1057
          %v1060 = vmul.f32 %v1052, %v1059
          %v1061 = vsub.f32 %v1047, %v1060
          %v1062 = vmul.f32 %v1061, %v1061
          %v1063 = vsel %vm977, %v1062, 0.0
          %1064 = vadd.xlane.f32.xlu0 %v1063
          %v1065 = vpop.xlane.xlu0 %1064
          %v1066 = vmul.f32 %v1065, %v1059
          %v1067 = vadd.f32 %v1066, 1e-05
          %v1068 = vrsqrt.pop %v1067
          %v1069 = vmul.f32 %v1068, %v1067
          %v1070 = vmul.f32 %v1069, %v1068
          %v1071 = vmul.f32 0.5, %v1070
          %v1072 = vsub.f32 1.5, %v1071
          %v1073 = vmul.f32 %v1068, %v1072
          %vm1074 = vweird.f32 %v1067
          %vm1075 = vweird.f32 %v1068
          %vm1076 = vmor %vm1074, %vm1075
          %v1077 = vsel %vm1076, %v1068, %v1073
          %v1078 = vmul.f32 %v1061, %v1077
          %v1080 = vperm.slane %v1048, 0
          %v1082 = vmul.f32 %v1078, %v1080
          %v1084 = vperm.slane %v1049, 0
          %v1086 = vadd.f32 %v1082, %v1084
          %1087 = vst.msk [vmem:[%s558] sm:$0xff] %vm977, %v1086
        $region92: #{tpu_custom_call.1} parent=71 // pred_fallthru
          _
        %s1088 = sand.u32 %s351, 1
        %s1089 = scalar_lea.sflag [#allocation7], %s1088
        %s1090 = sand.u32 %s351, 1
        %s1091 = smul.addr %s1090, 8
        %s1092 = scalar_lea.vmem [#allocation11], %s1091
        // Predicated region
        $region93: #{tpu_custom_call.1} parent=71 // pred_check
          %p1093 = pneg %p361
        $region94: #{tpu_custom_call.1} parent=71 // pred_check_branch
          %1095 = sbr.rel (%p1093) target = $region96
        $region95: #{tpu_custom_call.1} parent=71 // pred_region
          %1097 = vsyncadd %s1089, 0
          %s1098 = smul.addr %s37, 8
          %s1099 = scalar_lea.hbm %s13, %s1098
          %s1101 = sshll.u32 %s1092, 4
          %s1102 = int_to_ptr.vmem [resolvable:$true] %s1101
          %s1103 = sshll.u32 %s1099, 4
          %s1104 = int_to_ptr.hbm [resolvable:$true] %s1103
          %1106 = dma.vmem_to_hbm [thread:$0]  %s1102, 128, %s1104, %s1089
        $region96: #{tpu_custom_call.1} parent=71 // pred_fallthru
          _
      $region72: #{tpu_custom_call.1} parent=5 // pred_fallthru
        _
      %p1107 = scmp.le.s32.totalorder 2, %s28
      // Predicated region
      $region97: #{tpu_custom_call.1} parent=5 // pred_check
        %p1108 = pneg %p1107
      $region98: #{tpu_custom_call.1} parent=5 // pred_check_branch
        %1110 = sbr.rel (%p1108) target = $region100
      $region99: #{tpu_custom_call.1} parent=5 // pred_region
        %s1111 = ssub.s32 %s28, 2
        // Predicated region
        $region101: #{tpu_custom_call.1} parent=99 // pred_check
          %p1112 = pneg %p367
        $region102: #{tpu_custom_call.1} parent=99 // pred_check_branch
          %1114 = sbr.rel (%p1112) target = $region104
        $region103: #{tpu_custom_call.1} parent=99 // pred_region
          %s1115 = sand.u32 %s352, 1
          %s1116 = scalar_lea.sflag [#allocation7], %s1115
          %s1117 = sand.u32 %s352, 1
          %s1118 = smul.addr %s1117, 8
          %s1119 = scalar_lea.vmem [#allocation11], %s1118
          %1121 = dma.done %s1116, 128
        $region104: #{tpu_custom_call.1} parent=99 // pred_fallthru
          _
      $region100: #{tpu_custom_call.1} parent=5 // pred_fallthru
        _
    $region6: #{tpu_custom_call.1} parent=1 // loop_footer
      %s32 = sadd.s32 1, %s28
    $region7: #{tpu_custom_call.1} parent=1 // loop_footer_branch
      %27 = sbr.rel target = $region3
    $region8: #{tpu_custom_call.1} parent=1 // loop_exit
      _
    %1122 = vsyncpa [#allocation6], 1
    %s1123 = scalar_lea.sflag [#allocation6], 1
    %1124 = vsyncpa %s1123, 1
    %1125 = vsyncpa [#allocation9], 1
    %s1126 = scalar_lea.sflag [#allocation9], 1
    %1127 = vsyncpa %s1126, 1
    %1128 = vsyncpa [#allocation7], 1
    %s1129 = scalar_lea.sflag [#allocation7], 1
    %1130 = vsyncpa %s1129, 1

// kernel: tpu_custom_call.1
$region0: #{tpu_custom_call.1}
  #allocation0 [shape = 'u32[]', space=smem, size = 0x4, offset = 0x4, fixed_abs, tag = 'smem constant byte address 0x4 - core index']
  #allocation1 [shape = 'u32[72,128]{1,0:T(1,128)}', space=vmem, size = 0x9000, scoped, tag = 'internal scratch']
  #allocation2 [shape = 'f32[8,32]{1,0:T(8,128)}', space=vmem, size = 0x1000, scoped, tag = 'scratch operand']
  #allocation3 [shape = 'f32[8,32]{1,0:T(8,128)}', space=vmem, size = 0x1000, scoped, tag = 'scratch operand']
  #allocation4 [shape = 'f32[8,32]{1,0:T(8,128)}', space=vmem, size = 0x1000, scoped, tag = 'scratch operand']
  %s0 = inlined_call_operand.hbm [shape: f32[2,8,32], index: 0, kind: input, shape index: {}]
  %s1 = inlined_call_operand.hbm [shape: f32[2,1,8], index: 1, kind: input, shape index: {}]
  %s2 = inlined_call_operand.hbm [shape: f32[8,8], index: 2, kind: input, shape index: {}]
  %s3 = inlined_call_operand.vmem [shape: f32[32,96], index: 3, kind: input, shape index: {}]
  %s4 = inlined_call_operand.vmem [shape: f32[32,32], index: 4, kind: input, shape index: {}]
  %s5 = inlined_call_operand.vmem [shape: f32[1,32], index: 5, kind: input, shape index: {}]
  %s6 = inlined_call_operand.vmem [shape: f32[1,32], index: 6, kind: input, shape index: {}]
  %s7 = inlined_call_operand.vmem [shape: f32[32,64], index: 7, kind: input, shape index: {}]
  %s8 = inlined_call_operand.vmem [shape: f32[1,64], index: 8, kind: input, shape index: {}]
  %s9 = inlined_call_operand.vmem [shape: f32[64,32], index: 9, kind: input, shape index: {}]
  %s10 = inlined_call_operand.vmem [shape: f32[1,32], index: 10, kind: input, shape index: {}]
  %s11 = inlined_call_operand.vmem [shape: f32[1,32], index: 11, kind: input, shape index: {}]
  %s12 = inlined_call_operand.vmem [shape: f32[1,32], index: 12, kind: input, shape index: {}]
  %s13 = inlined_call_operand.hbm [shape: f32[2,8,32], index: 13, kind: output, shape index: {}]
  %s14 = sld [smem:[#allocation0]]
  $region105: #{tpu_custom_call.1} parent=0
    _
  %s16 = ssub.s32 1, %s14
  %s17 = scalar_select 0, %s16, %s14
  $region1: #{tpu_custom_call.1} parent=0
    #allocation5 [shape = 'u8[8192]{0}', space=vmem, size = 0x2000, scoped, tag = 'input window, operand 0']
    #allocation6 [shape = 's32[2]{0}', space=sflag, size = 0x8, scoped, tag = 'scoped memory for tpu_custom_call.1']
    #allocation7 [shape = 's32[2]{0}', space=sflag, size = 0x8, scoped, tag = 'scoped memory for tpu_custom_call.1']
    #allocation8 [shape = 'u8[1024]{0}', space=vmem, size = 0x400, scoped, tag = 'input window, operand 1']
    #allocation9 [shape = 's32[2]{0}', space=sflag, size = 0x8, scoped, tag = 'scoped memory for tpu_custom_call.1']
    #allocation10 [shape = 'u8[4096]{0}', space=vmem, size = 0x1000, scoped, tag = 'input window, operand 2, single buffered']
    #allocation11 [shape = 'u8[8192]{0}', space=vmem, size = 0x2000, scoped, tag = 'output window, operand 0']
    %18 = vsyncpa [#allocation6], 0
    %s19 = scalar_lea.sflag [#allocation6], 1
    %20 = vsyncpa %s19, 0
    %21 = vsyncpa [#allocation9], 0
    %s22 = scalar_lea.sflag [#allocation9], 1
    %23 = vsyncpa %s22, 0
    %24 = vsyncpa [#allocation7], 0
    %s25 = scalar_lea.sflag [#allocation7], 1
    %26 = vsyncpa %s25, 0
    loop: start=0, step=1, limit=4
    $region2: #{tpu_custom_call.1} parent=1 // loop_pre_header
      _
    $region3: #{tpu_custom_call.1} parent=1 // loop_header
      %s28 = sphi 0, %s32
      %p29 = scmp.ge.s32.totalorder %s28, 4
      %s35 = sphi 0, %s47
      %s36 = sphi 0, %s43
      %s37 = sphi 0, %s35
      %s38 = sphi 0, %s36
      %s39 = sphi 0, %s37
      %s40 = sphi 0, %s38
      %s50 = sphi 0, %s52
      %s53 = sphi 0, %s50
      %s54 = sphi 0, %s53
      %s70 = sphi 0, %s54
      %s76 = sphi 0, %s78
      %s79 = sphi 0, %s76
      %s80 = sphi 0, %s79
      %s96 = sphi 0, %s80
      %s100 = sphi 0, %s100
      %s102 = sphi 0, %s100
      %s103 = sphi 0, %s102
      %s117 = sphi 0, %s103
      %s121 = sphi 0, %s121
      %s123 = sphi 0, %s121
      %s124 = sphi 0, %s123
      %s138 = sphi 0, %s124
      %s142 = sphi 0, %s142
      %s144 = sphi 0, %s142
      %s145 = sphi 0, %s144
      %s159 = sphi 0, %s145
      %s163 = sphi 0, %s163
      %s165 = sphi 0, %s163
      %s166 = sphi 0, %s165
      %s180 = sphi 0, %s166
      %s184 = sphi 0, %s184
      %s186 = sphi 0, %s184
      %s187 = sphi 0, %s186
      %s201 = sphi 0, %s187
      %s207 = sphi 0, %s209
      %s210 = sphi 0, %s207
      %s211 = sphi 0, %s210
      %s227 = sphi 0, %s211
      %s233 = sphi 0, %s235
      %s236 = sphi 0, %s233
      %s237 = sphi 0, %s236
      %s253 = sphi 0, %s237
      %s259 = sphi 0, %s261
      %s262 = sphi 0, %s259
      %s263 = sphi 0, %s262
      %s279 = sphi 0, %s263
      %s283 = sphi 0, %s283
      %s285 = sphi 0, %s283
      %s286 = sphi 0, %s285
      %s300 = sphi 0, %s286
      %s304 = sphi 0, %s304
      %s306 = sphi 0, %s304
      %s307 = sphi 0, %s306
      %s321 = sphi 0, %s307
      %s325 = sphi 0, %s325
      %s327 = sphi 0, %s325
      %s328 = sphi 0, %s327
      %s342 = sphi 0, %s328
      %s348 = sphi 0, %s350
      %s351 = sphi 0, %s348
      %s352 = sphi 0, %s351
      %s368 = sphi 0, %s352
    $region4: #{tpu_custom_call.1} parent=1 // loop_header_branch
      %31 = sbr.rel (%p29) target = $region8
    $region5: #{tpu_custom_call.1} parent=1 // loop_body
      %s33 = ssub.s32 %s28, 1
      %s34 = ssub.s32 %s28, 2
      %s41 = sadd.s32 1, %s36
      %p42 = scmp.ge.s32.totalorder %s41, 1
      %s43 = scalar_select %p42, 0, %s41
      %s44 = sadd.s32 1, %s35
      %s45 = scalar_select %p42, %s44, %s35
      %p46 = scmp.ge.s32.totalorder %s45, 2
      %s47 = scalar_select %p46, 0, %s45
      %s48 = ssub.s32 %s35, %s47
      %p49 = scmp.eq.s32.totalorder %s48, 0
      %s51 = sadd.s32 %s50, 1
      %s52 = scalar_select %p49, %s50, %s51
      %p55 = pneg %p49
      %p56 = scmp.eq.s32.totalorder %s28, 1
      %p57 = por %p55, %p56
      %p58 = scmp.ne.s32.totalorder %s50, %s53
      %p59 = scmp.eq.s32.totalorder %s28, 0
      %p60 = por %p58, %p59
      %p61 = scmp.ne.s32.totalorder %s50, %s53
      %p62 = scmp.eq.s32.totalorder %s33, 1
      %p63 = por %p61, %p62
      %p64 = scmp.ne.s32.totalorder %s53, %s54
      %p65 = scmp.eq.s32.totalorder %s33, 0
      %p66 = por %p64, %p65
      %p67 = scmp.ne.s32.totalorder %s53, %s54
      %p68 = scmp.eq.s32.totalorder %s34, 1
      %p69 = por %p67, %p68
      %p71 = scmp.ne.s32.totalorder %s54, %s70
      %p72 = scmp.eq.s32.totalorder %s34, 0
      %p73 = por %p71, %p72
      %s74 = ssub.s32 %s35, %s47
      %p75 = scmp.eq.s32.totalorder %s74, 0
      %s77 = sadd.s32 %s76, 1
      %s78 = scalar_select %p75, %s76, %s77
      %p81 = pneg %p75
      %p82 = scmp.eq.s32.totalorder %s28, 1
      %p83 = por %p81, %p82
      %p84 = scmp.ne.s32.totalorder %s76, %s79
      %p85 = scmp.eq.s32.totalorder %s28, 0
      %p86 = por %p84, %p85
      %p87 = scmp.ne.s32.totalorder %s76, %s79
      %p88 = scmp.eq.s32.totalorder %s33, 1
      %p89 = por %p87, %p88
      %p90 = scmp.ne.s32.totalorder %s79, %s80
      %p91 = scmp.eq.s32.totalorder %s33, 0
      %p92 = por %p90, %p91
      %p93 = scmp.ne.s32.totalorder %s79, %s80
      %p94 = scmp.eq.s32.totalorder %s34, 1
      %p95 = por %p93, %p94
      %p97 = scmp.ne.s32.totalorder %s80, %s96
      %p98 = scmp.eq.s32.totalorder %s34, 0
      %p99 = por %p97, %p98
      %s101 = sadd.s32 %s100, 1
      %p104 = scmp.eq.s32.totalorder %s28, 1
      %p105 = scmp.ne.s32.totalorder %s100, %s102
      %p106 = scmp.eq.s32.totalorder %s28, 0
      %p107 = por %p105, %p106
      %p108 = scmp.ne.s32.totalorder %s100, %s102
      %p109 = scmp.eq.s32.totalorder %s33, 1
      %p110 = por %p108, %p109
      %p111 = scmp.ne.s32.totalorder %s102, %s103
      %p112 = scmp.eq.s32.totalorder %s33, 0
      %p113 = por %p111, %p112
      %p114 = scmp.ne.s32.totalorder %s102, %s103
      %p115 = scmp.eq.s32.totalorder %s34, 1
      %p116 = por %p114, %p115
      %p118 = scmp.ne.s32.totalorder %s103, %s117
      %p119 = scmp.eq.s32.totalorder %s34, 0
      %p120 = por %p118, %p119
      %s122 = sadd.s32 %s121, 1
      %p125 = scmp.eq.s32.totalorder %s28, 1
      %p126 = scmp.ne.s32.totalorder %s121, %s123
      %p127 = scmp.eq.s32.totalorder %s28, 0
      %p128 = por %p126, %p127
      %p129 = scmp.ne.s32.totalorder %s121, %s123
      %p130 = scmp.eq.s32.totalorder %s33, 1
      %p131 = por %p129, %p130
      %p132 = scmp.ne.s32.totalorder %s123, %s124
      %p133 = scmp.eq.s32.totalorder %s33, 0
      %p134 = por %p132, %p133
      %p135 = scmp.ne.s32.totalorder %s123, %s124
      %p136 = scmp.eq.s32.totalorder %s34, 1
      %p137 = por %p135, %p136
      %p139 = scmp.ne.s32.totalorder %s124, %s138
      %p140 = scmp.eq.s32.totalorder %s34, 0
      %p141 = por %p139, %p140
      %s143 = sadd.s32 %s142, 1
      %p146 = scmp.eq.s32.totalorder %s28, 1
      %p147 = scmp.ne.s32.totalorder %s142, %s144
      %p148 = scmp.eq.s32.totalorder %s28, 0
      %p149 = por %p147, %p148
      %p150 = scmp.ne.s32.totalorder %s142, %s144
      %p151 = scmp.eq.s32.totalorder %s33, 1
      %p152 = por %p150, %p151
      %p153 = scmp.ne.s32.totalorder %s144, %s145
      %p154 = scmp.eq.s32.totalorder %s33, 0
      %p155 = por %p153, %p154
      %p156 = scmp.ne.s32.totalorder %s144, %s145
      %p157 = scmp.eq.s32.totalorder %s34, 1
      %p158 = por %p156, %p157
      %p160 = scmp.ne.s32.totalorder %s145, %s159
      %p161 = scmp.eq.s32.totalorder %s34, 0
      %p162 = por %p160, %p161
      %s164 = sadd.s32 %s163, 1
      %p167 = scmp.eq.s32.totalorder %s28, 1
      %p168 = scmp.ne.s32.totalorder %s163, %s165
      %p169 = scmp.eq.s32.totalorder %s28, 0
      %p170 = por %p168, %p169
      %p171 = scmp.ne.s32.totalorder %s163, %s165
      %p172 = scmp.eq.s32.totalorder %s33, 1
      %p173 = por %p171, %p172
      %p174 = scmp.ne.s32.totalorder %s165, %s166
      %p175 = scmp.eq.s32.totalorder %s33, 0
      %p176 = por %p174, %p175
      %p177 = scmp.ne.s32.totalorder %s165, %s166
      %p178 = scmp.eq.s32.totalorder %s34, 1
      %p179 = por %p177, %p178
      %p181 = scmp.ne.s32.totalorder %s166, %s180
      %p182 = scmp.eq.s32.totalorder %s34, 0
      %p183 = por %p181, %p182
      %s185 = sadd.s32 %s184, 1
      %p188 = scmp.eq.s32.totalorder %s28, 1
      %p189 = scmp.ne.s32.totalorder %s184, %s186
      %p190 = scmp.eq.s32.totalorder %s28, 0
      %p191 = por %p189, %p190
      %p192 = scmp.ne.s32.totalorder %s184, %s186
      %p193 = scmp.eq.s32.totalorder %s33, 1
      %p194 = por %p192, %p193
      %p195 = scmp.ne.s32.totalorder %s186, %s187
      %p196 = scmp.eq.s32.totalorder %s33, 0
      %p197 = por %p195, %p196
      %p198 = scmp.ne.s32.totalorder %s186, %s187
      %p199 = scmp.eq.s32.totalorder %s34, 1
      %p200 = por %p198, %p199
      %p202 = scmp.ne.s32.totalorder %s187, %s201
      %p203 = scmp.eq.s32.totalorder %s34, 0
      %p204 = por %p202, %p203
      %s205 = ssub.s32 %s36, %s43
      %p206 = scmp.eq.s32.totalorder %s205, 0
      %s208 = sadd.s32 %s207, 1
      %s209 = scalar_select %p206, %s207, %s208
      %p212 = pneg %p206
      %p213 = scmp.eq.s32.totalorder %s28, 1
      %p214 = por %p212, %p213
      %p215 = scmp.ne.s32.totalorder %s207, %s210
      %p216 = scmp.eq.s32.totalorder %s28, 0
      %p217 = por %p215, %p216
      %p218 = scmp.ne.s32.totalorder %s207, %s210
      %p219 = scmp.eq.s32.totalorder %s33, 1
      %p220 = por %p218, %p219
      %p221 = scmp.ne.s32.totalorder %s210, %s211
      %p222 = scmp.eq.s32.totalorder %s33, 0
      %p223 = por %p221, %p222
      %p224 = scmp.ne.s32.totalorder %s210, %s211
      %p225 = scmp.eq.s32.totalorder %s34, 1
      %p226 = por %p224, %p225
      %p228 = scmp.ne.s32.totalorder %s211, %s227
      %p229 = scmp.eq.s32.totalorder %s34, 0
      %p230 = por %p228, %p229
      %s231 = ssub.s32 %s36, %s43
      %p232 = scmp.eq.s32.totalorder %s231, 0
      %s234 = sadd.s32 %s233, 1
      %s235 = scalar_select %p232, %s233, %s234
      %p238 = pneg %p232
      %p239 = scmp.eq.s32.totalorder %s28, 1
      %p240 = por %p238, %p239
      %p241 = scmp.ne.s32.totalorder %s233, %s236
      %p242 = scmp.eq.s32.totalorder %s28, 0
      %p243 = por %p241, %p242
      %p244 = scmp.ne.s32.totalorder %s233, %s236
      %p245 = scmp.eq.s32.totalorder %s33, 1
      %p246 = por %p244, %p245
      %p247 = scmp.ne.s32.totalorder %s236, %s237
      %p248 = scmp.eq.s32.totalorder %s33, 0
      %p249 = por %p247, %p248
      %p250 = scmp.ne.s32.totalorder %s236, %s237
      %p251 = scmp.eq.s32.totalorder %s34, 1
      %p252 = por %p250, %p251
      %p254 = scmp.ne.s32.totalorder %s237, %s253
      %p255 = scmp.eq.s32.totalorder %s34, 0
      %p256 = por %p254, %p255
      %s257 = ssub.s32 %s36, %s43
      %p258 = scmp.eq.s32.totalorder %s257, 0
      %s260 = sadd.s32 %s259, 1
      %s261 = scalar_select %p258, %s259, %s260
      %p264 = pneg %p258
      %p265 = scmp.eq.s32.totalorder %s28, 1
      %p266 = por %p264, %p265
      %p267 = scmp.ne.s32.totalorder %s259, %s262
      %p268 = scmp.eq.s32.totalorder %s28, 0
      %p269 = por %p267, %p268
      %p270 = scmp.ne.s32.totalorder %s259, %s262
      %p271 = scmp.eq.s32.totalorder %s33, 1
      %p272 = por %p270, %p271
      %p273 = scmp.ne.s32.totalorder %s262, %s263
      %p274 = scmp.eq.s32.totalorder %s33, 0
      %p275 = por %p273, %p274
      %p276 = scmp.ne.s32.totalorder %s262, %s263
      %p277 = scmp.eq.s32.totalorder %s34, 1
      %p278 = por %p276, %p277
      %p280 = scmp.ne.s32.totalorder %s263, %s279
      %p281 = scmp.eq.s32.totalorder %s34, 0
      %p282 = por %p280, %p281
      %s284 = sadd.s32 %s283, 1
      %p287 = scmp.eq.s32.totalorder %s28, 1
      %p288 = scmp.ne.s32.totalorder %s283, %s285
      %p289 = scmp.eq.s32.totalorder %s28, 0
      %p290 = por %p288, %p289
      %p291 = scmp.ne.s32.totalorder %s283, %s285
      %p292 = scmp.eq.s32.totalorder %s33, 1
      %p293 = por %p291, %p292
      %p294 = scmp.ne.s32.totalorder %s285, %s286
      %p295 = scmp.eq.s32.totalorder %s33, 0
      %p296 = por %p294, %p295
      %p297 = scmp.ne.s32.totalorder %s285, %s286
      %p298 = scmp.eq.s32.totalorder %s34, 1
      %p299 = por %p297, %p298
      %p301 = scmp.ne.s32.totalorder %s286, %s300
      %p302 = scmp.eq.s32.totalorder %s34, 0
      %p303 = por %p301, %p302
      %s305 = sadd.s32 %s304, 1
      %p308 = scmp.eq.s32.totalorder %s28, 1
      %p309 = scmp.ne.s32.totalorder %s304, %s306
      %p310 = scmp.eq.s32.totalorder %s28, 0
      %p311 = por %p309, %p310
      %p312 = scmp.ne.s32.totalorder %s304, %s306
      %p313 = scmp.eq.s32.totalorder %s33, 1
      %p314 = por %p312, %p313
      %p315 = scmp.ne.s32.totalorder %s306, %s307
      %p316 = scmp.eq.s32.totalorder %s33, 0
      %p317 = por %p315, %p316
      %p318 = scmp.ne.s32.totalorder %s306, %s307
      %p319 = scmp.eq.s32.totalorder %s34, 1
      %p320 = por %p318, %p319
      %p322 = scmp.ne.s32.totalorder %s307, %s321
      %p323 = scmp.eq.s32.totalorder %s34, 0
      %p324 = por %p322, %p323
      %s326 = sadd.s32 %s325, 1
      %p329 = scmp.eq.s32.totalorder %s28, 1
      %p330 = scmp.ne.s32.totalorder %s325, %s327
      %p331 = scmp.eq.s32.totalorder %s28, 0
      %p332 = por %p330, %p331
      %p333 = scmp.ne.s32.totalorder %s325, %s327
      %p334 = scmp.eq.s32.totalorder %s33, 1
      %p335 = por %p333, %p334
      %p336 = scmp.ne.s32.totalorder %s327, %s328
      %p337 = scmp.eq.s32.totalorder %s33, 0
      %p338 = por %p336, %p337
      %p339 = scmp.ne.s32.totalorder %s327, %s328
      %p340 = scmp.eq.s32.totalorder %s34, 1
      %p341 = por %p339, %p340
      %p343 = scmp.ne.s32.totalorder %s328, %s342
      %p344 = scmp.eq.s32.totalorder %s34, 0
      %p345 = por %p343, %p344
      %s346 = ssub.s32 %s35, %s47
      %p347 = scmp.eq.s32.totalorder %s346, 0
      %s349 = sadd.s32 %s348, 1
      %s350 = scalar_select %p347, %s348, %s349
      %p353 = pneg %p347
      %p354 = scmp.eq.s32.totalorder %s28, 1
      %p355 = por %p353, %p354
      %p356 = scmp.ne.s32.totalorder %s348, %s351
      %p357 = scmp.eq.s32.totalorder %s28, 0
      %p358 = por %p356, %p357
      %p359 = scmp.ne.s32.totalorder %s348, %s351
      %p360 = scmp.eq.s32.totalorder %s33, 1
      %p361 = por %p359, %p360
      %p362 = scmp.ne.s32.totalorder %s351, %s352
      %p363 = scmp.eq.s32.totalorder %s33, 0
      %p364 = por %p362, %p363
      %p365 = scmp.ne.s32.totalorder %s351, %s352
      %p366 = scmp.eq.s32.totalorder %s34, 1
      %p367 = por %p365, %p366
      %p369 = scmp.ne.s32.totalorder %s352, %s368
      %p370 = scmp.eq.s32.totalorder %s34, 0
      %p371 = por %p369, %p370
      %p372 = scmp.le.s32.totalorder 1, %s28
      %p373 = scmp.lt.s32.totalorder %s28, 3
      %p374 = pnand %p372, %p373
      %p375 = pneg %p374
      // Predicated region
      $region9: #{tpu_custom_call.1} parent=5 // pred_check
        _
      $region10: #{tpu_custom_call.1} parent=5 // pred_check_branch
        %377 = sbr.rel (%p374) target = $region12
      $region11: #{tpu_custom_call.1} parent=5 // pred_region
        %s378 = ssub.s32 %s28, 1
        // Predicated region
        $region13: #{tpu_custom_call.1} parent=11 // pred_check
          %p379 = pneg %p113
        $region14: #{tpu_custom_call.1} parent=11 // pred_check_branch
          %381 = sbr.rel (%p379) target = $region16
        $region15: #{tpu_custom_call.1} parent=11 // pred_region
          %383 = vsyncadd [#allocation9], 0
          %s385 = sshll.u32 %s2, 4
          %s386 = int_to_ptr.hbm [resolvable:$true] %s385
          %s387 = sshll.u32 [#allocation10], 4
          %s388 = int_to_ptr.vmem [resolvable:$true] %s387
          %390 = dma.hbm_to_vmem [thread:$0]  %s386, 128, %s388, [#allocation9]
        $region16: #{tpu_custom_call.1} parent=11 // pred_fallthru
          _
        // Predicated region
        $region17: #{tpu_custom_call.1} parent=11 // pred_check
          %p391 = pneg %p134
        $region18: #{tpu_custom_call.1} parent=11 // pred_check_branch
          %393 = sbr.rel (%p391) target = $region20
        $region19: #{tpu_custom_call.1} parent=11 // pred_region
          _
        $region20: #{tpu_custom_call.1} parent=11 // pred_fallthru
          _
        // Predicated region
        $region21: #{tpu_custom_call.1} parent=11 // pred_check
          %p394 = pneg %p155
        $region22: #{tpu_custom_call.1} parent=11 // pred_check_branch
          %396 = sbr.rel (%p394) target = $region24
        $region23: #{tpu_custom_call.1} parent=11 // pred_region
          _
        $region24: #{tpu_custom_call.1} parent=11 // pred_fallthru
          _
        // Predicated region
        $region25: #{tpu_custom_call.1} parent=11 // pred_check
          %p397 = pneg %p176
        $region26: #{tpu_custom_call.1} parent=11 // pred_check_branch
          %399 = sbr.rel (%p397) target = $region28
        $region27: #{tpu_custom_call.1} parent=11 // pred_region
          _
        $region28: #{tpu_custom_call.1} parent=11 // pred_fallthru
          _
        // Predicated region
        $region29: #{tpu_custom_call.1} parent=11 // pred_check
          %p400 = pneg %p197
        $region30: #{tpu_custom_call.1} parent=11 // pred_check_branch
          %402 = sbr.rel (%p400) target = $region32
        $region31: #{tpu_custom_call.1} parent=11 // pred_region
          _
        $region32: #{tpu_custom_call.1} parent=11 // pred_fallthru
          _
        // Predicated region
        $region33: #{tpu_custom_call.1} parent=11 // pred_check
          %p403 = pneg %p223
        $region34: #{tpu_custom_call.1} parent=11 // pred_check_branch
          %405 = sbr.rel (%p403) target = $region36
        $region35: #{tpu_custom_call.1} parent=11 // pred_region
          %p406 = scmp.lt.s32.totalorder %s38, 0
          %s407 = scalar_select %p406, %s38, 0
          %s408 = smul.addr %s407, 8
          %s409 = scalar_lea.vmem %s7, %s408
        $region36: #{tpu_custom_call.1} parent=11 // pred_fallthru
          _
        // Predicated region
        $region37: #{tpu_custom_call.1} parent=11 // pred_check
          %p410 = pneg %p249
        $region38: #{tpu_custom_call.1} parent=11 // pred_check_branch
          %412 = sbr.rel (%p410) target = $region40
        $region39: #{tpu_custom_call.1} parent=11 // pred_region
          %p413 = scmp.lt.s32.totalorder %s38, 0
          %s414 = scalar_select %p413, %s38, 0
          %s415 = scalar_lea.vmem %s8, %s414
        $region40: #{tpu_custom_call.1} parent=11 // pred_fallthru
          _
        // Predicated region
        $region41: #{tpu_custom_call.1} parent=11 // pred_check
          %p416 = pneg %p275
        $region42: #{tpu_custom_call.1} parent=11 // pred_check_branch
          %418 = sbr.rel (%p416) target = $region44
        $region43: #{tpu_custom_call.1} parent=11 // pred_region
          %s419 = smul.u32 8, %s38
          %p420 = scmp.lt.s32.totalorder %s419, 7
          %s421 = scalar_select %p420, %s419, 7
          %s422 = smul.addr %s421, 8
          %s423 = scalar_lea.vmem %s9, %s422
          %s424 = smul.u32 8, %s38
        $region44: #{tpu_custom_call.1} parent=11 // pred_fallthru
          _
        // Predicated region
        $region45: #{tpu_custom_call.1} parent=11 // pred_check
          %p425 = pneg %p296
        $region46: #{tpu_custom_call.1} parent=11 // pred_check_branch
          %427 = sbr.rel (%p425) target = $region48
        $region47: #{tpu_custom_call.1} parent=11 // pred_region
          _
        $region48: #{tpu_custom_call.1} parent=11 // pred_fallthru
          _
        // Predicated region
        $region49: #{tpu_custom_call.1} parent=11 // pred_check
          %p428 = pneg %p317
        $region50: #{tpu_custom_call.1} parent=11 // pred_check_branch
          %430 = sbr.rel (%p428) target = $region52
        $region51: #{tpu_custom_call.1} parent=11 // pred_region
          _
        $region52: #{tpu_custom_call.1} parent=11 // pred_fallthru
          _
        // Predicated region
        $region53: #{tpu_custom_call.1} parent=11 // pred_check
          %p431 = pneg %p338
        $region54: #{tpu_custom_call.1} parent=11 // pred_check_branch
          %433 = sbr.rel (%p431) target = $region56
        $region55: #{tpu_custom_call.1} parent=11 // pred_region
          _
        $region56: #{tpu_custom_call.1} parent=11 // pred_fallthru
          _
      $region12: #{tpu_custom_call.1} parent=5 // pred_fallthru
        _
      %p434 = scmp.lt.s32.totalorder %s28, 2
      // Predicated region
      $region57: #{tpu_custom_call.1} parent=5 // pred_check
        %p435 = pneg %p434
      $region58: #{tpu_custom_call.1} parent=5 // pred_check_branch
        %437 = sbr.rel (%p435) target = $region60
      $region59: #{tpu_custom_call.1} parent=5 // pred_region
        // Predicated region
        $region61: #{tpu_custom_call.1} parent=59 // pred_check
          %p438 = pneg %p60
        $region62: #{tpu_custom_call.1} parent=59 // pred_check_branch
          %440 = sbr.rel (%p438) target = $region64
        $region63: #{tpu_custom_call.1} parent=59 // pred_region
          %s441 = sand.u32 %s50, 1
          %s442 = scalar_lea.sflag [#allocation6], %s441
          %s443 = sand.u32 %s50, 1
          %s444 = smul.addr %s443, 8
          %s445 = scalar_lea.vmem [#allocation5], %s444
          %447 = vsyncadd %s442, 0
          %s448 = smul.addr %s35, 8
          %s449 = scalar_lea.hbm %s0, %s448
          %s451 = sshll.u32 %s449, 4
          %s452 = int_to_ptr.hbm [resolvable:$true] %s451
          %s453 = sshll.u32 %s445, 4
          %s454 = int_to_ptr.vmem [resolvable:$true] %s453
          %456 = dma.hbm_to_vmem [thread:$0]  %s452, 128, %s454, %s442
        $region64: #{tpu_custom_call.1} parent=59 // pred_fallthru
          _
        // Predicated region
        $region65: #{tpu_custom_call.1} parent=59 // pred_check
          %p457 = pneg %p86
        $region66: #{tpu_custom_call.1} parent=59 // pred_check_branch
          %459 = sbr.rel (%p457) target = $region68
        $region67: #{tpu_custom_call.1} parent=59 // pred_region
          %s460 = sand.u32 %s28, 1
          %s461 = scalar_lea.sflag [#allocation9], %s460
          %s462 = sand.u32 %s76, 1
          %s463 = scalar_lea.vmem [#allocation8], %s462
          %465 = vsyncadd %s461, 0
          %s466 = scalar_lea.hbm %s1, %s35
          %s468 = sshll.u32 %s466, 4
          %s469 = int_to_ptr.hbm [resolvable:$true] %s468
          %s470 = sshll.u32 %s463, 4
          %s471 = int_to_ptr.vmem [resolvable:$true] %s470
          %473 = dma.hbm_to_vmem [thread:$0]  %s469, 16, %s471, %s461
        $region68: #{tpu_custom_call.1} parent=59 // pred_fallthru
          _
      $region60: #{tpu_custom_call.1} parent=5 // pred_fallthru
        _
      %p474 = scmp.le.s32.totalorder 1, %s28
      %p475 = scmp.lt.s32.totalorder %s28, 3
      %p476 = pnand %p474, %p475
      %p477 = pneg %p476
      // Predicated region
      $region69: #{tpu_custom_call.1} parent=5 // pred_check
        _
      $region70: #{tpu_custom_call.1} parent=5 // pred_check_branch
        %479 = sbr.rel (%p476) target = $region72
      $region71: #{tpu_custom_call.1} parent=5 // pred_region
        %s480 = ssub.s32 %s28, 1
        %s481 = sand.u32 %s53, 1
        %s482 = scalar_lea.sflag [#allocation6], %s481
        %s483 = sand.u32 %s53, 1
        %s484 = smul.addr %s483, 8
        %s485 = scalar_lea.vmem [#allocation5], %s484
        // Predicated region
        $region73: #{tpu_custom_call.1} parent=71 // pred_check
          %p486 = pneg %p66
        $region74: #{tpu_custom_call.1} parent=71 // pred_check_branch
          %488 = sbr.rel (%p486) target = $region76
        $region75: #{tpu_custom_call.1} parent=71 // pred_region
          %490 = dma.done %s482, 128
        $region76: #{tpu_custom_call.1} parent=71 // pred_fallthru
          _
        %s491 = sand.u32 %s33, 1
        %s492 = scalar_lea.sflag [#allocation9], %s491
        %s493 = sand.u32 %s79, 1
        %s494 = scalar_lea.vmem [#allocation8], %s493
        // Predicated region
        $region77: #{tpu_custom_call.1} parent=71 // pred_check
          %p495 = pneg %p92
        $region78: #{tpu_custom_call.1} parent=71 // pred_check_branch
          %497 = sbr.rel (%p495) target = $region80
        $region79: #{tpu_custom_call.1} parent=71 // pred_region
          %499 = dma.done %s492, 16
        $region80: #{tpu_custom_call.1} parent=71 // pred_fallthru
          _
        // Predicated region
        $region81: #{tpu_custom_call.1} parent=71 // pred_check
          %p500 = pneg %p113
        $region82: #{tpu_custom_call.1} parent=71 // pred_check_branch
          %502 = sbr.rel (%p500) target = $region84
        $region83: #{tpu_custom_call.1} parent=71 // pred_region
          %504 = dma.done [#allocation9], 128
        $region84: #{tpu_custom_call.1} parent=71 // pred_fallthru
          _
        %s505 = sand.u32 %s53, 1
        %s506 = scalar_lea.sflag [#allocation6], %s505
        %s507 = sand.u32 %s53, 1
        %s508 = smul.addr %s507, 8
        %s509 = scalar_lea.vmem [#allocation5], %s508
        %p510 = pneg %p66
        %p511 = pneg %p63
        %s512 = sand.u32 %s33, 1
        %s513 = scalar_lea.sflag [#allocation9], %s512
        %s514 = sand.u32 %s79, 1
        %s515 = scalar_lea.vmem [#allocation8], %s514
        %p516 = pneg %p92
        %p517 = pneg %p89
        %p518 = pneg %p113
        %p519 = pneg %p110
        %p520 = pneg %p134
        %p521 = pneg %p131
        %p522 = pneg %p155
        %p523 = pneg %p152
        %p524 = pneg %p176
        %p525 = pneg %p173
        %p526 = pneg %p197
        %p527 = pneg %p194
        %p528 = scmp.lt.s32.totalorder %s38, 0
        %s529 = scalar_select %p528, %s38, 0
        %s530 = smul.addr %s529, 8
        %s531 = scalar_lea.vmem %s7, %s530
        %p532 = pneg %p223
        %p533 = pneg %p220
        %p534 = scmp.lt.s32.totalorder %s38, 0
        %s535 = scalar_select %p534, %s38, 0
        %s536 = scalar_lea.vmem %s8, %s535
        %p537 = pneg %p249
        %p538 = pneg %p246
        %s539 = smul.u32 8, %s38
        %p540 = scmp.lt.s32.totalorder %s539, 7
        %s541 = scalar_select %p540, %s539, 7
        %s542 = smul.addr %s541, 8
        %s543 = scalar_lea.vmem %s9, %s542
        %p544 = pneg %p275
        %p545 = pneg %p272
        %p546 = pneg %p296
        %p547 = pneg %p293
        %p548 = pneg %p317
        %p549 = pneg %p314
        %p550 = pneg %p338
        %p551 = pneg %p335
        %p552 = pneg %p364
        %p553 = pneg %p361
        %s554 = sand.u32 %s351, 1
        %s555 = scalar_lea.sflag [#allocation7], %s554
        %s556 = sand.u32 %s351, 1
        %s557 = smul.addr %s556, 8
        %s558 = scalar_lea.vmem [#allocation11], %s557
        %p559 = scmp.lt.s32.totalorder %s38, 0
        %s560 = scalar_select %p559, %s38, 0
        %s561 = smul.addr %s560, 8
        %s562 = scalar_lea.vmem %s7, %s561
        %p563 = scmp.lt.s32.totalorder %s38, 0
        %s564 = scalar_select %p563, %s38, 0
        %s565 = scalar_lea.vmem %s8, %s564
        %s566 = smul.u32 8, %s38
        %p567 = scmp.lt.s32.totalorder %s566, 7
        %s568 = scalar_select %p567, %s566, 7
        %s569 = smul.addr %s568, 8
        %s570 = scalar_lea.vmem %s9, %s569
        %s571 = smul.u32 8, %s38
        %p572 = scmp.eq.s32.totalorder %s38, 0
        // Predicated region
        $region85: #{tpu_custom_call.1} parent=71 // pred_check
          %p573 = pneg %p572
        $region86: #{tpu_custom_call.1} parent=71 // pred_check_branch
          %575 = sbr.rel (%p573) target = $region88
        $region87: #{tpu_custom_call.1} parent=71 // pred_region
          %v576 = vld [vmem:[%s485] sm:$0xff]
          %v577 = vld [vmem:[%s3] sm:$0xff]
          %v578 = vld [vmem:[%s3 + $0x8] sm:$0xff]
          %v579 = vld [vmem:[%s3 + $0x10] sm:$0xff]
          %v580 = vld [vmem:[%s3 + $0x18] sm:$0xff]
          %vm581 = vcmask 261120
          %v583 = vsel %vm581, %v576, 0
          %585 = vmatpush.msra.mxu0 0.0
          %586 = vmatpush.msra.mxu0 0.0
          %587 = vmatpush.msra.mxu0 0.0
          %588 = vmatpush.msra.mxu0 0.0
          %589 = vmatpush.msra.mxu0 0.0
          %590 = vmatpush.msra.mxu0 0.0
          %591 = vmatpush.msra.mxu0 0.0
          %592 = vmatpush.msra.mxu0 0.0
          %593 = vmatpush.msra.mxu0 0.0
          %594 = vmatpush.msra.mxu0 0.0
          %595 = vmatpush.msra.mxu0 0.0
          %596 = vmatpush.msra.mxu0 0.0
          %597 = vmatpush.msra.mxu0 %v580
          %598 = vmatpush.msra.mxu0 %v579
          %599 = vmatpush.msra.mxu0 %v578
          %600 = vmatpush.msra.mxu0 %v577
          %601 = vmatmul.f32.gmra.mxu0 %v583
          %v602 = vpop.f32.mrf.mxu0
          %v603 = vadd.f32 0.0, %v602
          %604 = vdwg.mxu0
          %v605 = vmul.f32 %v603, 0.35355338
          %v606 = vld [vmem:[%s494] sm:$0x1]
          %vm607 = vcmp.ne.f32.partialorder %v606, 0.0
          %v608 = vld [vmem:[#allocation10] sm:$0xff]
          %vm609 = vcmp.ne.f32.partialorder %v608, 0.0
          %v610 = vsel %vm607, 1, 0
          %v611 = vperm.slane %v610, 0
          %vm612 = vcmp.eq.s32.totalorder %v611, 1
          %vm613 = vmor %vm612, %vm609
          %615 = vrot.lane.b32.xlu0 %v603, 96
          %v616 = vpop.permute.xlu0 %615
          %vm617 = vcmask 64512
          %v619 = vsel %vm617, %v605, 0
          %v621 = vsel %vm617, %v616, 0
          %623 = vmatpush.xpose.msra.mxu0 0.0
          %624 = vmatpush.xpose.msra.mxu0 0.0
          %625 = vmatpush.xpose.msra.mxu0 0.0
          %626 = vmatpush.xpose.msra.mxu0 0.0
          %627 = vmatpush.xpose.msra.mxu0 0.0
          %628 = vmatpush.xpose.msra.mxu0 0.0
          %629 = vmatpush.xpose.msra.mxu0 0.0
          %630 = vmatpush.xpose.msra.mxu0 0.0
          %631 = vmatpush.xpose.msra.mxu0 0.0
          %632 = vmatpush.xpose.msra.mxu0 0.0
          %633 = vmatpush.xpose.msra.mxu0 0.0
          %634 = vmatpush.xpose.msra.mxu0 0.0
          %635 = vmatpush.xpose.msra.mxu0 0.0
          %636 = vmatpush.xpose.msra.mxu0 0.0
          %637 = vmatpush.xpose.msra.mxu0 0.0
          %638 = vmatpush.xpose.msra.mxu0 %v621
          %639 = vmatmul.f32.gmra.mxu0 %v619
          %v640 = vpop.f32.mrf.mxu0
          %v641 = vadd.f32 0.0, %v640
          %642 = vdwg.mxu0
          %v643 = vsel %vm613, -1e+09, %v641
          %v644 = vsel %vm617, %v643, -inf
          %645 = vmax.xlane.f32.xlu0 %v644
          %v646 = vpop.xlane.xlu0 %645
          %v647 = vsub.f32 %v643, %v646
          %v648 = vmul.f32 %v647, 1.442695
          %v649 = vpow.pop %v648
          %v650 = vsel %vm617, %v649, 0.0
          %651 = vadd.xlane.f32.xlu0 %v650
          %v652 = vpop.xlane.xlu0 %651
          %v653 = vrcp.pop %v652
          %v654 = vmul.f32 %v649, %v653
          %655 = vrot.lane.b32.xlu0 %v603, 64
          %v656 = vpop.permute.xlu0 %655
          %v659 = vsel %vm617, %v654, 0
          %661 = vmatpush.msra.mxu0 0.0
          %662 = vmatpush.msra.mxu0 0.0
          %663 = vmatpush.msra.mxu0 0.0
          %664 = vmatpush.msra.mxu0 0.0
          %665 = vmatpush.msra.mxu0 0.0
          %666 = vmatpush.msra.mxu0 0.0
          %667 = vmatpush.msra.mxu0 0.0
          %668 = vmatpush.msra.mxu0 0.0
          %669 = vmatpush.msra.mxu0 0.0
          %670 = vmatpush.msra.mxu0 0.0
          %671 = vmatpush.msra.mxu0 0.0
          %672 = vmatpush.msra.mxu0 0.0
          %673 = vmatpush.msra.mxu0 0.0
          %674 = vmatpush.msra.mxu0 0.0
          %675 = vmatpush.msra.mxu0 0.0
          %676 = vmatpush.msra.mxu0 %v656
          %677 = vmatmul.f32.gmra.mxu0 %v659
          %v678 = vpop.f32.mrf.mxu0
          %v679 = vadd.f32 0.0, %v678
          %680 = vdwg.mxu0
          %681 = vst.msk [vmem:[#allocation2] sm:$0xff] %vm617, %v679
          %682 = vrot.lane.b32.xlu0 %v605, 120
          %v683 = vpop.permute.xlu0 %682
          %684 = vrot.lane.b32.xlu0 %v603, 88
          %v685 = vpop.permute.xlu0 %684
          %v686 = vsel %vm617, %v683, 0
          %v688 = vsel %vm617, %v685, 0
          %690 = vmatpush.xpose.msra.mxu0 0.0
          %691 = vmatpush.xpose.msra.mxu0 0.0
          %692 = vmatpush.xpose.msra.mxu0 0.0
          %693 = vmatpush.xpose.msra.mxu0 0.0
          %694 = vmatpush.xpose.msra.mxu0 0.0
          %695 = vmatpush.xpose.msra.mxu0 0.0
          %696 = vmatpush.xpose.msra.mxu0 0.0
          %697 = vmatpush.xpose.msra.mxu0 0.0
          %698 = vmatpush.xpose.msra.mxu0 0.0
          %699 = vmatpush.xpose.msra.mxu0 0.0
          %700 = vmatpush.xpose.msra.mxu0 0.0
          %701 = vmatpush.xpose.msra.mxu0 0.0
          %702 = vmatpush.xpose.msra.mxu0 0.0
          %703 = vmatpush.xpose.msra.mxu0 0.0
          %704 = vmatpush.xpose.msra.mxu0 0.0
          %705 = vmatpush.xpose.msra.mxu0 %v688
          %706 = vmatmul.f32.gmra.mxu0 %v686
          %v707 = vpop.f32.mrf.mxu0
          %v708 = vadd.f32 0.0, %v707
          %709 = vdwg.mxu0
          %v710 = vsel %vm613, -1e+09, %v708
          %v711 = vsel %vm617, %v710, -inf
          %712 = vmax.xlane.f32.xlu0 %v711
          %v713 = vpop.xlane.xlu0 %712
          %v714 = vsub.f32 %v710, %v713
          %v715 = vmul.f32 %v714, 1.442695
          %v716 = vpow.pop %v715
          %v717 = vsel %vm617, %v716, 0.0
          %718 = vadd.xlane.f32.xlu0 %v717
          %v719 = vpop.xlane.xlu0 %718
          %v720 = vrcp.pop %v719
          %v721 = vmul.f32 %v716, %v720
          %722 = vrot.lane.b32.xlu0 %v603, 56
          %v723 = vpop.permute.xlu0 %722
          %v726 = vsel %vm617, %v721, 0
          %728 = vmatpush.msra.mxu0 0.0
          %729 = vmatpush.msra.mxu0 0.0
          %730 = vmatpush.msra.mxu0 0.0
          %731 = vmatpush.msra.mxu0 0.0
          %732 = vmatpush.msra.mxu0 0.0
          %733 = vmatpush.msra.mxu0 0.0
          %734 = vmatpush.msra.mxu0 0.0
          %735 = vmatpush.msra.mxu0 0.0
          %736 = vmatpush.msra.mxu0 0.0
          %737 = vmatpush.msra.mxu0 0.0
          %738 = vmatpush.msra.mxu0 0.0
          %739 = vmatpush.msra.mxu0 0.0
          %740 = vmatpush.msra.mxu0 0.0
          %741 = vmatpush.msra.mxu0 0.0
          %742 = vmatpush.msra.mxu0 0.0
          %743 = vmatpush.msra.mxu0 %v723
          %744 = vmatmul.f32.gmra.mxu0 %v726
          %v745 = vpop.f32.mrf.mxu0
          %v746 = vadd.f32 0.0, %v745
          %747 = vdwg.mxu0
          %749 = vrot.lane.b32.xlu0 %v746, 8
          %v750 = vpop.permute.xlu0 %749
          %vm752 = vcmask 130112
          %753 = vst.msk [vmem:[#allocation2] sm:$0xff] %vm752, %v750
          %754 = vrot.lane.b32.xlu0 %v605, 112
          %v755 = vpop.permute.xlu0 %754
          %756 = vrot.lane.b32.xlu0 %v603, 80
          %v757 = vpop.permute.xlu0 %756
          %v758 = vsel %vm617, %v755, 0
          %v760 = vsel %vm617, %v757, 0
          %762 = vmatpush.xpose.msra.mxu0 0.0
          %763 = vmatpush.xpose.msra.mxu0 0.0
          %764 = vmatpush.xpose.msra.mxu0 0.0
          %765 = vmatpush.xpose.msra.mxu0 0.0
          %766 = vmatpush.xpose.msra.mxu0 0.0
          %767 = vmatpush.xpose.msra.mxu0 0.0
          %768 = vmatpush.xpose.msra.mxu0 0.0
          %769 = vmatpush.xpose.msra.mxu0 0.0
          %770 = vmatpush.xpose.msra.mxu0 0.0
          %771 = vmatpush.xpose.msra.mxu0 0.0
          %772 = vmatpush.xpose.msra.mxu0 0.0
          %773 = vmatpush.xpose.msra.mxu0 0.0
          %774 = vmatpush.xpose.msra.mxu0 0.0
          %775 = vmatpush.xpose.msra.mxu0 0.0
          %776 = vmatpush.xpose.msra.mxu0 0.0
          %777 = vmatpush.xpose.msra.mxu0 %v760
          %778 = vmatmul.f32.gmra.mxu0 %v758
          %v779 = vpop.f32.mrf.mxu0
          %v780 = vadd.f32 0.0, %v779
          %781 = vdwg.mxu0
          %v782 = vsel %vm613, -1e+09, %v780
          %v783 = vsel %vm617, %v782, -inf
          %784 = vmax.xlane.f32.xlu0 %v783
          %v785 = vpop.xlane.xlu0 %784
          %v786 = vsub.f32 %v782, %v785
          %v787 = vmul.f32 %v786, 1.442695
          %v788 = vpow.pop %v787
          %v789 = vsel %vm617, %v788, 0.0
          %790 = vadd.xlane.f32.xlu0 %v789
          %v791 = vpop.xlane.xlu0 %790
          %v792 = vrcp.pop %v791
          %v793 = vmul.f32 %v788, %v792
          %794 = vrot.lane.b32.xlu0 %v603, 48
          %v795 = vpop.permute.xlu0 %794
          %v798 = vsel %vm617, %v793, 0
          %800 = vmatpush.msra.mxu0 0.0
          %801 = vmatpush.msra.mxu0 0.0
          %802 = vmatpush.msra.mxu0 0.0
          %803 = vmatpush.msra.mxu0 0.0
          %804 = vmatpush.msra.mxu0 0.0
          %805 = vmatpush.msra.mxu0 0.0
          %806 = vmatpush.msra.mxu0 0.0
          %807 = vmatpush.msra.mxu0 0.0
          %808 = vmatpush.msra.mxu0 0.0
          %809 = vmatpush.msra.mxu0 0.0
          %810 = vmatpush.msra.mxu0 0.0
          %811 = vmatpush.msra.mxu0 0.0
          %812 = vmatpush.msra.mxu0 0.0
          %813 = vmatpush.msra.mxu0 0.0
          %814 = vmatpush.msra.mxu0 0.0
          %815 = vmatpush.msra.mxu0 %v795
          %816 = vmatmul.f32.gmra.mxu0 %v798
          %v817 = vpop.f32.mrf.mxu0
          %v818 = vadd.f32 0.0, %v817
          %819 = vdwg.mxu0
          %821 = vrot.lane.b32.xlu0 %v818, 16
          %v822 = vpop.permute.xlu0 %821
          %vm824 = vcmask 195712
          %825 = vst.msk [vmem:[#allocation2] sm:$0xff] %vm824, %v822
          %826 = vrot.lane.b32.xlu0 %v605, 104
          %v827 = vpop.permute.xlu0 %826
          %828 = vrot.lane.b32.xlu0 %v603, 72
          %v829 = vpop.permute.xlu0 %828
          %v830 = vsel %vm617, %v827, 0
          %v832 = vsel %vm617, %v829, 0
          %834 = vmatpush.xpose.msra.mxu0 0.0
          %835 = vmatpush.xpose.msra.mxu0 0.0
          %836 = vmatpush.xpose.msra.mxu0 0.0
          %837 = vmatpush.xpose.msra.mxu0 0.0
          %838 = vmatpush.xpose.msra.mxu0 0.0
          %839 = vmatpush.xpose.msra.mxu0 0.0
          %840 = vmatpush.xpose.msra.mxu0 0.0
          %841 = vmatpush.xpose.msra.mxu0 0.0
          %842 = vmatpush.xpose.msra.mxu0 0.0
          %843 = vmatpush.xpose.msra.mxu0 0.0
          %844 = vmatpush.xpose.msra.mxu0 0.0
          %845 = vmatpush.xpose.msra.mxu0 0.0
          %846 = vmatpush.xpose.msra.mxu0 0.0
          %847 = vmatpush.xpose.msra.mxu0 0.0
          %848 = vmatpush.xpose.msra.mxu0 0.0
          %849 = vmatpush.xpose.msra.mxu0 %v832
          %850 = vmatmul.f32.gmra.mxu0 %v830
          %v851 = vpop.f32.mrf.mxu0
          %v852 = vadd.f32 0.0, %v851
          %853 = vdwg.mxu0
          %v854 = vsel %vm613, -1e+09, %v852
          %v855 = vsel %vm617, %v854, -inf
          %856 = vmax.xlane.f32.xlu0 %v855
          %v857 = vpop.xlane.xlu0 %856
          %v858 = vsub.f32 %v854, %v857
          %v859 = vmul.f32 %v858, 1.442695
          %v860 = vpow.pop %v859
          %v861 = vsel %vm617, %v860, 0.0
          %862 = vadd.xlane.f32.xlu0 %v861
          %v863 = vpop.xlane.xlu0 %862
          %v864 = vrcp.pop %v863
          %v865 = vmul.f32 %v860, %v864
          %866 = vrot.lane.b32.xlu0 %v603, 40
          %v867 = vpop.permute.xlu0 %866
          %v870 = vsel %vm617, %v865, 0
          %872 = vmatpush.msra.mxu0 0.0
          %873 = vmatpush.msra.mxu0 0.0
          %874 = vmatpush.msra.mxu0 0.0
          %875 = vmatpush.msra.mxu0 0.0
          %876 = vmatpush.msra.mxu0 0.0
          %877 = vmatpush.msra.mxu0 0.0
          %878 = vmatpush.msra.mxu0 0.0
          %879 = vmatpush.msra.mxu0 0.0
          %880 = vmatpush.msra.mxu0 0.0
          %881 = vmatpush.msra.mxu0 0.0
          %882 = vmatpush.msra.mxu0 0.0
          %883 = vmatpush.msra.mxu0 0.0
          %884 = vmatpush.msra.mxu0 0.0
          %885 = vmatpush.msra.mxu0 0.0
          %886 = vmatpush.msra.mxu0 0.0
          %887 = vmatpush.msra.mxu0 %v867
          %888 = vmatmul.f32.gmra.mxu0 %v870
          %v889 = vpop.f32.mrf.mxu0
          %v890 = vadd.f32 0.0, %v889
          %891 = vdwg.mxu0
          %893 = vrot.lane.b32.xlu0 %v890, 24
          %v894 = vpop.permute.xlu0 %893
          %vm896 = vcmask 261312
          %897 = vst.msk [vmem:[#allocation2] sm:$0xff] %vm896, %v894
          %v898 = vld [vmem:[#allocation2] sm:$0xff]
          %v899 = vld [vmem:[%s4] sm:$0xff]
          %v900 = vld [vmem:[%s4 + $0x8] sm:$0xff]
          %v901 = vld [vmem:[%s4 + $0x10] sm:$0xff]
          %v902 = vld [vmem:[%s4 + $0x18] sm:$0xff]
          %v904 = vsel %vm581, %v898, 0
          %906 = vmatpush.msra.mxu0 0.0
          %907 = vmatpush.msra.mxu0 0.0
          %908 = vmatpush.msra.mxu0 0.0
          %909 = vmatpush.msra.mxu0 0.0
          %910 = vmatpush.msra.mxu0 0.0
          %911 = vmatpush.msra.mxu0 0.0
          %912 = vmatpush.msra.mxu0 0.0
          %913 = vmatpush.msra.mxu0 0.0
          %914 = vmatpush.msra.mxu0 0.0
          %915 = vmatpush.msra.mxu0 0.0
          %916 = vmatpush.msra.mxu0 0.0
          %917 = vmatpush.msra.mxu0 0.0
          %918 = vmatpush.msra.mxu0 %v902
          %919 = vmatpush.msra.mxu0 %v901
          %920 = vmatpush.msra.mxu0 %v900
          %921 = vmatpush.msra.mxu0 %v899
          %922 = vmatmul.f32.gmra.mxu0 %v904
          %v923 = vpop.f32.mrf.mxu0
          %v924 = vadd.f32 0.0, %v923
          %925 = vdwg.mxu0
          %v926 = vadd.f32 %v576, %v924
          %v927 = vld [vmem:[%s5] sm:$0x1]
          %v928 = vld [vmem:[%s6] sm:$0x1]
          %v929 = vsel %vm581, %v926, 0.0
          %930 = vadd.xlane.f32.xlu0 %v929
          %v931 = vpop.xlane.xlu0 %930
          %v932 = vrcp.pop 32.0
          %v933 = vmul.f32 32.0, %v932
          %v934 = vsub.f32 1.0, %v933
          %v935 = vmul.f32 %v932, %v934
          %v936 = vadd.f32 %v932, %v935
          %vm937 = vweird.f32 %v932
          %v938 = vsel %vm937, %v932, %v936
          %v939 = vmul.f32 %v931, %v938
          %v940 = vsub.f32 %v926, %v939
          %v941 = vmul.f32 %v940, %v940
          %v942 = vsel %vm581, %v941, 0.0
          %943 = vadd.xlane.f32.xlu0 %v942
          %v944 = vpop.xlane.xlu0 %943
          %v945 = vmul.f32 %v944, %v938
          %v946 = vadd.f32 %v945, 1e-05
          %v947 = vrsqrt.pop %v946
          %v948 = vmul.f32 %v947, %v946
          %v949 = vmul.f32 %v948, %v947
          %v950 = vmul.f32 0.5, %v949
          %v951 = vsub.f32 1.5, %v950
          %v952 = vmul.f32 %v947, %v951
          %vm953 = vweird.f32 %v946
          %vm954 = vweird.f32 %v947
          %vm955 = vmor %vm953, %vm954
          %v956 = vsel %vm955, %v947, %v952
          %v957 = vmul.f32 %v940, %v956
          %v959 = vperm.slane %v927, 0
          %v961 = vmul.f32 %v957, %v959
          %v963 = vperm.slane %v928, 0
          %v965 = vadd.f32 %v961, %v963
          %966 = vst.msk [vmem:[#allocation3] sm:$0xff] %vm581, %v965
          %967 = vst.msk [vmem:[#allocation4] sm:$0xff] %vm581, 0.0
        $region88: #{tpu_custom_call.1} parent=71 // pred_fallthru
          _
        %v968 = vld [vmem:[#allocation3] sm:$0xff]
        %v969 = vld [vmem:[%s562] sm:$0xff]
        %v970 = vld [vmem:[%s562 + $0x8] sm:$0xff]
        %v971 = vld [vmem:[%s562 + $0x10] sm:$0xff]
        %v972 = vld [vmem:[%s562 + $0x18] sm:$0xff]
        %v973 = vld [vmem:[%s565] sm:$0x1]
        %v975 = vperm.slane %v973, 0
        %vm977 = vcmask 261120
        %v979 = vsel %vm977, %v968, 0
        %981 = vmatpush.msra.mxu0 0.0
        %982 = vmatpush.msra.mxu0 0.0
        %983 = vmatpush.msra.mxu0 0.0
        %984 = vmatpush.msra.mxu0 0.0
        %985 = vmatpush.msra.mxu0 0.0
        %986 = vmatpush.msra.mxu0 0.0
        %987 = vmatpush.msra.mxu0 0.0
        %988 = vmatpush.msra.mxu0 0.0
        %989 = vmatpush.msra.mxu0 0.0
        %990 = vmatpush.msra.mxu0 0.0
        %991 = vmatpush.msra.mxu0 0.0
        %992 = vmatpush.msra.mxu0 0.0
        %993 = vmatpush.msra.mxu0 %v972
        %994 = vmatpush.msra.mxu0 %v971
        %995 = vmatpush.msra.mxu0 %v970
        %996 = vmatpush.msra.mxu0 %v969
        %997 = vmatmul.f32.gmra.mxu0 %v979
        %v998 = vpop.f32.mrf.mxu0
        %v999 = vadd.f32 %v975, %v998
        %1000 = vdwg.mxu0
        %v1001 = vmax.f32 %v999, 0.0
        %v1002 = vld [vmem:[#allocation4] sm:$0xff]
        %v1003 = vld [vmem:[%s570] sm:$0xff]
        %v1004 = vld [vmem:[%s570 + $0x8] sm:$0xff]
        %v1005 = vld [vmem:[%s570 + $0x10] sm:$0xff]
        %v1006 = vld [vmem:[%s570 + $0x18] sm:$0xff]
        %v1007 = vld [vmem:[%s570 + $0x20] sm:$0xff]
        %v1008 = vld [vmem:[%s570 + $0x28] sm:$0xff]
        %v1009 = vld [vmem:[%s570 + $0x30] sm:$0xff]
        %v1010 = vld [vmem:[%s570 + $0x38] sm:$0xff]
        %vm1011 = vcmask 523264
        %v1013 = vsel %vm1011, %v1001, 0
        %1015 = vmatpush.msra.mxu0 0.0
        %1016 = vmatpush.msra.mxu0 0.0
        %1017 = vmatpush.msra.mxu0 0.0
        %1018 = vmatpush.msra.mxu0 0.0
        %1019 = vmatpush.msra.mxu0 0.0
        %1020 = vmatpush.msra.mxu0 0.0
        %1021 = vmatpush.msra.mxu0 0.0
        %1022 = vmatpush.msra.mxu0 0.0
        %1023 = vmatpush.msra.mxu0 %v1010
        %1024 = vmatpush.msra.mxu0 %v1009
        %1025 = vmatpush.msra.mxu0 %v1008
        %1026 = vmatpush.msra.mxu0 %v1007
        %1027 = vmatpush.msra.mxu0 %v1006
        %1028 = vmatpush.msra.mxu0 %v1005
        %1029 = vmatpush.msra.mxu0 %v1004
        %1030 = vmatpush.msra.mxu0 %v1003
        %1031 = vmatmul.f32.gmra.mxu0 %v1013
        %v1032 = vpop.f32.mrf.mxu0
        %v1033 = vadd.f32 0.0, %v1032
        %1034 = vdwg.mxu0
        %v1035 = vadd.f32 %v1002, %v1033
        %1036 = vst.msk [vmem:[#allocation4] sm:$0xff] %vm977, %v1035
        // Predicated region
        $region89: #{tpu_custom_call.1} parent=71 // pred_check
          %p1037 = pneg %p572
        $region90: #{tpu_custom_call.1} parent=71 // pred_check_branch
          %1039 = sbr.rel (%p1037) target = $region92
        $region91: #{tpu_custom_call.1} parent=71 // pred_region
          %v1040 = vld [vmem:[#allocation4] sm:$0xff]
          %v1041 = vld [vmem:[%s10] sm:$0x1]
          %v1043 = vperm.slane %v1041, 0
          %v1045 = vadd.f32 %v1040, %v1043
          %v1046 = vld [vmem:[#allocation3] sm:$0xff]
          %v1047 = vadd.f32 %v1046, %v1045
          %v1048 = vld [vmem:[%s11] sm:$0x1]
          %v1049 = vld [vmem:[%s12] sm:$0x1]
          %v1050 = vsel %vm977, %v1047, 0.0
          %1051 = vadd.xlane.f32.xlu0 %v1050
          %v1052 = vpop.xlane.xlu0 %1051
          %v1053 = vrcp.pop 32.0
          %v1054 = vmul.f32 32.0, %v1053
          %v1055 = vsub.f32 1.0, %v1054
          %v1056 = vmul.f32 %v1053, %v1055
          %v1057 = vadd.f32 %v1053, %v1056
          %vm1058 = vweird.f32 %v1053
          %v1059 = vsel %vm1058, %v1053, %v1057
          %v1060 = vmul.f32 %v1052, %v1059
          %v1061 = vsub.f32 %v1047, %v1060
          %v1062 = vmul.f32 %v1061, %v1061
          %v1063 = vsel %vm977, %v1062, 0.0
          %1064 = vadd.xlane.f32.xlu0 %v1063
          %v1065 = vpop.xlane.xlu0 %1064
          %v1066 = vmul.f32 %v1065, %v1059
          %v1067 = vadd.f32 %v1066, 1e-05
          %v1068 = vrsqrt.pop %v1067
          %v1069 = vmul.f32 %v1068, %v1067
          %v1070 = vmul.f32 %v1069, %v1068
          %v1071 = vmul.f32 0.5, %v1070
          %v1072 = vsub.f32 1.5, %v1071
          %v1073 = vmul.f32 %v1068, %v1072
          %vm1074 = vweird.f32 %v1067
          %vm1075 = vweird.f32 %v1068
          %vm1076 = vmor %vm1074, %vm1075
          %v1077 = vsel %vm1076, %v1068, %v1073
          %v1078 = vmul.f32 %v1061, %v1077
          %v1080 = vperm.slane %v1048, 0
          %v1082 = vmul.f32 %v1078, %v1080
          %v1084 = vperm.slane %v1049, 0
          %v1086 = vadd.f32 %v1082, %v1084
          %1087 = vst.msk [vmem:[%s558] sm:$0xff] %vm977, %v1086
        $region92: #{tpu_custom_call.1} parent=71 // pred_fallthru
          _
        %s1088 = sand.u32 %s351, 1
        %s1089 = scalar_lea.sflag [#allocation7], %s1088
        %s1090 = sand.u32 %s351, 1
        %s1091 = smul.addr %s1090, 8
        %s1092 = scalar_lea.vmem [#allocation11], %s1091
        // Predicated region
        $region93: #{tpu_custom_call.1} parent=71 // pred_check
          %p1093 = pneg %p361
        $region94: #{tpu_custom_call.1} parent=71 // pred_check_branch
          %1095 = sbr.rel (%p1093) target = $region96
        $region95: #{tpu_custom_call.1} parent=71 // pred_region
          %1097 = vsyncadd %s1089, 0
          %s1098 = smul.addr %s37, 8
          %s1099 = scalar_lea.hbm %s13, %s1098
          %s1101 = sshll.u32 %s1092, 4
          %s1102 = int_to_ptr.vmem [resolvable:$true] %s1101
          %s1103 = sshll.u32 %s1099, 4
          %s1104 = int_to_ptr.hbm [resolvable:$true] %s1103
          %1106 = dma.vmem_to_hbm [thread:$0]  %s1102, 128, %s1104, %s1089
        $region96: #{tpu_custom_call.1} parent=71 // pred_fallthru
          _
      $region72: #{tpu_custom_call.1} parent=5 // pred_fallthru
        _
      %p1107 = scmp.le.s32.totalorder 2, %s28
      // Predicated region
      $region97: #{tpu_custom_call.1} parent=5 // pred_check
        %p1108 = pneg %p1107
      $region98: #{tpu_custom_call.1} parent=5 // pred_check_branch
        %1110 = sbr.rel (%p1108) target = $region100
      $region99: #{tpu_custom_call.1} parent=5 // pred_region
        %s1111 = ssub.s32 %s28, 2
        // Predicated region
        $region101: #{tpu_custom_call.1} parent=99 // pred_check
          %p1112 = pneg %p367
        $region102: #{tpu_custom_call.1} parent=99 // pred_check_branch
          %1114 = sbr.rel (%p1112) target = $region104
        $region103: #{tpu_custom_call.1} parent=99 // pred_region
          %s1115 = sand.u32 %s352, 1
          %s1116 = scalar_lea.sflag [#allocation7], %s1115
          %s1117 = sand.u32 %s352, 1
          %s1118 = smul.addr %s1117, 8
          %s1119 = scalar_lea.vmem [#allocation11], %s1118
          %1121 = dma.done %s1116, 128
        $region104: #{tpu_custom_call.1} parent=99 // pred_fallthru
          _
      $region100: #{tpu_custom_call.1} parent=5 // pred_fallthru
        _
    $region6: #{tpu_custom_call.1} parent=1 // loop_footer
      %s32 = sadd.s32 1, %s28
    $region7: #{tpu_custom_call.1} parent=1 // loop_footer_branch
      %27 = sbr.rel target = $region3
    $region8: #{tpu_custom_call.1} parent=1 // loop_exit
      _
    %1122 = vsyncpa [#allocation6], 1
    %s1123 = scalar_lea.sflag [#allocation6], 1
    %1124 = vsyncpa %s1123, 1
    %1125 = vsyncpa [#allocation9], 1
    %s1126 = scalar_lea.sflag [#allocation9], 1
    %1127 = vsyncpa %s1126, 1
    %1128 = vsyncpa [#allocation7], 1
    %s1129 = scalar_lea.sflag [#allocation7], 1
    %1130 = vsyncpa %s1129, 1

</llo_original>
